<compile_context>
chip_gen: v5e
topology: v5e:2x2
jax: 0.10.0
libtpu: 0.0.40
codegen_flags: <defaults>
</compile_context>

<pallas_src>
import functools

import jax
import jax.numpy as jnp
from jax import lax
from jax.experimental import pallas as pl
from jax.experimental.pallas import tpu as pltpu


_VALID_GROUPS = (1, 2, 4, 8, 16, 32)


def _regroup_conv_weight(w_cat, channel, group):
    """Fold GRA's interleaved concat into dense weights.

    conv(cat(x_chunk0, y, x_chunk1, y, ...)) == conv(x; Wx) + conv(y; sum_i Wy_i)

    w_cat: (C_out, C+group, 3, 3) -> Wx: (C_out, C, 3, 3), Wy: (C_out, 3, 3).
    """
    sub = channel // group
    x_pos = jnp.asarray(
        [(j // sub) * (sub + 1) + (j % sub) for j in range(channel)], jnp.int32)
    y_pos = jnp.asarray(
        [i * (sub + 1) + sub for i in range(group)], jnp.int32)
    w_x = jnp.take(w_cat, x_pos, axis=1)               # (C, C, 3, 3)
    w_y = jnp.take(w_cat, y_pos, axis=1).sum(axis=1)   # (C, 3, 3)
    return w_x, w_y


def _reverse_stage_kernel(x_ref, y_ref, wconv_ref, bc_ref, wscore_ref, bs_ref,
                          yout_ref, sbuf, *, C, HW, W, PADL, SROWS):
    f32 = jnp.float32
    # Row-group layout of the stacked scratch sbuf (rows = 3C + 24):
    #   rows [g*C, (g+1)*C)        : x shifted by dy = g-1   (g = 0,1,2)
    #   row  3C + 8*g              : y shifted by dy = g-1   (rest of the
    #                                8-row group is zero padding)
    # Lane start of each shifted copy (so reading lane PADL+dx+p gives the
    # value at flat pixel p + dy*W + dx, with zeros out of vertical range).
    starts = (PADL + W, PADL, PADL - W)

    # Re-zero every grid step (scratch is per-core; with "parallel" sharding a
    # core may start at b>0, so a one-time init would be wrong).
    sbuf[...] = jnp.zeros(sbuf.shape, f32)

    x0 = x_ref[...].astype(f32)                          # (C, HW)
    y_cur = 1.0 - jax.nn.sigmoid(y_ref[...].astype(f32))  # (1, HW)
    for g in range(3):
        s = starts[g]
        sbuf[g * C:(g + 1) * C, s:s + HW] = x0
        sbuf[3 * C + 8 * g:3 * C + 8 * g + 1, s:s + HW] = y_cur

    # Lane masks: kill contributions whose horizontal neighbour wrapped across
    # a row boundary of the flattened pixel axis.
    col = lax.broadcasted_iota(jnp.int32, (1, HW), 1) % W
    mask_l = (col > 0).astype(f32)         # reading column w-1 is valid
    mask_r = (col < (W - 1)).astype(f32)   # reading column w+1 is valid

    for gra in range(3):                   # weak, medium, strong GRA
        # ---- x = x + relu(conv3x3(cat(x, y))): 3 stacked-dy matmuls --------
        acc = jnp.zeros((C, HW), f32)
        for dxi, dx in enumerate((-1, 0, 1)):
            xs = sbuf[:, PADL + dx:PADL + dx + HW]               # (3C+24, HW)
            part = jnp.dot(wconv_ref[gra, dxi], xs,
                           preferred_element_type=f32)           # (C, HW)
            if dx == -1:
                part = part * mask_l
            elif dx == 1:
                part = part * mask_r
            acc = acc + part
        x_old = sbuf[C:2 * C, PADL:PADL + HW]
        x_new = x_old + jnp.maximum(acc + bc_ref[gra], 0.0)

        # Refresh the three shifted x row-groups (needed by score + next GRA).
        for g in range(3):
            s = starts[g]
            sbuf[g * C:(g + 1) * C, s:s + HW] = x_new

        # ---- y = y + score3x3(x_new): 3 stacked-dy matmuls ------------------
        # (score weight rows 1..7 and all y-columns are zero.)
        sacc = jnp.zeros((SROWS, HW), f32)
        for dxi, dx in enumerate((-1, 0, 1)):
            xs = sbuf[:, PADL + dx:PADL + dx + HW]
            part = jnp.dot(wscore_ref[gra, dxi], xs,
                           preferred_element_type=f32)           # (SROWS, HW)
            if dx == -1:
                part = part * mask_l
            elif dx == 1:
                part = part * mask_r
            sacc = sacc + part
        y_cur = y_cur + sacc[0:1, :] + bs_ref[gra]

        if gra < 2:   # last GRA's updated y is only needed for the output
            for g in range(3):
                s = starts[g]
                sbuf[3 * C + 8 * g:3 * C + 8 * g + 1, s:s + HW] = y_cur

    yout_ref[...] = y_cur.astype(yout_ref.dtype)


def reverse_stage_forward(x, y, params):
    """ReverseStage.forward.

    x: (B, C, H, W), y: (B, 1, H, W).
    params: [(w_conv, b_conv, w_score, b_score)] for weak/medium/strong GRA,
            w_conv: (C, C+group, 3, 3), b_conv: (C,),
            w_score: (1, C, 3, 3),      b_score: (1,).
    Returns y_out: (B, 1, H, W).
    """
    f32 = jnp.float32
    B, C, H, W = x.shape
    HW = H * W
    PADL = W                    # lane padding (>= W) on each side
    HWL = HW + 2 * PADL
    SROWS = 8                   # padded output rows of the 1-channel score conv
    K = 3 * C + 24              # stacked contract dim (multiple of 8)

    groups = (C // C, C // 8, C // 1)      # weak, medium, strong
    for g in groups:
        if g not in _VALID_GROUPS:
            raise Exception("Invalid Channel")

    wconv_l, bc_l, wscore_l, bs_l = [], [], [], []
    for (w_conv, b_conv, w_score, b_score), group in zip(params, groups):
        w_x, w_y = _regroup_conv_weight(w_conv.astype(f32), C, group)
        # x part: [kx, C_out, ky*C + C_in]
        wx_k = jnp.transpose(w_x, (3, 0, 2, 1)).reshape(3, C, 3 * C)
        # y part: one column at position 8*ky inside a 24-wide zero block
        wy_k = jnp.transpose(w_y, (2, 0, 1))                       # (kx, C, ky)
        wy_block = jnp.zeros((3, C, 3, 8), f32).at[..., 0].set(wy_k)
        wconv_l.append(jnp.concatenate(
            [wx_k, wy_block.reshape(3, C, 24)], axis=-1))          # (3, C, K)
        bc_l.append(b_conv.astype(f32).reshape(C, 1))

        ws_k = jnp.transpose(w_score.astype(f32),
                             (3, 0, 2, 1)).reshape(3, 1, 3 * C)    # (kx, 1, 3C)
        ws_k = jnp.concatenate(
            [ws_k, jnp.zeros((3, 1, K - 3 * C), f32)], axis=-1)    # (3, 1, K)
        ws_k = jnp.concatenate(
            [ws_k, jnp.zeros((3, SROWS - 1, K), f32)], axis=1)     # (3, 8, K)
        wscore_l.append(ws_k)
        bs_l.append(b_score.astype(f32).reshape(1, 1))

    wconv_all = jnp.stack(wconv_l)    # (3, 3, C, K)
    bc_all = jnp.stack(bc_l)          # (3, C, 1)
    wscore_all = jnp.stack(wscore_l)  # (3, 3, SROWS, K)
    bs_all = jnp.stack(bs_l)          # (3, 1, 1)

    # NCHW -> (B, C, H*W): pure reshape; pixels land on the lane axis.
    x_flat = x.astype(f32).reshape(B, C, HW)
    y_flat = y.astype(f32).reshape(B, 1, HW)

    kernel = functools.partial(_reverse_stage_kernel, C=C, HW=HW, W=W,
                               PADL=PADL, SROWS=SROWS)

    y_out = pl.pallas_call(
        kernel,
        out_shape=jax.ShapeDtypeStruct((B, 1, HW), f32),
        grid_spec=pltpu.PrefetchScalarGridSpec(
            num_scalar_prefetch=0,
            grid=(B,),
            in_specs=[
                pl.BlockSpec((None, C, HW), lambda b: (b, 0, 0)),
                pl.BlockSpec((None, 1, HW), lambda b: (b, 0, 0)),
                pl.BlockSpec((3, 3, C, K), lambda b: (0, 0, 0, 0)),
                pl.BlockSpec((3, C, 1), lambda b: (0, 0, 0)),
                pl.BlockSpec((3, 3, SROWS, K), lambda b: (0, 0, 0, 0)),
                pl.BlockSpec((3, 1, 1), lambda b: (0, 0, 0)),
            ],
            out_specs=pl.BlockSpec((None, 1, HW), lambda b: (b, 0, 0)),
            scratch_shapes=[
                pltpu.VMEM((K, HWL), f32),   # stacked shifted x / y buffer
            ],
        ),
        compiler_params=pltpu.CompilerParams(
            dimension_semantics=("parallel",)),
    )(x_flat, y_flat, wconv_all, bc_all, wscore_all, bs_all)

    return y_out.reshape(B, 1, H, W)


# ----------------------------------------------------------------------------
# Pure-JAX reference (mirrors the PyTorch forward) for correctness checking
# ----------------------------------------------------------------------------
def _conv3x3_ref(x, w, b):
    out = lax.conv_general_dilated(
        x, w, window_strides=(1, 1), padding=((1, 1), (1, 1)),
        dimension_numbers=("NCHW", "OIHW", "NCHW"),
        precision=lax.Precision.HIGHEST)
    return out + b[None, :, None, None]


def _gra_ref(x, y, w_conv, b_conv, w_score, b_score, group):
    C = x.shape[1]
    sub = C // group
    pieces = []
    for i in range(group):
        pieces.append(x[:, i * sub:(i + 1) * sub])
        pieces.append(y)
    x_cat = jnp.concatenate(pieces, axis=1)
    x = x + jax.nn.relu(_conv3x3_ref(x_cat, w_conv, b_conv))
    y = y + _conv3x3_ref(x, w_score, b_score)
    return x, y


def reverse_stage_ref(x, y, params):
    C = x.shape[1]
    groups = (1, C // 8, C)
    y = 1.0 - jax.nn.sigmoid(y)
    for (w_conv, b_conv, w_score, b_score), group in zip(params, groups):
        x, y = _gra_ref(x, y, w_conv, b_conv, w_score, b_score, group)
    return y


if __name__ == "__main__":
    B, C, H, W = 2, 32, 16, 16     # channel=32: GRA groups = (1, 4, 32)
    key = jax.random.PRNGKey(0)
    keys = jax.random.split(key, 14)

    groups = (1, C // 8, C)
    params = []
    ki = 0
    for group in groups:
        w_conv = jax.random.normal(keys[ki], (C, C + group, 3, 3), jnp.float32) * 0.1
        b_conv = jax.random.normal(keys[ki + 1], (C,), jnp.float32) * 0.1
        w_score = jax.random.normal(keys[ki + 2], (1, C, 3, 3), jnp.float32) * 0.1
        b_score = jax.random.normal(keys[ki + 3], (1,), jnp.float32) * 0.1
        params.append((w_conv, b_conv, w_score, b_score))
        ki += 4

    x = jax.random.normal(keys[12], (B, C, H, W), jnp.float32)
    y = jax.random.normal(keys[13], (B, 1, H, W), jnp.float32)

    out = reverse_stage_forward(x, y, params)
    out = jax.block_until_ready(out)
    assert out.shape == (B, 1, H, W), out.shape

    ref = reverse_stage_ref(x, y, params)
    max_err = float(jnp.max(jnp.abs(out - ref)))
    assert jnp.allclose(out, ref, atol=2e-3, rtol=2e-3), max_err
    print("KERNEL_OK")
</pallas_src>

<mosaic_0001>
module attributes {stable_mosaic.version = 11 : i64} {
  func.func @_reverse_stage_kernel(%arg0: i32, %arg1: memref<1x32x256xf32, #tpu.memory_space<vmem>>, %arg2: memref<1x1x256xf32, #tpu.memory_space<vmem>>, %arg3: memref<3x3x32x120xf32, #tpu.memory_space<vmem>>, %arg4: memref<3x32x1xf32, #tpu.memory_space<vmem>>, %arg5: memref<3x3x8x120xf32, #tpu.memory_space<vmem>>, %arg6: memref<3x1x1xf32, #tpu.memory_space<vmem>>, %arg7: memref<1x1x256xf32, #tpu.memory_space<vmem>>, %arg8: memref<120x288xf32, #tpu.memory_space<vmem>>) attributes {dimension_semantics = [#tpu.dimension_semantics<parallel>], iteration_bounds = array<i64: 2>, scalar_prefetch = 0 : i64, scratch_operands = 1 : i64, tpu.core_type = #tpu.core_type<tc>, window_params = [{transform_indices = @transform_0, window_bounds = array<i64: 1, 32, 256>}, {transform_indices = @transform_1, window_bounds = array<i64: 1, 1, 256>}, {pipeline_mode = #tpu.pipeline_mode<synchronous>, transform_indices = @transform_2, window_bounds = array<i64: 3, 3, 32, 120>}, {pipeline_mode = #tpu.pipeline_mode<synchronous>, transform_indices = @transform_3, window_bounds = array<i64: 3, 32, 1>}, {pipeline_mode = #tpu.pipeline_mode<synchronous>, transform_indices = @transform_4, window_bounds = array<i64: 3, 3, 8, 120>}, {pipeline_mode = #tpu.pipeline_mode<synchronous>, transform_indices = @transform_5, window_bounds = array<i64: 3, 1, 1>}, {transform_indices = @transform_6, window_bounds = array<i64: 1, 1, 256>}]} {
    %cst = arith.constant 0.000000e+00 : f32
    %0 = vector.broadcast %cst : f32 to vector<120x288xf32>
    %c0 = arith.constant 0 : index
    %c0_0 = arith.constant 0 : index
    %1 = vector.load %arg8[%c0, %c0_0] : memref<120x288xf32, #tpu.memory_space<vmem>>, vector<120x288xf32>
    tpu.vector_store %arg8[%c0, %c0_0], %0 {strides = array<i32>} : memref<120x288xf32, #tpu.memory_space<vmem>>, vector<120x288xf32>,
    %c0_1 = arith.constant 0 : index
    %c0_2 = arith.constant 0 : index
    %c0_3 = arith.constant 0 : index
    %2 = vector.load %arg1[%c0_1, %c0_2, %c0_3] : memref<1x32x256xf32, #tpu.memory_space<vmem>>, vector<1x32x256xf32>
    %3 = vector.shape_cast %2 : vector<1x32x256xf32> to vector<32x256xf32>
    %c0_4 = arith.constant 0 : index
    %c0_5 = arith.constant 0 : index
    %c0_6 = arith.constant 0 : index
    %4 = vector.load %arg2[%c0_4, %c0_5, %c0_6] : memref<1x1x256xf32, #tpu.memory_space<vmem>>, vector<1x1x256xf32>
    %5 = vector.shape_cast %4 : vector<1x1x256xf32> to vector<1x256xf32>
    %6 = arith.negf %5 : vector<1x256xf32>
    %7 = math.exp %6 : vector<1x256xf32>
    %cst_7 = arith.constant 1.000000e+00 : f32
    %8 = vector.broadcast %cst_7 : f32 to vector<1x256xf32>
    %9 = arith.addf %8, %7 : vector<1x256xf32>
    %10 = arith.divf %8, %9 : vector<1x256xf32>
    %cst_8 = arith.constant 1.000000e+00 : f32
    %11 = vector.broadcast %cst_8 : f32 to vector<1x256xf32>
    %12 = arith.subf %11, %10 : vector<1x256xf32>
    %c0_9 = arith.constant 0 : index
    %c32 = arith.constant 32 : index
    %13 = vector.load %arg8[%c0_9, %c32] : memref<120x288xf32, #tpu.memory_space<vmem>>, vector<32x256xf32>
    tpu.vector_store %arg8[%c0_9, %c32], %3 {strides = array<i32>} : memref<120x288xf32, #tpu.memory_space<vmem>>, vector<32x256xf32>,
    %c96 = arith.constant 96 : index
    %c32_10 = arith.constant 32 : index
    %14 = vector.load %arg8[%c96, %c32_10] : memref<120x288xf32, #tpu.memory_space<vmem>>, vector<1x256xf32>
    tpu.vector_store %arg8[%c96, %c32_10], %12 {strides = array<i32>} : memref<120x288xf32, #tpu.memory_space<vmem>>, vector<1x256xf32>,
    %c32_11 = arith.constant 32 : index
    %c16 = arith.constant 16 : index
    %15 = vector.load %arg8[%c32_11, %c16] : memref<120x288xf32, #tpu.memory_space<vmem>>, vector<32x256xf32>
    tpu.vector_store %arg8[%c32_11, %c16], %3 {strides = array<i32>} : memref<120x288xf32, #tpu.memory_space<vmem>>, vector<32x256xf32>,
    %c104 = arith.constant 104 : index
    %c16_12 = arith.constant 16 : index
    %16 = vector.load %arg8[%c104, %c16_12] : memref<120x288xf32, #tpu.memory_space<vmem>>, vector<1x256xf32>
    tpu.vector_store %arg8[%c104, %c16_12], %12 {strides = array<i32>} : memref<120x288xf32, #tpu.memory_space<vmem>>, vector<1x256xf32>,
    %c64 = arith.constant 64 : index
    %c0_13 = arith.constant 0 : index
    %17 = vector.load %arg8[%c64, %c0_13] : memref<120x288xf32, #tpu.memory_space<vmem>>, vector<32x256xf32>
    tpu.vector_store %arg8[%c64, %c0_13], %3 {strides = array<i32>} : memref<120x288xf32, #tpu.memory_space<vmem>>, vector<32x256xf32>,
    %c112 = arith.constant 112 : index
    %c0_14 = arith.constant 0 : index
    %18 = vector.load %arg8[%c112, %c0_14] : memref<120x288xf32, #tpu.memory_space<vmem>>, vector<1x256xf32>
    tpu.vector_store %arg8[%c112, %c0_14], %12 {strides = array<i32>} : memref<120x288xf32, #tpu.memory_space<vmem>>, vector<1x256xf32>,
    %19 = tpu.iota {dimensions = array<i32: 1>} : vector<1x256xi32>
    %c16_i32 = arith.constant 16 : i32
    %c0_i32 = arith.constant 0 : i32
    %20 = arith.cmpi eq, %c16_i32, %c0_i32 : i32
    %c1_i32 = arith.constant 1 : i32
    %21 = arith.select %20, %c1_i32, %c16_i32 : i32
    %22 = vector.broadcast %21 : i32 to vector<1x256xi32>
    %23 = arith.remsi %19, %22 : vector<1x256xi32>
    %c0_i32_15 = arith.constant 0 : i32
    %24 = vector.broadcast %c0_i32_15 : i32 to vector<1x256xi32>
    %25 = arith.cmpi ne, %23, %24 : vector<1x256xi32>
    %c0_i32_16 = arith.constant 0 : i32
    %26 = vector.broadcast %c0_i32_16 : i32 to vector<1x256xi32>
    %27 = arith.cmpi slt, %23, %26 : vector<1x256xi32>
    %c0_i32_17 = arith.constant 0 : i32
    %28 = arith.cmpi slt, %21, %c0_i32_17 : i32
    %29 = vector.broadcast %28 : i1 to vector<1x256xi1>
    %30 = vector.broadcast %29 : vector<1x256xi1> to vector<1x256xi1>
    %31 = arith.xori %27, %30 : vector<1x256xi1>
    %32 = arith.andi %31, %25 : vector<1x256xi1>
    %33 = vector.broadcast %21 : i32 to vector<1x256xi32>
    %34 = arith.addi %23, %33 : vector<1x256xi32>
    %35 = arith.select %32, %34, %23 : vector<1x256xi1>, vector<1x256xi32>
    %c0_i32_18 = arith.constant 0 : i32
    %36 = vector.broadcast %c0_i32_18 : i32 to vector<1x256xi32>
    %37 = arith.cmpi sgt, %35, %36 : vector<1x256xi32>
    %38 = arith.extui %37 : vector<1x256xi1> to vector<1x256xi32>
    %39 = arith.sitofp %38 : vector<1x256xi32> to vector<1x256xf32>
    %c15_i32 = arith.constant 15 : i32
    %40 = vector.broadcast %c15_i32 : i32 to vector<1x256xi32>
    %41 = arith.cmpi slt, %35, %40 : vector<1x256xi32>
    %42 = arith.extui %41 : vector<1x256xi1> to vector<1x256xi32>
    %43 = arith.sitofp %42 : vector<1x256xi32> to vector<1x256xf32>
    %cst_19 = arith.constant 0.000000e+00 : f32
    %44 = vector.broadcast %cst_19 : f32 to vector<32x256xf32>
    %c0_20 = arith.constant 0 : index
    %c15 = arith.constant 15 : index
    %45 = vector.load %arg8[%c0_20, %c15] : memref<120x288xf32, #tpu.memory_space<vmem>>, vector<120x256xf32>
    %c0_21 = arith.constant 0 : index
    %c0_22 = arith.constant 0 : index
    %c0_23 = arith.constant 0 : index
    %c0_24 = arith.constant 0 : index
    %46 = vector.load %arg3[%c0_21, %c0_22, %c0_23, %c0_24] : memref<3x3x32x120xf32, #tpu.memory_space<vmem>>, vector<1x1x32x120xf32>
    %47 = vector.shape_cast %46 : vector<1x1x32x120xf32> to vector<32x120xf32>
    %cst_25 = arith.constant dense<0.000000e+00> : vector<32x256xf32>
    %48 = tpu.matmul %47, %45, %cst_25 {dimension_numbers = #tpu.dot_dimension_numbers<[1], [0], [0], [1], [0, 0, 1, 1], [], []>} : vector<32x120xf32>, vector<120x256xf32>, vector<32x256xf32> -> vector<32x256xf32>
    %49 = vector.broadcast %39 : vector<1x256xf32> to vector<32x256xf32>
    %50 = arith.mulf %48, %49 : vector<32x256xf32>
    %51 = arith.addf %44, %50 : vector<32x256xf32>
    %c0_26 = arith.constant 0 : index
    %c16_27 = arith.constant 16 : index
    %52 = vector.load %arg8[%c0_26, %c16_27] : memref<120x288xf32, #tpu.memory_space<vmem>>, vector<120x256xf32>
    %c0_28 = arith.constant 0 : index
    %c1 = arith.constant 1 : index
    %c0_29 = arith.constant 0 : index
    %c0_30 = arith.constant 0 : index
    %53 = vector.load %arg3[%c0_28, %c1, %c0_29, %c0_30] : memref<3x3x32x120xf32, #tpu.memory_space<vmem>>, vector<1x1x32x120xf32>
    %54 = vector.shape_cast %53 : vector<1x1x32x120xf32> to vector<32x120xf32>
    %cst_31 = arith.constant dense<0.000000e+00> : vector<32x256xf32>
    %55 = tpu.matmul %54, %52, %cst_31 {dimension_numbers = #tpu.dot_dimension_numbers<[1], [0], [0], [1], [0, 0, 1, 1], [], []>} : vector<32x120xf32>, vector<120x256xf32>, vector<32x256xf32> -> vector<32x256xf32>
    %56 = arith.addf %51, %55 : vector<32x256xf32>
    %c0_32 = arith.constant 0 : index
    %c17 = arith.constant 17 : index
    %57 = vector.load %arg8[%c0_32, %c17] : memref<120x288xf32, #tpu.memory_space<vmem>>, vector<120x256xf32>
    %c0_33 = arith.constant 0 : index
    %c2 = arith.constant 2 : index
    %c0_34 = arith.constant 0 : index
    %c0_35 = arith.constant 0 : index
    %58 = vector.load %arg3[%c0_33, %c2, %c0_34, %c0_35] : memref<3x3x32x120xf32, #tpu.memory_space<vmem>>, vector<1x1x32x120xf32>
    %59 = vector.shape_cast %58 : vector<1x1x32x120xf32> to vector<32x120xf32>
    %cst_36 = arith.constant dense<0.000000e+00> : vector<32x256xf32>
    %60 = tpu.matmul %59, %57, %cst_36 {dimension_numbers = #tpu.dot_dimension_numbers<[1], [0], [0], [1], [0, 0, 1, 1], [], []>} : vector<32x120xf32>, vector<120x256xf32>, vector<32x256xf32> -> vector<32x256xf32>
    %61 = vector.broadcast %43 : vector<1x256xf32> to vector<32x256xf32>
    %62 = arith.mulf %60, %61 : vector<32x256xf32>
    %63 = arith.addf %56, %62 : vector<32x256xf32>
    %c32_37 = arith.constant 32 : index
    %c16_38 = arith.constant 16 : index
    %64 = vector.load %arg8[%c32_37, %c16_38] : memref<120x288xf32, #tpu.memory_space<vmem>>, vector<32x256xf32>
    %c0_39 = arith.constant 0 : index
    %c0_40 = arith.constant 0 : index
    %c0_41 = arith.constant 0 : index
    %65 = vector.load %arg4[%c0_39, %c0_40, %c0_41] : memref<3x32x1xf32, #tpu.memory_space<vmem>>, vector<1x32x1xf32>
    %66 = vector.shape_cast %65 : vector<1x32x1xf32> to vector<32x1xf32>
    %67 = vector.broadcast %66 : vector<32x1xf32> to vector<32x256xf32>
    %68 = arith.addf %63, %67 : vector<32x256xf32>
    %cst_42 = arith.constant 0.000000e+00 : f32
    %69 = vector.broadcast %cst_42 : f32 to vector<32x256xf32>
    %70 = arith.maximumf %68, %69 : vector<32x256xf32>
    %71 = arith.addf %64, %70 : vector<32x256xf32>
    %c0_43 = arith.constant 0 : index
    %c32_44 = arith.constant 32 : index
    %72 = vector.load %arg8[%c0_43, %c32_44] : memref<120x288xf32, #tpu.memory_space<vmem>>, vector<32x256xf32>
    tpu.vector_store %arg8[%c0_43, %c32_44], %71 {strides = array<i32>} : memref<120x288xf32, #tpu.memory_space<vmem>>, vector<32x256xf32>,
    %c32_45 = arith.constant 32 : index
    %c16_46 = arith.constant 16 : index
    %73 = vector.load %arg8[%c32_45, %c16_46] : memref<120x288xf32, #tpu.memory_space<vmem>>, vector<32x256xf32>
    tpu.vector_store %arg8[%c32_45, %c16_46], %71 {strides = array<i32>} : memref<120x288xf32, #tpu.memory_space<vmem>>, vector<32x256xf32>,
    %c64_47 = arith.constant 64 : index
    %c0_48 = arith.constant 0 : index
    %74 = vector.load %arg8[%c64_47, %c0_48] : memref<120x288xf32, #tpu.memory_space<vmem>>, vector<32x256xf32>
    tpu.vector_store %arg8[%c64_47, %c0_48], %71 {strides = array<i32>} : memref<120x288xf32, #tpu.memory_space<vmem>>, vector<32x256xf32>,
    %cst_49 = arith.constant 0.000000e+00 : f32
    %75 = vector.broadcast %cst_49 : f32 to vector<8x256xf32>
    %c0_50 = arith.constant 0 : index
    %c15_51 = arith.constant 15 : index
    %76 = vector.load %arg8[%c0_50, %c15_51] : memref<120x288xf32, #tpu.memory_space<vmem>>, vector<120x256xf32>
    %c0_52 = arith.constant 0 : index
    %c0_53 = arith.constant 0 : index
    %c0_54 = arith.constant 0 : index
    %c0_55 = arith.constant 0 : index
    %77 = vector.load %arg5[%c0_52, %c0_53, %c0_54, %c0_55] : memref<3x3x8x120xf32, #tpu.memory_space<vmem>>, vector<1x1x8x120xf32>
    %78 = vector.shape_cast %77 : vector<1x1x8x120xf32> to vector<8x120xf32>
    %cst_56 = arith.constant dense<0.000000e+00> : vector<8x256xf32>
    %79 = tpu.matmul %78, %76, %cst_56 {dimension_numbers = #tpu.dot_dimension_numbers<[1], [0], [0], [1], [0, 0, 1, 1], [], []>} : vector<8x120xf32>, vector<120x256xf32>, vector<8x256xf32> -> vector<8x256xf32>
    %80 = vector.broadcast %39 : vector<1x256xf32> to vector<8x256xf32>
    %81 = arith.mulf %79, %80 : vector<8x256xf32>
    %82 = arith.addf %75, %81 : vector<8x256xf32>
    %c0_57 = arith.constant 0 : index
    %c16_58 = arith.constant 16 : index
    %83 = vector.load %arg8[%c0_57, %c16_58] : memref<120x288xf32, #tpu.memory_space<vmem>>, vector<120x256xf32>
    %c0_59 = arith.constant 0 : index
    %c1_60 = arith.constant 1 : index
    %c0_61 = arith.constant 0 : index
    %c0_62 = arith.constant 0 : index
    %84 = vector.load %arg5[%c0_59, %c1_60, %c0_61, %c0_62] : memref<3x3x8x120xf32, #tpu.memory_space<vmem>>, vector<1x1x8x120xf32>
    %85 = vector.shape_cast %84 : vector<1x1x8x120xf32> to vector<8x120xf32>
    %cst_63 = arith.constant dense<0.000000e+00> : vector<8x256xf32>
    %86 = tpu.matmul %85, %83, %cst_63 {dimension_numbers = #tpu.dot_dimension_numbers<[1], [0], [0], [1], [0, 0, 1, 1], [], []>} : vector<8x120xf32>, vector<120x256xf32>, vector<8x256xf32> -> vector<8x256xf32>
    %87 = arith.addf %82, %86 : vector<8x256xf32>
    %c0_64 = arith.constant 0 : index
    %c17_65 = arith.constant 17 : index
    %88 = vector.load %arg8[%c0_64, %c17_65] : memref<120x288xf32, #tpu.memory_space<vmem>>, vector<120x256xf32>
    %c0_66 = arith.constant 0 : index
    %c2_67 = arith.constant 2 : index
    %c0_68 = arith.constant 0 : index
    %c0_69 = arith.constant 0 : index
    %89 = vector.load %arg5[%c0_66, %c2_67, %c0_68, %c0_69] : memref<3x3x8x120xf32, #tpu.memory_space<vmem>>, vector<1x1x8x120xf32>
    %90 = vector.shape_cast %89 : vector<1x1x8x120xf32> to vector<8x120xf32>
    %cst_70 = arith.constant dense<0.000000e+00> : vector<8x256xf32>
    %91 = tpu.matmul %90, %88, %cst_70 {dimension_numbers = #tpu.dot_dimension_numbers<[1], [0], [0], [1], [0, 0, 1, 1], [], []>} : vector<8x120xf32>, vector<120x256xf32>, vector<8x256xf32> -> vector<8x256xf32>
    %92 = vector.broadcast %43 : vector<1x256xf32> to vector<8x256xf32>
    %93 = arith.mulf %91, %92 : vector<8x256xf32>
    %94 = arith.addf %87, %93 : vector<8x256xf32>
    %95 = vector.extract_strided_slice %94 {offsets = [0, 0], sizes = [1, 256], strides = [1, 1]} : vector<8x256xf32> to vector<1x256xf32>
    %96 = arith.addf %12, %95 : vector<1x256xf32>
    %c0_71 = arith.constant 0 : index
    %c0_72 = arith.constant 0 : index
    %c0_73 = arith.constant 0 : index
    %97 = vector.load %arg6[%c0_71, %c0_72, %c0_73] : memref<3x1x1xf32, #tpu.memory_space<vmem>>, vector<1x1x1xf32>
    %98 = vector.shape_cast %97 : vector<1x1x1xf32> to vector<1x1xf32>
    %99 = vector.broadcast %98 : vector<1x1xf32> to vector<1x256xf32>
    %100 = arith.addf %96, %99 : vector<1x256xf32>
    %c96_74 = arith.constant 96 : index
    %c32_75 = arith.constant 32 : index
    %101 = vector.load %arg8[%c96_74, %c32_75] : memref<120x288xf32, #tpu.memory_space<vmem>>, vector<1x256xf32>
    tpu.vector_store %arg8[%c96_74, %c32_75], %100 {strides = array<i32>} : memref<120x288xf32, #tpu.memory_space<vmem>>, vector<1x256xf32>,
    %c104_76 = arith.constant 104 : index
    %c16_77 = arith.constant 16 : index
    %102 = vector.load %arg8[%c104_76, %c16_77] : memref<120x288xf32, #tpu.memory_space<vmem>>, vector<1x256xf32>
    tpu.vector_store %arg8[%c104_76, %c16_77], %100 {strides = array<i32>} : memref<120x288xf32, #tpu.memory_space<vmem>>, vector<1x256xf32>,
    %c112_78 = arith.constant 112 : index
    %c0_79 = arith.constant 0 : index
    %103 = vector.load %arg8[%c112_78, %c0_79] : memref<120x288xf32, #tpu.memory_space<vmem>>, vector<1x256xf32>
    tpu.vector_store %arg8[%c112_78, %c0_79], %100 {strides = array<i32>} : memref<120x288xf32, #tpu.memory_space<vmem>>, vector<1x256xf32>,
    %cst_80 = arith.constant 0.000000e+00 : f32
    %104 = vector.broadcast %cst_80 : f32 to vector<32x256xf32>
    %c0_81 = arith.constant 0 : index
    %c15_82 = arith.constant 15 : index
    %105 = vector.load %arg8[%c0_81, %c15_82] : memref<120x288xf32, #tpu.memory_space<vmem>>, vector<120x256xf32>
    %c1_83 = arith.constant 1 : index
    %c0_84 = arith.constant 0 : index
    %c0_85 = arith.constant 0 : index
    %c0_86 = arith.constant 0 : index
    %106 = vector.load %arg3[%c1_83, %c0_84, %c0_85, %c0_86] : memref<3x3x32x120xf32, #tpu.memory_space<vmem>>, vector<1x1x32x120xf32>
    %107 = vector.shape_cast %106 : vector<1x1x32x120xf32> to vector<32x120xf32>
    %cst_87 = arith.constant dense<0.000000e+00> : vector<32x256xf32>
    %108 = tpu.matmul %107, %105, %cst_87 {dimension_numbers = #tpu.dot_dimension_numbers<[1], [0], [0], [1], [0, 0, 1, 1], [], []>} : vector<32x120xf32>, vector<120x256xf32>, vector<32x256xf32> -> vector<32x256xf32>
    %109 = vector.broadcast %39 : vector<1x256xf32> to vector<32x256xf32>
    %110 = arith.mulf %108, %109 : vector<32x256xf32>
    %111 = arith.addf %104, %110 : vector<32x256xf32>
    %c0_88 = arith.constant 0 : index
    %c16_89 = arith.constant 16 : index
    %112 = vector.load %arg8[%c0_88, %c16_89] : memref<120x288xf32, #tpu.memory_space<vmem>>, vector<120x256xf32>
    %c1_90 = arith.constant 1 : index
    %c1_91 = arith.constant 1 : index
    %c0_92 = arith.constant 0 : index
    %c0_93 = arith.constant 0 : index
    %113 = vector.load %arg3[%c1_90, %c1_91, %c0_92, %c0_93] : memref<3x3x32x120xf32, #tpu.memory_space<vmem>>, vector<1x1x32x120xf32>
    %114 = vector.shape_cast %113 : vector<1x1x32x120xf32> to vector<32x120xf32>
    %cst_94 = arith.constant dense<0.000000e+00> : vector<32x256xf32>
    %115 = tpu.matmul %114, %112, %cst_94 {dimension_numbers = #tpu.dot_dimension_numbers<[1], [0], [0], [1], [0, 0, 1, 1], [], []>} : vector<32x120xf32>, vector<120x256xf32>, vector<32x256xf32> -> vector<32x256xf32>
    %116 = arith.addf %111, %115 : vector<32x256xf32>
    %c0_95 = arith.constant 0 : index
    %c17_96 = arith.constant 17 : index
    %117 = vector.load %arg8[%c0_95, %c17_96] : memref<120x288xf32, #tpu.memory_space<vmem>>, vector<120x256xf32>
    %c1_97 = arith.constant 1 : index
    %c2_98 = arith.constant 2 : index
    %c0_99 = arith.constant 0 : index
    %c0_100 = arith.constant 0 : index
    %118 = vector.load %arg3[%c1_97, %c2_98, %c0_99, %c0_100] : memref<3x3x32x120xf32, #tpu.memory_space<vmem>>, vector<1x1x32x120xf32>
    %119 = vector.shape_cast %118 : vector<1x1x32x120xf32> to vector<32x120xf32>
    %cst_101 = arith.constant dense<0.000000e+00> : vector<32x256xf32>
    %120 = tpu.matmul %119, %117, %cst_101 {dimension_numbers = #tpu.dot_dimension_numbers<[1], [0], [0], [1], [0, 0, 1, 1], [], []>} : vector<32x120xf32>, vector<120x256xf32>, vector<32x256xf32> -> vector<32x256xf32>
    %121 = vector.broadcast %43 : vector<1x256xf32> to vector<32x256xf32>
    %122 = arith.mulf %120, %121 : vector<32x256xf32>
    %123 = arith.addf %116, %122 : vector<32x256xf32>
    %c32_102 = arith.constant 32 : index
    %c16_103 = arith.constant 16 : index
    %124 = vector.load %arg8[%c32_102, %c16_103] : memref<120x288xf32, #tpu.memory_space<vmem>>, vector<32x256xf32>
    %c1_104 = arith.constant 1 : index
    %c0_105 = arith.constant 0 : index
    %c0_106 = arith.constant 0 : index
    %125 = vector.load %arg4[%c1_104, %c0_105, %c0_106] : memref<3x32x1xf32, #tpu.memory_space<vmem>>, vector<1x32x1xf32>
    %126 = vector.shape_cast %125 : vector<1x32x1xf32> to vector<32x1xf32>
    %127 = vector.broadcast %126 : vector<32x1xf32> to vector<32x256xf32>
    %128 = arith.addf %123, %127 : vector<32x256xf32>
    %cst_107 = arith.constant 0.000000e+00 : f32
    %129 = vector.broadcast %cst_107 : f32 to vector<32x256xf32>
    %130 = arith.maximumf %128, %129 : vector<32x256xf32>
    %131 = arith.addf %124, %130 : vector<32x256xf32>
    %c0_108 = arith.constant 0 : index
    %c32_109 = arith.constant 32 : index
    %132 = vector.load %arg8[%c0_108, %c32_109] : memref<120x288xf32, #tpu.memory_space<vmem>>, vector<32x256xf32>
    tpu.vector_store %arg8[%c0_108, %c32_109], %131 {strides = array<i32>} : memref<120x288xf32, #tpu.memory_space<vmem>>, vector<32x256xf32>,
    %c32_110 = arith.constant 32 : index
    %c16_111 = arith.constant 16 : index
    %133 = vector.load %arg8[%c32_110, %c16_111] : memref<120x288xf32, #tpu.memory_space<vmem>>, vector<32x256xf32>
    tpu.vector_store %arg8[%c32_110, %c16_111], %131 {strides = array<i32>} : memref<120x288xf32, #tpu.memory_space<vmem>>, vector<32x256xf32>,
    %c64_112 = arith.constant 64 : index
    %c0_113 = arith.constant 0 : index
    %134 = vector.load %arg8[%c64_112, %c0_113] : memref<120x288xf32, #tpu.memory_space<vmem>>, vector<32x256xf32>
    tpu.vector_store %arg8[%c64_112, %c0_113], %131 {strides = array<i32>} : memref<120x288xf32, #tpu.memory_space<vmem>>, vector<32x256xf32>,
    %cst_114 = arith.constant 0.000000e+00 : f32
    %135 = vector.broadcast %cst_114 : f32 to vector<8x256xf32>
    %c0_115 = arith.constant 0 : index
    %c15_116 = arith.constant 15 : index
    %136 = vector.load %arg8[%c0_115, %c15_116] : memref<120x288xf32, #tpu.memory_space<vmem>>, vector<120x256xf32>
    %c1_117 = arith.constant 1 : index
    %c0_118 = arith.constant 0 : index
    %c0_119 = arith.constant 0 : index
    %c0_120 = arith.constant 0 : index
    %137 = vector.load %arg5[%c1_117, %c0_118, %c0_119, %c0_120] : memref<3x3x8x120xf32, #tpu.memory_space<vmem>>, vector<1x1x8x120xf32>
    %138 = vector.shape_cast %137 : vector<1x1x8x120xf32> to vector<8x120xf32>
    %cst_121 = arith.constant dense<0.000000e+00> : vector<8x256xf32>
    %139 = tpu.matmul %138, %136, %cst_121 {dimension_numbers = #tpu.dot_dimension_numbers<[1], [0], [0], [1], [0, 0, 1, 1], [], []>} : vector<8x120xf32>, vector<120x256xf32>, vector<8x256xf32> -> vector<8x256xf32>
    %140 = vector.broadcast %39 : vector<1x256xf32> to vector<8x256xf32>
    %141 = arith.mulf %139, %140 : vector<8x256xf32>
    %142 = arith.addf %135, %141 : vector<8x256xf32>
    %c0_122 = arith.constant 0 : index
    %c16_123 = arith.constant 16 : index
    %143 = vector.load %arg8[%c0_122, %c16_123] : memref<120x288xf32, #tpu.memory_space<vmem>>, vector<120x256xf32>
    %c1_124 = arith.constant 1 : index
    %c1_125 = arith.constant 1 : index
    %c0_126 = arith.constant 0 : index
    %c0_127 = arith.constant 0 : index
    %144 = vector.load %arg5[%c1_124, %c1_125, %c0_126, %c0_127] : memref<3x3x8x120xf32, #tpu.memory_space<vmem>>, vector<1x1x8x120xf32>
    %145 = vector.shape_cast %144 : vector<1x1x8x120xf32> to vector<8x120xf32>
    %cst_128 = arith.constant dense<0.000000e+00> : vector<8x256xf32>
    %146 = tpu.matmul %145, %143, %cst_128 {dimension_numbers = #tpu.dot_dimension_numbers<[1], [0], [0], [1], [0, 0, 1, 1], [], []>} : vector<8x120xf32>, vector<120x256xf32>, vector<8x256xf32> -> vector<8x256xf32>
    %147 = arith.addf %142, %146 : vector<8x256xf32>
    %c0_129 = arith.constant 0 : index
    %c17_130 = arith.constant 17 : index
    %148 = vector.load %arg8[%c0_129, %c17_130] : memref<120x288xf32, #tpu.memory_space<vmem>>, vector<120x256xf32>
    %c1_131 = arith.constant 1 : index
    %c2_132 = arith.constant 2 : index
    %c0_133 = arith.constant 0 : index
    %c0_134 = arith.constant 0 : index
    %149 = vector.load %arg5[%c1_131, %c2_132, %c0_133, %c0_134] : memref<3x3x8x120xf32, #tpu.memory_space<vmem>>, vector<1x1x8x120xf32>
    %150 = vector.shape_cast %149 : vector<1x1x8x120xf32> to vector<8x120xf32>
    %cst_135 = arith.constant dense<0.000000e+00> : vector<8x256xf32>
    %151 = tpu.matmul %150, %148, %cst_135 {dimension_numbers = #tpu.dot_dimension_numbers<[1], [0], [0], [1], [0, 0, 1, 1], [], []>} : vector<8x120xf32>, vector<120x256xf32>, vector<8x256xf32> -> vector<8x256xf32>
    %152 = vector.broadcast %43 : vector<1x256xf32> to vector<8x256xf32>
    %153 = arith.mulf %151, %152 : vector<8x256xf32>
    %154 = arith.addf %147, %153 : vector<8x256xf32>
    %155 = vector.extract_strided_slice %154 {offsets = [0, 0], sizes = [1, 256], strides = [1, 1]} : vector<8x256xf32> to vector<1x256xf32>
    %156 = arith.addf %100, %155 : vector<1x256xf32>
    %c1_136 = arith.constant 1 : index
    %c0_137 = arith.constant 0 : index
    %c0_138 = arith.constant 0 : index
    %157 = vector.load %arg6[%c1_136, %c0_137, %c0_138] : memref<3x1x1xf32, #tpu.memory_space<vmem>>, vector<1x1x1xf32>
    %158 = vector.shape_cast %157 : vector<1x1x1xf32> to vector<1x1xf32>
    %159 = vector.broadcast %158 : vector<1x1xf32> to vector<1x256xf32>
    %160 = arith.addf %156, %159 : vector<1x256xf32>
    %c96_139 = arith.constant 96 : index
    %c32_140 = arith.constant 32 : index
    %161 = vector.load %arg8[%c96_139, %c32_140] : memref<120x288xf32, #tpu.memory_space<vmem>>, vector<1x256xf32>
    tpu.vector_store %arg8[%c96_139, %c32_140], %160 {strides = array<i32>} : memref<120x288xf32, #tpu.memory_space<vmem>>, vector<1x256xf32>,
    %c104_141 = arith.constant 104 : index
    %c16_142 = arith.constant 16 : index
    %162 = vector.load %arg8[%c104_141, %c16_142] : memref<120x288xf32, #tpu.memory_space<vmem>>, vector<1x256xf32>
    tpu.vector_store %arg8[%c104_141, %c16_142], %160 {strides = array<i32>} : memref<120x288xf32, #tpu.memory_space<vmem>>, vector<1x256xf32>,
    %c112_143 = arith.constant 112 : index
    %c0_144 = arith.constant 0 : index
    %163 = vector.load %arg8[%c112_143, %c0_144] : memref<120x288xf32, #tpu.memory_space<vmem>>, vector<1x256xf32>
    tpu.vector_store %arg8[%c112_143, %c0_144], %160 {strides = array<i32>} : memref<120x288xf32, #tpu.memory_space<vmem>>, vector<1x256xf32>,
    %cst_145 = arith.constant 0.000000e+00 : f32
    %164 = vector.broadcast %cst_145 : f32 to vector<32x256xf32>
    %c0_146 = arith.constant 0 : index
    %c15_147 = arith.constant 15 : index
    %165 = vector.load %arg8[%c0_146, %c15_147] : memref<120x288xf32, #tpu.memory_space<vmem>>, vector<120x256xf32>
    %c2_148 = arith.constant 2 : index
    %c0_149 = arith.constant 0 : index
    %c0_150 = arith.constant 0 : index
    %c0_151 = arith.constant 0 : index
    %166 = vector.load %arg3[%c2_148, %c0_149, %c0_150, %c0_151] : memref<3x3x32x120xf32, #tpu.memory_space<vmem>>, vector<1x1x32x120xf32>
    %167 = vector.shape_cast %166 : vector<1x1x32x120xf32> to vector<32x120xf32>
    %cst_152 = arith.constant dense<0.000000e+00> : vector<32x256xf32>
    %168 = tpu.matmul %167, %165, %cst_152 {dimension_numbers = #tpu.dot_dimension_numbers<[1], [0], [0], [1], [0, 0, 1, 1], [], []>} : vector<32x120xf32>, vector<120x256xf32>, vector<32x256xf32> -> vector<32x256xf32>
    %169 = vector.broadcast %39 : vector<1x256xf32> to vector<32x256xf32>
    %170 = arith.mulf %168, %169 : vector<32x256xf32>
    %171 = arith.addf %164, %170 : vector<32x256xf32>
    %c0_153 = arith.constant 0 : index
    %c16_154 = arith.constant 16 : index
    %172 = vector.load %arg8[%c0_153, %c16_154] : memref<120x288xf32, #tpu.memory_space<vmem>>, vector<120x256xf32>
    %c2_155 = arith.constant 2 : index
    %c1_156 = arith.constant 1 : index
    %c0_157 = arith.constant 0 : index
    %c0_158 = arith.constant 0 : index
    %173 = vector.load %arg3[%c2_155, %c1_156, %c0_157, %c0_158] : memref<3x3x32x120xf32, #tpu.memory_space<vmem>>, vector<1x1x32x120xf32>
    %174 = vector.shape_cast %173 : vector<1x1x32x120xf32> to vector<32x120xf32>
    %cst_159 = arith.constant dense<0.000000e+00> : vector<32x256xf32>
    %175 = tpu.matmul %174, %172, %cst_159 {dimension_numbers = #tpu.dot_dimension_numbers<[1], [0], [0], [1], [0, 0, 1, 1], [], []>} : vector<32x120xf32>, vector<120x256xf32>, vector<32x256xf32> -> vector<32x256xf32>
    %176 = arith.addf %171, %175 : vector<32x256xf32>
    %c0_160 = arith.constant 0 : index
    %c17_161 = arith.constant 17 : index
    %177 = vector.load %arg8[%c0_160, %c17_161] : memref<120x288xf32, #tpu.memory_space<vmem>>, vector<120x256xf32>
    %c2_162 = arith.constant 2 : index
    %c2_163 = arith.constant 2 : index
    %c0_164 = arith.constant 0 : index
    %c0_165 = arith.constant 0 : index
    %178 = vector.load %arg3[%c2_162, %c2_163, %c0_164, %c0_165] : memref<3x3x32x120xf32, #tpu.memory_space<vmem>>, vector<1x1x32x120xf32>
    %179 = vector.shape_cast %178 : vector<1x1x32x120xf32> to vector<32x120xf32>
    %cst_166 = arith.constant dense<0.000000e+00> : vector<32x256xf32>
    %180 = tpu.matmul %179, %177, %cst_166 {dimension_numbers = #tpu.dot_dimension_numbers<[1], [0], [0], [1], [0, 0, 1, 1], [], []>} : vector<32x120xf32>, vector<120x256xf32>, vector<32x256xf32> -> vector<32x256xf32>
    %181 = vector.broadcast %43 : vector<1x256xf32> to vector<32x256xf32>
    %182 = arith.mulf %180, %181 : vector<32x256xf32>
    %183 = arith.addf %176, %182 : vector<32x256xf32>
    %c32_167 = arith.constant 32 : index
    %c16_168 = arith.constant 16 : index
    %184 = vector.load %arg8[%c32_167, %c16_168] : memref<120x288xf32, #tpu.memory_space<vmem>>, vector<32x256xf32>
    %c2_169 = arith.constant 2 : index
    %c0_170 = arith.constant 0 : index
    %c0_171 = arith.constant 0 : index
    %185 = vector.load %arg4[%c2_169, %c0_170, %c0_171] : memref<3x32x1xf32, #tpu.memory_space<vmem>>, vector<1x32x1xf32>
    %186 = vector.shape_cast %185 : vector<1x32x1xf32> to vector<32x1xf32>
    %187 = vector.broadcast %186 : vector<32x1xf32> to vector<32x256xf32>
    %188 = arith.addf %183, %187 : vector<32x256xf32>
    %cst_172 = arith.constant 0.000000e+00 : f32
    %189 = vector.broadcast %cst_172 : f32 to vector<32x256xf32>
    %190 = arith.maximumf %188, %189 : vector<32x256xf32>
    %191 = arith.addf %184, %190 : vector<32x256xf32>
    %c0_173 = arith.constant 0 : index
    %c32_174 = arith.constant 32 : index
    %192 = vector.load %arg8[%c0_173, %c32_174] : memref<120x288xf32, #tpu.memory_space<vmem>>, vector<32x256xf32>
    tpu.vector_store %arg8[%c0_173, %c32_174], %191 {strides = array<i32>} : memref<120x288xf32, #tpu.memory_space<vmem>>, vector<32x256xf32>,
    %c32_175 = arith.constant 32 : index
    %c16_176 = arith.constant 16 : index
    %193 = vector.load %arg8[%c32_175, %c16_176] : memref<120x288xf32, #tpu.memory_space<vmem>>, vector<32x256xf32>
    tpu.vector_store %arg8[%c32_175, %c16_176], %191 {strides = array<i32>} : memref<120x288xf32, #tpu.memory_space<vmem>>, vector<32x256xf32>,
    %c64_177 = arith.constant 64 : index
    %c0_178 = arith.constant 0 : index
    %194 = vector.load %arg8[%c64_177, %c0_178] : memref<120x288xf32, #tpu.memory_space<vmem>>, vector<32x256xf32>
    tpu.vector_store %arg8[%c64_177, %c0_178], %191 {strides = array<i32>} : memref<120x288xf32, #tpu.memory_space<vmem>>, vector<32x256xf32>,
    %cst_179 = arith.constant 0.000000e+00 : f32
    %195 = vector.broadcast %cst_179 : f32 to vector<8x256xf32>
    %c0_180 = arith.constant 0 : index
    %c15_181 = arith.constant 15 : index
    %196 = vector.load %arg8[%c0_180, %c15_181] : memref<120x288xf32, #tpu.memory_space<vmem>>, vector<120x256xf32>
    %c2_182 = arith.constant 2 : index
    %c0_183 = arith.constant 0 : index
    %c0_184 = arith.constant 0 : index
    %c0_185 = arith.constant 0 : index
    %197 = vector.load %arg5[%c2_182, %c0_183, %c0_184, %c0_185] : memref<3x3x8x120xf32, #tpu.memory_space<vmem>>, vector<1x1x8x120xf32>
    %198 = vector.shape_cast %197 : vector<1x1x8x120xf32> to vector<8x120xf32>
    %cst_186 = arith.constant dense<0.000000e+00> : vector<8x256xf32>
    %199 = tpu.matmul %198, %196, %cst_186 {dimension_numbers = #tpu.dot_dimension_numbers<[1], [0], [0], [1], [0, 0, 1, 1], [], []>} : vector<8x120xf32>, vector<120x256xf32>, vector<8x256xf32> -> vector<8x256xf32>
    %200 = vector.broadcast %39 : vector<1x256xf32> to vector<8x256xf32>
    %201 = arith.mulf %199, %200 : vector<8x256xf32>
    %202 = arith.addf %195, %201 : vector<8x256xf32>
    %c0_187 = arith.constant 0 : index
    %c16_188 = arith.constant 16 : index
    %203 = vector.load %arg8[%c0_187, %c16_188] : memref<120x288xf32, #tpu.memory_space<vmem>>, vector<120x256xf32>
    %c2_189 = arith.constant 2 : index
    %c1_190 = arith.constant 1 : index
    %c0_191 = arith.constant 0 : index
    %c0_192 = arith.constant 0 : index
    %204 = vector.load %arg5[%c2_189, %c1_190, %c0_191, %c0_192] : memref<3x3x8x120xf32, #tpu.memory_space<vmem>>, vector<1x1x8x120xf32>
    %205 = vector.shape_cast %204 : vector<1x1x8x120xf32> to vector<8x120xf32>
    %cst_193 = arith.constant dense<0.000000e+00> : vector<8x256xf32>
    %206 = tpu.matmul %205, %203, %cst_193 {dimension_numbers = #tpu.dot_dimension_numbers<[1], [0], [0], [1], [0, 0, 1, 1], [], []>} : vector<8x120xf32>, vector<120x256xf32>, vector<8x256xf32> -> vector<8x256xf32>
    %207 = arith.addf %202, %206 : vector<8x256xf32>
    %c0_194 = arith.constant 0 : index
    %c17_195 = arith.constant 17 : index
    %208 = vector.load %arg8[%c0_194, %c17_195] : memref<120x288xf32, #tpu.memory_space<vmem>>, vector<120x256xf32>
    %c2_196 = arith.constant 2 : index
    %c2_197 = arith.constant 2 : index
    %c0_198 = arith.constant 0 : index
    %c0_199 = arith.constant 0 : index
    %209 = vector.load %arg5[%c2_196, %c2_197, %c0_198, %c0_199] : memref<3x3x8x120xf32, #tpu.memory_space<vmem>>, vector<1x1x8x120xf32>
    %210 = vector.shape_cast %209 : vector<1x1x8x120xf32> to vector<8x120xf32>
    %cst_200 = arith.constant dense<0.000000e+00> : vector<8x256xf32>
    %211 = tpu.matmul %210, %208, %cst_200 {dimension_numbers = #tpu.dot_dimension_numbers<[1], [0], [0], [1], [0, 0, 1, 1], [], []>} : vector<8x120xf32>, vector<120x256xf32>, vector<8x256xf32> -> vector<8x256xf32>
    %212 = vector.broadcast %43 : vector<1x256xf32> to vector<8x256xf32>
    %213 = arith.mulf %211, %212 : vector<8x256xf32>
    %214 = arith.addf %207, %213 : vector<8x256xf32>
    %215 = vector.extract_strided_slice %214 {offsets = [0, 0], sizes = [1, 256], strides = [1, 1]} : vector<8x256xf32> to vector<1x256xf32>
    %216 = arith.addf %160, %215 : vector<1x256xf32>
    %c2_201 = arith.constant 2 : index
    %c0_202 = arith.constant 0 : index
    %c0_203 = arith.constant 0 : index
    %217 = vector.load %arg6[%c2_201, %c0_202, %c0_203] : memref<3x1x1xf32, #tpu.memory_space<vmem>>, vector<1x1x1xf32>
    %218 = vector.shape_cast %217 : vector<1x1x1xf32> to vector<1x1xf32>
    %219 = vector.broadcast %218 : vector<1x1xf32> to vector<1x256xf32>
    %220 = arith.addf %216, %219 : vector<1x256xf32>
    %c0_204 = arith.constant 0 : index
    %c0_205 = arith.constant 0 : index
    %c0_206 = arith.constant 0 : index
    %221 = vector.load %arg7[%c0_204, %c0_205, %c0_206] : memref<1x1x256xf32, #tpu.memory_space<vmem>>, vector<1x1x256xf32>
    %222 = vector.shape_cast %221 : vector<1x1x256xf32> to vector<1x256xf32>
    %223 = vector.shape_cast %220 : vector<1x256xf32> to vector<1x1x256xf32>
    tpu.vector_store %arg7[%c0_204, %c0_205, %c0_206], %223 {strides = array<i32>} : memref<1x1x256xf32, #tpu.memory_space<vmem>>, vector<1x1x256xf32>,
    return
  }
  func.func @transform_0(%arg0: i32) -> (i32, i32, i32) {
    %c0_i32 = arith.constant 0 : i32
    %c0_i32_0 = arith.constant 0 : i32
    %c0_i32_1 = arith.constant 0 : i32
    return %arg0, %c0_i32, %c0_i32_0 : i32, i32, i32
  }
  func.func @transform_1(%arg0: i32) -> (i32, i32, i32) {
    %c0_i32 = arith.constant 0 : i32
    %c0_i32_0 = arith.constant 0 : i32
    %c0_i32_1 = arith.constant 0 : i32
    return %arg0, %c0_i32, %c0_i32_0 : i32, i32, i32
  }
  func.func @transform_2(%arg0: i32) -> (i32, i32, i32, i32) {
    %c0_i32 = arith.constant 0 : i32
    %c0_i32_0 = arith.constant 0 : i32
    %c0_i32_1 = arith.constant 0 : i32
    %c0_i32_2 = arith.constant 0 : i32
    %c0_i32_3 = arith.constant 0 : i32
    return %c0_i32, %c0_i32_0, %c0_i32_1, %c0_i32_2 : i32, i32, i32, i32
  }
  func.func @transform_3(%arg0: i32) -> (i32, i32, i32) {
    %c0_i32 = arith.constant 0 : i32
    %c0_i32_0 = arith.constant 0 : i32
    %c0_i32_1 = arith.constant 0 : i32
    %c0_i32_2 = arith.constant 0 : i32
    return %c0_i32, %c0_i32_0, %c0_i32_1 : i32, i32, i32
  }
  func.func @transform_4(%arg0: i32) -> (i32, i32, i32, i32) {
    %c0_i32 = arith.constant 0 : i32
    %c0_i32_0 = arith.constant 0 : i32
    %c0_i32_1 = arith.constant 0 : i32
    %c0_i32_2 = arith.constant 0 : i32
    %c0_i32_3 = arith.constant 0 : i32
    return %c0_i32, %c0_i32_0, %c0_i32_1, %c0_i32_2 : i32, i32, i32, i32
  }
  func.func @transform_5(%arg0: i32) -> (i32, i32, i32) {
    %c0_i32 = arith.constant 0 : i32
    %c0_i32_0 = arith.constant 0 : i32
    %c0_i32_1 = arith.constant 0 : i32
    %c0_i32_2 = arith.constant 0 : i32
    return %c0_i32, %c0_i32_0, %c0_i32_1 : i32, i32, i32
  }
  func.func @transform_6(%arg0: i32) -> (i32, i32, i32) {
    %c0_i32 = arith.constant 0 : i32
    %c0_i32_0 = arith.constant 0 : i32
    %c0_i32_1 = arith.constant 0 : i32
    return %arg0, %c0_i32, %c0_i32_0 : i32, i32, i32
  }
}

</mosaic_0001>

<llo_original>
// kernel: tpu_custom_call.1
$region0: #{tpu_custom_call.1}
  #allocation0 [shape = 'u32[]', space=smem, size = 0x4, offset = 0x4, fixed_abs, tag = 'smem constant byte address 0x4 - core index']
  #allocation1 [shape = 'u32[72,128]{1,0:T(1,128)}', space=vmem, size = 0x9000, scoped, tag = 'internal scratch']
  #allocation2 [shape = 'f32[120,288]{1,0:T(8,128)}', space=vmem, size = 0x2d000, scoped, tag = 'scratch operand']
  %s0 = inlined_call_operand.hbm [shape: f32[2,32,256], index: 0, kind: input, shape index: {}]
  %s1 = inlined_call_operand.vmem [shape: f32[2,1,256], index: 1, kind: input, shape index: {}]
  %s2 = inlined_call_operand.hbm [shape: f32[3,3,32,120], index: 2, kind: input, shape index: {}]
  %s3 = inlined_call_operand.vmem [shape: f32[3,32,1], index: 3, kind: input, shape index: {}]
  %s4 = inlined_call_operand.vmem [shape: f32[3,3,8,120], index: 4, kind: input, shape index: {}]
  %s5 = inlined_call_operand.vmem [shape: f32[3,1,1], index: 5, kind: input, shape index: {}]
  %s6 = inlined_call_operand.hbm [shape: f32[2,1,256], index: 6, kind: output, shape index: {}]
  %s7 = sld [smem:[#allocation0]]
  $region65: #{tpu_custom_call.1} parent=0
    _
  %s9 = ssub.s32 1, %s7
  %s10 = scalar_select 0, %s9, %s7
  $region1: #{tpu_custom_call.1} parent=0
    #allocation3 [shape = 'u8[65536]{0}', space=vmem, size = 0x10000, scoped, tag = 'input window, operand 0']
    #allocation4 [shape = 's32[2]{0}', space=sflag, size = 0x8, scoped, tag = 'scoped memory for tpu_custom_call.1']
    #allocation5 [shape = 's32[2]{0}', space=sflag, size = 0x8, scoped, tag = 'scoped memory for tpu_custom_call.1']
    #allocation6 [shape = 'u8[147456]{0}', space=vmem, size = 0x24000, scoped, tag = 'input window, operand 2, single buffered']
    #allocation7 [shape = 's32[1]{0}', space=sflag, size = 0x4, scoped, tag = 'scoped memory for tpu_custom_call.1']
    #allocation8 [shape = 'u8[2048]{0}', space=vmem, size = 0x800, scoped, tag = 'output window, operand 0']
    %11 = vsyncpa [#allocation4], 0
    %s12 = scalar_lea.sflag [#allocation4], 1
    %13 = vsyncpa %s12, 0
    %14 = vsyncpa [#allocation7], 0
    %15 = vsyncpa [#allocation5], 0
    %s16 = scalar_lea.sflag [#allocation5], 1
    %17 = vsyncpa %s16, 0
    loop: start=0, step=1, limit=4
    $region2: #{tpu_custom_call.1} parent=1 // loop_pre_header
      _
    $region3: #{tpu_custom_call.1} parent=1 // loop_header
      %s19 = sphi 0, %s23
      %p20 = scmp.ge.s32.totalorder %s19, 4
      %s29 = sphi 0, %s31
      %s32 = sphi 0, %s29
      %s33 = sphi 0, %s32
      %s49 = sphi 0, %s33
      %s55 = sphi 0, %s57
      %s58 = sphi 0, %s55
      %s59 = sphi 0, %s58
      %s75 = sphi 0, %s59
      %s79 = sphi 0, %s79
      %s81 = sphi 0, %s79
      %s82 = sphi 0, %s81
      %s96 = sphi 0, %s82
      %s100 = sphi 0, %s100
      %s102 = sphi 0, %s100
      %s103 = sphi 0, %s102
      %s117 = sphi 0, %s103
      %s121 = sphi 0, %s121
      %s123 = sphi 0, %s121
      %s124 = sphi 0, %s123
      %s138 = sphi 0, %s124
      %s142 = sphi 0, %s142
      %s144 = sphi 0, %s142
      %s145 = sphi 0, %s144
      %s159 = sphi 0, %s145
      %s165 = sphi 0, %s167
      %s168 = sphi 0, %s165
      %s169 = sphi 0, %s168
      %s185 = sphi 0, %s169
    $region4: #{tpu_custom_call.1} parent=1 // loop_header_branch
      %22 = sbr.rel (%p20) target = $region8
    $region5: #{tpu_custom_call.1} parent=1 // loop_body
      %s24 = ssub.s32 %s19, 1
      %s25 = ssub.s32 %s19, 2
      %s26 = sadd.s32 %s19, 1
      %s27 = ssub.s32 %s19, %s26
      %p28 = scmp.eq.s32.totalorder %s27, 0
      %s30 = sadd.s32 %s29, 1
      %s31 = scalar_select %p28, %s29, %s30
      %p34 = pneg %p28
      %p35 = scmp.eq.s32.totalorder %s19, 1
      %p36 = por %p34, %p35
      %p37 = scmp.ne.s32.totalorder %s29, %s32
      %p38 = scmp.eq.s32.totalorder %s19, 0
      %p39 = por %p37, %p38
      %p40 = scmp.ne.s32.totalorder %s29, %s32
      %p41 = scmp.eq.s32.totalorder %s24, 1
      %p42 = por %p40, %p41
      %p43 = scmp.ne.s32.totalorder %s32, %s33
      %p44 = scmp.eq.s32.totalorder %s24, 0
      %p45 = por %p43, %p44
      %p46 = scmp.ne.s32.totalorder %s32, %s33
      %p47 = scmp.eq.s32.totalorder %s25, 1
      %p48 = por %p46, %p47
      %p50 = scmp.ne.s32.totalorder %s33, %s49
      %p51 = scmp.eq.s32.totalorder %s25, 0
      %p52 = por %p50, %p51
      %s53 = ssub.s32 %s19, %s26
      %p54 = scmp.eq.s32.totalorder %s53, 0
      %s56 = sadd.s32 %s55, 1
      %s57 = scalar_select %p54, %s55, %s56
      %p60 = pneg %p54
      %p61 = scmp.eq.s32.totalorder %s19, 1
      %p62 = por %p60, %p61
      %p63 = scmp.ne.s32.totalorder %s55, %s58
      %p64 = scmp.eq.s32.totalorder %s19, 0
      %p65 = por %p63, %p64
      %p66 = scmp.ne.s32.totalorder %s55, %s58
      %p67 = scmp.eq.s32.totalorder %s24, 1
      %p68 = por %p66, %p67
      %p69 = scmp.ne.s32.totalorder %s58, %s59
      %p70 = scmp.eq.s32.totalorder %s24, 0
      %p71 = por %p69, %p70
      %p72 = scmp.ne.s32.totalorder %s58, %s59
      %p73 = scmp.eq.s32.totalorder %s25, 1
      %p74 = por %p72, %p73
      %p76 = scmp.ne.s32.totalorder %s59, %s75
      %p77 = scmp.eq.s32.totalorder %s25, 0
      %p78 = por %p76, %p77
      %s80 = sadd.s32 %s79, 1
      %p83 = scmp.eq.s32.totalorder %s19, 1
      %p84 = scmp.ne.s32.totalorder %s79, %s81
      %p85 = scmp.eq.s32.totalorder %s19, 0
      %p86 = por %p84, %p85
      %p87 = scmp.ne.s32.totalorder %s79, %s81
      %p88 = scmp.eq.s32.totalorder %s24, 1
      %p89 = por %p87, %p88
      %p90 = scmp.ne.s32.totalorder %s81, %s82
      %p91 = scmp.eq.s32.totalorder %s24, 0
      %p92 = por %p90, %p91
      %p93 = scmp.ne.s32.totalorder %s81, %s82
      %p94 = scmp.eq.s32.totalorder %s25, 1
      %p95 = por %p93, %p94
      %p97 = scmp.ne.s32.totalorder %s82, %s96
      %p98 = scmp.eq.s32.totalorder %s25, 0
      %p99 = por %p97, %p98
      %s101 = sadd.s32 %s100, 1
      %p104 = scmp.eq.s32.totalorder %s19, 1
      %p105 = scmp.ne.s32.totalorder %s100, %s102
      %p106 = scmp.eq.s32.totalorder %s19, 0
      %p107 = por %p105, %p106
      %p108 = scmp.ne.s32.totalorder %s100, %s102
      %p109 = scmp.eq.s32.totalorder %s24, 1
      %p110 = por %p108, %p109
      %p111 = scmp.ne.s32.totalorder %s102, %s103
      %p112 = scmp.eq.s32.totalorder %s24, 0
      %p113 = por %p111, %p112
      %p114 = scmp.ne.s32.totalorder %s102, %s103
      %p115 = scmp.eq.s32.totalorder %s25, 1
      %p116 = por %p114, %p115
      %p118 = scmp.ne.s32.totalorder %s103, %s117
      %p119 = scmp.eq.s32.totalorder %s25, 0
      %p120 = por %p118, %p119
      %s122 = sadd.s32 %s121, 1
      %p125 = scmp.eq.s32.totalorder %s19, 1
      %p126 = scmp.ne.s32.totalorder %s121, %s123
      %p127 = scmp.eq.s32.totalorder %s19, 0
      %p128 = por %p126, %p127
      %p129 = scmp.ne.s32.totalorder %s121, %s123
      %p130 = scmp.eq.s32.totalorder %s24, 1
      %p131 = por %p129, %p130
      %p132 = scmp.ne.s32.totalorder %s123, %s124
      %p133 = scmp.eq.s32.totalorder %s24, 0
      %p134 = por %p132, %p133
      %p135 = scmp.ne.s32.totalorder %s123, %s124
      %p136 = scmp.eq.s32.totalorder %s25, 1
      %p137 = por %p135, %p136
      %p139 = scmp.ne.s32.totalorder %s124, %s138
      %p140 = scmp.eq.s32.totalorder %s25, 0
      %p141 = por %p139, %p140
      %s143 = sadd.s32 %s142, 1
      %p146 = scmp.eq.s32.totalorder %s19, 1
      %p147 = scmp.ne.s32.totalorder %s142, %s144
      %p148 = scmp.eq.s32.totalorder %s19, 0
      %p149 = por %p147, %p148
      %p150 = scmp.ne.s32.totalorder %s142, %s144
      %p151 = scmp.eq.s32.totalorder %s24, 1
      %p152 = por %p150, %p151
      %p153 = scmp.ne.s32.totalorder %s144, %s145
      %p154 = scmp.eq.s32.totalorder %s24, 0
      %p155 = por %p153, %p154
      %p156 = scmp.ne.s32.totalorder %s144, %s145
      %p157 = scmp.eq.s32.totalorder %s25, 1
      %p158 = por %p156, %p157
      %p160 = scmp.ne.s32.totalorder %s145, %s159
      %p161 = scmp.eq.s32.totalorder %s25, 0
      %p162 = por %p160, %p161
      %s163 = ssub.s32 %s19, %s26
      %p164 = scmp.eq.s32.totalorder %s163, 0
      %s166 = sadd.s32 %s165, 1
      %s167 = scalar_select %p164, %s165, %s166
      %p170 = pneg %p164
      %p171 = scmp.eq.s32.totalorder %s19, 1
      %p172 = por %p170, %p171
      %p173 = scmp.ne.s32.totalorder %s165, %s168
      %p174 = scmp.eq.s32.totalorder %s19, 0
      %p175 = por %p173, %p174
      %p176 = scmp.ne.s32.totalorder %s165, %s168
      %p177 = scmp.eq.s32.totalorder %s24, 1
      %p178 = por %p176, %p177
      %p179 = scmp.ne.s32.totalorder %s168, %s169
      %p180 = scmp.eq.s32.totalorder %s24, 0
      %p181 = por %p179, %p180
      %p182 = scmp.ne.s32.totalorder %s168, %s169
      %p183 = scmp.eq.s32.totalorder %s25, 1
      %p184 = por %p182, %p183
      %p186 = scmp.ne.s32.totalorder %s169, %s185
      %p187 = scmp.eq.s32.totalorder %s25, 0
      %p188 = por %p186, %p187
      %p189 = scmp.le.s32.totalorder 1, %s19
      %p190 = scmp.lt.s32.totalorder %s19, 3
      %p191 = pnand %p189, %p190
      %p192 = pneg %p191
      // Predicated region
      $region9: #{tpu_custom_call.1} parent=5 // pred_check
        _
      $region10: #{tpu_custom_call.1} parent=5 // pred_check_branch
        %194 = sbr.rel (%p191) target = $region12
      $region11: #{tpu_custom_call.1} parent=5 // pred_region
        %s195 = ssub.s32 %s19, 1
        // Predicated region
        $region13: #{tpu_custom_call.1} parent=11 // pred_check
          %p196 = pneg %p92
        $region14: #{tpu_custom_call.1} parent=11 // pred_check_branch
          %198 = sbr.rel (%p196) target = $region16
        $region15: #{tpu_custom_call.1} parent=11 // pred_region
          %200 = vsyncadd [#allocation7], 0
          %s201 = sshll.u32 %s2, 4
          %s202 = int_to_ptr.hbm [resolvable:$true] %s201
          %s203 = sshll.u32 [#allocation6], 4
          %s204 = int_to_ptr.vmem [resolvable:$true] %s203
          %209 = dma.hbm_to_vmem [thread:$0]  %s202, 4608, %s204, [#allocation7], 128, 128, 8
        $region16: #{tpu_custom_call.1} parent=11 // pred_fallthru
          _
        // Predicated region
        $region17: #{tpu_custom_call.1} parent=11 // pred_check
          %p210 = pneg %p113
        $region18: #{tpu_custom_call.1} parent=11 // pred_check_branch
          %212 = sbr.rel (%p210) target = $region20
        $region19: #{tpu_custom_call.1} parent=11 // pred_region
          _
        $region20: #{tpu_custom_call.1} parent=11 // pred_fallthru
          _
        // Predicated region
        $region21: #{tpu_custom_call.1} parent=11 // pred_check
          %p213 = pneg %p134
        $region22: #{tpu_custom_call.1} parent=11 // pred_check_branch
          %215 = sbr.rel (%p213) target = $region24
        $region23: #{tpu_custom_call.1} parent=11 // pred_region
          _
        $region24: #{tpu_custom_call.1} parent=11 // pred_fallthru
          _
        // Predicated region
        $region25: #{tpu_custom_call.1} parent=11 // pred_check
          %p216 = pneg %p155
        $region26: #{tpu_custom_call.1} parent=11 // pred_check_branch
          %218 = sbr.rel (%p216) target = $region28
        $region27: #{tpu_custom_call.1} parent=11 // pred_region
          _
        $region28: #{tpu_custom_call.1} parent=11 // pred_fallthru
          _
      $region12: #{tpu_custom_call.1} parent=5 // pred_fallthru
        _
      %p219 = scmp.lt.s32.totalorder %s19, 2
      // Predicated region
      $region29: #{tpu_custom_call.1} parent=5 // pred_check
        %p220 = pneg %p219
      $region30: #{tpu_custom_call.1} parent=5 // pred_check_branch
        %222 = sbr.rel (%p220) target = $region32
      $region31: #{tpu_custom_call.1} parent=5 // pred_region
        // Predicated region
        $region33: #{tpu_custom_call.1} parent=31 // pred_check
          %p223 = pneg %p39
        $region34: #{tpu_custom_call.1} parent=31 // pred_check_branch
          %225 = sbr.rel (%p223) target = $region36
        $region35: #{tpu_custom_call.1} parent=31 // pred_region
          %s226 = sand.u32 %s29, 1
          %s227 = scalar_lea.sflag [#allocation4], %s226
          %s228 = sand.u32 %s29, 1
          %s229 = smul.addr %s228, 64
          %s230 = scalar_lea.vmem [#allocation3], %s229
          %232 = vsyncadd %s227, 0
          %s233 = smul.addr %s19, 8
          %s234 = smul.addr %s233, 8
          %s235 = scalar_lea.hbm %s0, %s234
          %s236 = sshll.u32 %s235, 4
          %s237 = int_to_ptr.hbm [resolvable:$true] %s236
          %s238 = sshll.u32 %s230, 4
          %s239 = int_to_ptr.vmem [resolvable:$true] %s238
          %244 = dma.hbm_to_vmem [thread:$0]  %s237, 1024, %s239, %s227, 256, 256, 16
        $region36: #{tpu_custom_call.1} parent=31 // pred_fallthru
          _
        // Predicated region
        $region37: #{tpu_custom_call.1} parent=31 // pred_check
          %p245 = pneg %p65
        $region38: #{tpu_custom_call.1} parent=31 // pred_check_branch
          %247 = sbr.rel (%p245) target = $region40
        $region39: #{tpu_custom_call.1} parent=31 // pred_region
          %p248 = scmp.lt.s32.totalorder %s19, 1
          %s249 = scalar_select %p248, %s19, 1
          %s250 = smul.addr %s249, 2
          %s251 = scalar_lea.vmem %s1, %s250
        $region40: #{tpu_custom_call.1} parent=31 // pred_fallthru
          _
      $region32: #{tpu_custom_call.1} parent=5 // pred_fallthru
        _
      %p252 = scmp.le.s32.totalorder 1, %s19
      %p253 = scmp.lt.s32.totalorder %s19, 3
      %p254 = pnand %p252, %p253
      %p255 = pneg %p254
      // Predicated region
      $region41: #{tpu_custom_call.1} parent=5 // pred_check
        _
      $region42: #{tpu_custom_call.1} parent=5 // pred_check_branch
        %257 = sbr.rel (%p254) target = $region44
      $region43: #{tpu_custom_call.1} parent=5 // pred_region
        %s258 = ssub.s32 %s19, 1
        %s259 = sand.u32 %s32, 1
        %s260 = scalar_lea.sflag [#allocation4], %s259
        %s261 = sand.u32 %s32, 1
        %s262 = smul.addr %s261, 64
        %s263 = scalar_lea.vmem [#allocation3], %s262
        // Predicated region
        $region45: #{tpu_custom_call.1} parent=43 // pred_check
          %p264 = pneg %p45
        $region46: #{tpu_custom_call.1} parent=43 // pred_check_branch
          %266 = sbr.rel (%p264) target = $region48
        $region47: #{tpu_custom_call.1} parent=43 // pred_region
          %268 = dma.done %s260, 1024
        $region48: #{tpu_custom_call.1} parent=43 // pred_fallthru
          _
        // Predicated region
        $region49: #{tpu_custom_call.1} parent=43 // pred_check
          %p269 = pneg %p92
        $region50: #{tpu_custom_call.1} parent=43 // pred_check_branch
          %271 = sbr.rel (%p269) target = $region52
        $region51: #{tpu_custom_call.1} parent=43 // pred_region
          %273 = dma.done [#allocation7], 4608
        $region52: #{tpu_custom_call.1} parent=43 // pred_fallthru
          _
        %s274 = sand.u32 %s32, 1
        %s275 = scalar_lea.sflag [#allocation4], %s274
        %s276 = sand.u32 %s32, 1
        %s277 = smul.addr %s276, 64
        %s278 = scalar_lea.vmem [#allocation3], %s277
        %p279 = pneg %p45
        %p280 = pneg %p42
        %p281 = scmp.lt.s32.totalorder %s24, 1
        %s282 = scalar_select %p281, %s24, 1
        %s283 = smul.addr %s282, 2
        %s284 = scalar_lea.vmem %s1, %s283
        %p285 = pneg %p71
        %p286 = pneg %p68
        %p287 = pneg %p92
        %p288 = pneg %p89
        %p289 = pneg %p113
        %p290 = pneg %p110
        %p291 = pneg %p134
        %p292 = pneg %p131
        %p293 = pneg %p155
        %p294 = pneg %p152
        %p295 = pneg %p181
        %p296 = pneg %p178
        %s297 = sand.u32 %s168, 1
        %s298 = scalar_lea.sflag [#allocation5], %s297
        %s299 = sand.u32 %s168, 1
        %s300 = smul.addr %s299, 2
        %s301 = scalar_lea.vmem [#allocation8], %s300
        %p302 = scmp.lt.s32.totalorder %s24, 1
        %s303 = scalar_select %p302, %s24, 1
        %s304 = smul.addr %s303, 2
        %s305 = scalar_lea.vmem %s1, %s304
        %306 = vst [vmem:[#allocation2] sm:$0xff] 0.0
        %307 = vst [vmem:[#allocation2 + $0x8] sm:$0xff] 0.0
        %vm308 = vcmask 261120
        %309 = vst.msk [vmem:[#allocation2 + $0x10] sm:$0xff] %vm308, 0.0
        %310 = vst [vmem:[#allocation2 + $0x18] sm:$0xff] 0.0
        %311 = vst [vmem:[#allocation2 + $0x20] sm:$0xff] 0.0
        %312 = vst.msk [vmem:[#allocation2 + $0x28] sm:$0xff] %vm308, 0.0
        %313 = vst [vmem:[#allocation2 + $0x30] sm:$0xff] 0.0
        %314 = vst [vmem:[#allocation2 + $0x38] sm:$0xff] 0.0
        %315 = vst.msk [vmem:[#allocation2 + $0x40] sm:$0xff] %vm308, 0.0
        %316 = vst [vmem:[#allocation2 + $0x48] sm:$0xff] 0.0
        %317 = vst [vmem:[#allocation2 + $0x50] sm:$0xff] 0.0
        %318 = vst.msk [vmem:[#allocation2 + $0x58] sm:$0xff] %vm308, 0.0
        %319 = vst [vmem:[#allocation2 + $0x60] sm:$0xff] 0.0
        %320 = vst [vmem:[#allocation2 + $0x68] sm:$0xff] 0.0
        %321 = vst.msk [vmem:[#allocation2 + $0x70] sm:$0xff] %vm308, 0.0
        %322 = vst [vmem:[#allocation2 + $0x78] sm:$0xff] 0.0
        %323 = vst [vmem:[#allocation2 + $0x80] sm:$0xff] 0.0
        %324 = vst.msk [vmem:[#allocation2 + $0x88] sm:$0xff] %vm308, 0.0
        %325 = vst [vmem:[#allocation2 + $0x90] sm:$0xff] 0.0
        %326 = vst [vmem:[#allocation2 + $0x98] sm:$0xff] 0.0
        %327 = vst.msk [vmem:[#allocation2 + $0xa0] sm:$0xff] %vm308, 0.0
        %328 = vst [vmem:[#allocation2 + $0xa8] sm:$0xff] 0.0
        %329 = vst [vmem:[#allocation2 + $0xb0] sm:$0xff] 0.0
        %330 = vst.msk [vmem:[#allocation2 + $0xb8] sm:$0xff] %vm308, 0.0
        %331 = vst [vmem:[#allocation2 + $0xc0] sm:$0xff] 0.0
        %332 = vst [vmem:[#allocation2 + $0xc8] sm:$0xff] 0.0
        %333 = vst.msk [vmem:[#allocation2 + $0xd0] sm:$0xff] %vm308, 0.0
        %334 = vst [vmem:[#allocation2 + $0xd8] sm:$0xff] 0.0
        %335 = vst [vmem:[#allocation2 + $0xe0] sm:$0xff] 0.0
        %336 = vst.msk [vmem:[#allocation2 + $0xe8] sm:$0xff] %vm308, 0.0
        %337 = vst [vmem:[#allocation2 + $0xf0] sm:$0xff] 0.0
        %338 = vst [vmem:[#allocation2 + $0xf8] sm:$0xff] 0.0
        %339 = vst.msk [vmem:[#allocation2 + $0x100] sm:$0xff] %vm308, 0.0
        %340 = vst [vmem:[#allocation2 + $0x108] sm:$0xff] 0.0
        %341 = vst [vmem:[#allocation2 + $0x110] sm:$0xff] 0.0
        %342 = vst.msk [vmem:[#allocation2 + $0x118] sm:$0xff] %vm308, 0.0
        %343 = vst [vmem:[#allocation2 + $0x120] sm:$0xff] 0.0
        %344 = vst [vmem:[#allocation2 + $0x128] sm:$0xff] 0.0
        %345 = vst.msk [vmem:[#allocation2 + $0x130] sm:$0xff] %vm308, 0.0
        %346 = vst [vmem:[#allocation2 + $0x138] sm:$0xff] 0.0
        %347 = vst [vmem:[#allocation2 + $0x140] sm:$0xff] 0.0
        %348 = vst.msk [vmem:[#allocation2 + $0x148] sm:$0xff] %vm308, 0.0
        %349 = vst [vmem:[#allocation2 + $0x150] sm:$0xff] 0.0
        %350 = vst [vmem:[#allocation2 + $0x158] sm:$0xff] 0.0
        %351 = vst.msk [vmem:[#allocation2 + $0x160] sm:$0xff] %vm308, 0.0
        %v352 = vld [vmem:[%s263] sm:$0xff]
        %v353 = vld [vmem:[%s263 + $0x8] sm:$0xff]
        %v354 = vld [vmem:[%s263 + $0x10] sm:$0xff]
        %v355 = vld [vmem:[%s263 + $0x18] sm:$0xff]
        %v356 = vld [vmem:[%s263 + $0x20] sm:$0xff]
        %v357 = vld [vmem:[%s263 + $0x28] sm:$0xff]
        %v358 = vld [vmem:[%s263 + $0x30] sm:$0xff]
        %v359 = vld [vmem:[%s263 + $0x38] sm:$0xff]
        %v360 = vld [vmem:[%s305] sm:$0x3]
        %v361 = vxor.u32 %v360, 2147483648
        %v362 = vmul.f32 %v361, 1.442695
        %v363 = vpow.pop %v362
        %v364 = vadd.f32 %v363, 1.0
        %v365 = vrcp.pop %v364
        %v366 = vmul.f32 %v364, %v365
        %v367 = vsub.f32 1.0, %v366
        %v368 = vmul.f32 %v365, %v367
        %v369 = vadd.f32 %v365, %v368
        %vm370 = vweird.f32 %v364
        %vm371 = vweird.f32 %v365
        %vm372 = vmor %vm370, %vm371
        %v373 = vsel %vm372, %v365, %v369
        %v374 = vand.u32 2147483647, %v364
        %vm375 = vcmp.eq.f32.partialorder %v374, 8.507059e+37
        %v376 = vand.u32 %v364, 2147483648
        %v377 = vor.u32 1.1754944e-38, %v376
        %v378 = vsel %vm375, %v377, %v373
        %v379 = vmul.f32 1.0, %v378
        %v380 = vsub.f32 1.0, %v379
        %389 = vrot.lane.b32.xlu0 %v352, 32
        %v390 = vpop.permute.xlu0 %389
        %391 = vrot.lane.b32.xlu0 %v353, 32
        %v392 = vpop.permute.xlu0 %391
        %393 = vrot.lane.b32.xlu0 %v354, 32
        %v394 = vpop.permute.xlu0 %393
        %395 = vrot.lane.b32.xlu0 %v355, 32
        %v396 = vpop.permute.xlu0 %395
        %397 = vrot.lane.b32.xlu0 %v356, 32
        %v398 = vpop.permute.xlu0 %397
        %399 = vrot.lane.b32.xlu0 %v357, 32
        %v400 = vpop.permute.xlu0 %399
        %401 = vrot.lane.b32.xlu0 %v358, 32
        %v402 = vpop.permute.xlu0 %401
        %403 = vrot.lane.b32.xlu0 %v359, 32
        %v404 = vpop.permute.xlu0 %403
        %v405 = vsel %vm308, %v390, %v392
        %v406 = vsel %vm308, %v394, %v396
        %v407 = vsel %vm308, %v398, %v400
        %v408 = vsel %vm308, %v402, %v404
        %vm421 = vcmask 1047808
        %422 = vst.msk [vmem:[#allocation2] sm:$0xff] %vm421, %v390
        %423 = vst [vmem:[#allocation2 + $0x8] sm:$0xff] %v405
        %424 = vst.msk [vmem:[#allocation2 + $0x10] sm:$0xff] %vm308, %v392
        %425 = vst.msk [vmem:[#allocation2 + $0x18] sm:$0xff] %vm421, %v394
        %426 = vst [vmem:[#allocation2 + $0x20] sm:$0xff] %v406
        %427 = vst.msk [vmem:[#allocation2 + $0x28] sm:$0xff] %vm308, %v396
        %428 = vst.msk [vmem:[#allocation2 + $0x30] sm:$0xff] %vm421, %v398
        %429 = vst [vmem:[#allocation2 + $0x38] sm:$0xff] %v407
        %430 = vst.msk [vmem:[#allocation2 + $0x40] sm:$0xff] %vm308, %v400
        %431 = vst.msk [vmem:[#allocation2 + $0x48] sm:$0xff] %vm421, %v402
        %432 = vst [vmem:[#allocation2 + $0x50] sm:$0xff] %v408
        %433 = vst.msk [vmem:[#allocation2 + $0x58] sm:$0xff] %vm308, %v404
        %435 = vrot.lane.b32.xlu0 %v380, 32
        %v436 = vpop.permute.xlu0 %435
        %v437 = vrot.slane %v436, 7
        %v438 = vsel %vm308, %v437, %v436
        %v440 = vlaneseq
        %vm441 = vcmp.ge.s32.totalorder %v440, 32
        %vm442 = vcmp.lt.s32.totalorder %v440, 288
        %vm443 = vmand %vm441, %vm442
        %s444 = scalar_lea.vmem [#allocation2], 288
        %445 = vst.msk [vmem:[%s444] ss:$8 sm:$0x7] %vm443, %v438
        %446 = vst.msk [vmem:[%s444] ss:$8 sm:$0x0] %vm443, %v438
        %447 = vrot.lane.b32.xlu0 %v352, 16
        %v448 = vpop.permute.xlu0 %447
        %449 = vrot.lane.b32.xlu0 %v353, 16
        %v450 = vpop.permute.xlu0 %449
        %451 = vrot.lane.b32.xlu0 %v354, 16
        %v452 = vpop.permute.xlu0 %451
        %453 = vrot.lane.b32.xlu0 %v355, 16
        %v454 = vpop.permute.xlu0 %453
        %455 = vrot.lane.b32.xlu0 %v356, 16
        %v456 = vpop.permute.xlu0 %455
        %457 = vrot.lane.b32.xlu0 %v357, 16
        %v458 = vpop.permute.xlu0 %457
        %459 = vrot.lane.b32.xlu0 %v358, 16
        %v460 = vpop.permute.xlu0 %459
        %461 = vrot.lane.b32.xlu0 %v359, 16
        %v462 = vpop.permute.xlu0 %461
        %vm463 = vcmask 130048
        %v464 = vsel %vm463, %v448, %v450
        %v465 = vsel %vm463, %v452, %v454
        %v466 = vsel %vm463, %v456, %v458
        %v467 = vsel %vm463, %v460, %v462
        %vm480 = vcmask 1047680
        %481 = vst.msk [vmem:[#allocation2 + $0x60] sm:$0xff] %vm480, %v448
        %482 = vst [vmem:[#allocation2 + $0x68] sm:$0xff] %v464
        %483 = vst.msk [vmem:[#allocation2 + $0x70] sm:$0xff] %vm463, %v450
        %484 = vst.msk [vmem:[#allocation2 + $0x78] sm:$0xff] %vm480, %v452
        %485 = vst [vmem:[#allocation2 + $0x80] sm:$0xff] %v465
        %486 = vst.msk [vmem:[#allocation2 + $0x88] sm:$0xff] %vm463, %v454
        %487 = vst.msk [vmem:[#allocation2 + $0x90] sm:$0xff] %vm480, %v456
        %488 = vst [vmem:[#allocation2 + $0x98] sm:$0xff] %v466
        %489 = vst.msk [vmem:[#allocation2 + $0xa0] sm:$0xff] %vm463, %v458
        %490 = vst.msk [vmem:[#allocation2 + $0xa8] sm:$0xff] %vm480, %v460
        %491 = vst [vmem:[#allocation2 + $0xb0] sm:$0xff] %v467
        %492 = vst.msk [vmem:[#allocation2 + $0xb8] sm:$0xff] %vm463, %v462
        %493 = vrot.lane.b32.xlu0 %v380, 16
        %v494 = vpop.permute.xlu0 %493
        %v495 = vrot.slane %v494, 7
        %v496 = vsel %vm463, %v495, %v494
        %vm498 = vcmp.ge.s32.totalorder %v440, 16
        %vm499 = vcmp.lt.s32.totalorder %v440, 272
        %vm500 = vmand %vm498, %vm499
        %s501 = scalar_lea.vmem [#allocation2], 312
        %502 = vst.msk [vmem:[%s501] ss:$8 sm:$0x7] %vm500, %v496
        %503 = vst.msk [vmem:[%s501] ss:$8 sm:$0x0] %vm500, %v496
        %504 = vst [vmem:[#allocation2 + $0xc0] sm:$0xff] %v352
        %505 = vst [vmem:[#allocation2 + $0xc8] sm:$0xff] %v353
        %506 = vst [vmem:[#allocation2 + $0xd8] sm:$0xff] %v354
        %507 = vst [vmem:[#allocation2 + $0xe0] sm:$0xff] %v355
        %508 = vst [vmem:[#allocation2 + $0xf0] sm:$0xff] %v356
        %509 = vst [vmem:[#allocation2 + $0xf8] sm:$0xff] %v357
        %510 = vst [vmem:[#allocation2 + $0x108] sm:$0xff] %v358
        %511 = vst [vmem:[#allocation2 + $0x110] sm:$0xff] %v359
        %vm512 = vcmp.ge.s32.totalorder %v440, 0
        %vm513 = vcmp.lt.s32.totalorder %v440, 256
        %vm514 = vmand %vm512, %vm513
        %s515 = scalar_lea.vmem [#allocation2], 336
        %516 = vst.msk [vmem:[%s515] ss:$8 sm:$0x3] %vm514, %v380
        %517 = vst.msk [vmem:[%s515] ss:$8 sm:$0x0] %vm514, %v380
        %v518 = vlaneseq
        %v519 = vand.u32 %v518, 127
        %v520 = vadd.s32 %v519, 128
        %vm521 = vcmp.lt.s32.totalorder %v519, 0
        %v522 = vsub.s32 0, %v519
        %v523 = vsel %vm521, %v522, %v519
        %v524 = vshrl.u32 %v523, 4
        %v525 = vand.u32 %v523, 15
        %v526 = vsub.s32 0, %v525
        %v527 = vsel %vm521, %v526, %v525
        %vm528 = vcmp.lt.s32.totalorder %v520, 0
        %v529 = vsub.s32 0, %v520
        %v530 = vsel %vm528, %v529, %v520
        %v531 = vshrl.u32 %v530, 4
        %v532 = vand.u32 %v530, 15
        %v533 = vsub.s32 0, %v532
        %v534 = vsel %vm528, %v533, %v532
        %vm535 = vcmp.ne.s32.totalorder %v527, 0
        %vm536 = vcmp.ne.s32.totalorder %v534, 0
        %vm537 = vcmp.lt.s32.totalorder %v527, 0
        %vm538 = vcmp.lt.s32.totalorder %v534, 0
        %vm539 = vmand %vm537, %vm535
        %vm540 = vmand %vm538, %vm536
        %v541 = vadd.s32 %v527, 16
        %v542 = vadd.s32 %v534, 16
        %v543 = vsel %vm539, %v541, %v527
        %v544 = vsel %vm540, %v542, %v534
        %vm545 = vcmp.gt.s32.totalorder %v543, 0
        %vm546 = vcmp.gt.s32.totalorder %v544, 0
        %v547 = vsel %vm545, 1, 0
        %v548 = vsel %vm546, 1, 0
        %v549 = vcvt.s32.f32 %v547
        %v550 = vcvt.s32.f32 %v548
        %vm551 = vcmp.lt.s32.totalorder %v543, 15
        %vm552 = vcmp.lt.s32.totalorder %v544, 15
        %v553 = vsel %vm551, 1, 0
        %v554 = vsel %vm552, 1, 0
        %v555 = vcvt.s32.f32 %v553
        %v556 = vcvt.s32.f32 %v554
        %v557 = vld [vmem:[#allocation2] sm:$0xff]
        %v558 = vld [vmem:[#allocation2 + $0x8] sm:$0xff]
        %v559 = vld [vmem:[#allocation2 + $0x10] sm:$0xff]
        %v560 = vld [vmem:[#allocation2 + $0x18] sm:$0xff]
        %v561 = vld [vmem:[#allocation2 + $0x20] sm:$0xff]
        %v562 = vld [vmem:[#allocation2 + $0x28] sm:$0xff]
        %v563 = vld [vmem:[#allocation2 + $0x30] sm:$0xff]
        %v564 = vld [vmem:[#allocation2 + $0x38] sm:$0xff]
        %v565 = vld [vmem:[#allocation2 + $0x40] sm:$0xff]
        %v566 = vld [vmem:[#allocation2 + $0x48] sm:$0xff]
        %v567 = vld [vmem:[#allocation2 + $0x50] sm:$0xff]
        %v568 = vld [vmem:[#allocation2 + $0x58] sm:$0xff]
        %v569 = vld [vmem:[#allocation2 + $0x60] sm:$0xff]
        %v570 = vld [vmem:[#allocation2 + $0x68] sm:$0xff]
        %v571 = vld [vmem:[#allocation2 + $0x70] sm:$0xff]
        %v572 = vld [vmem:[#allocation2 + $0x78] sm:$0xff]
        %v573 = vld [vmem:[#allocation2 + $0x80] sm:$0xff]
        %v574 = vld [vmem:[#allocation2 + $0x88] sm:$0xff]
        %v575 = vld [vmem:[#allocation2 + $0x90] sm:$0xff]
        %v576 = vld [vmem:[#allocation2 + $0x98] sm:$0xff]
        %v577 = vld [vmem:[#allocation2 + $0xa0] sm:$0xff]
        %v578 = vld [vmem:[#allocation2 + $0xa8] sm:$0xff]
        %v579 = vld [vmem:[#allocation2 + $0xb0] sm:$0xff]
        %v580 = vld [vmem:[#allocation2 + $0xb8] sm:$0xff]
        %v581 = vld [vmem:[#allocation2 + $0xc0] sm:$0xff]
        %v582 = vld [vmem:[#allocation2 + $0xc8] sm:$0xff]
        %v583 = vld [vmem:[#allocation2 + $0xd0] sm:$0xff]
        %v584 = vld [vmem:[#allocation2 + $0xd8] sm:$0xff]
        %v585 = vld [vmem:[#allocation2 + $0xe0] sm:$0xff]
        %v586 = vld [vmem:[#allocation2 + $0xe8] sm:$0xff]
        %v587 = vld [vmem:[#allocation2 + $0xf0] sm:$0xff]
        %v588 = vld [vmem:[#allocation2 + $0xf8] sm:$0xff]
        %v589 = vld [vmem:[#allocation2 + $0x100] sm:$0xff]
        %v590 = vld [vmem:[#allocation2 + $0x108] sm:$0xff]
        %v591 = vld [vmem:[#allocation2 + $0x110] sm:$0xff]
        %v592 = vld [vmem:[#allocation2 + $0x118] sm:$0xff]
        %v593 = vld [vmem:[#allocation2 + $0x120] sm:$0xff]
        %v594 = vld [vmem:[#allocation2 + $0x128] sm:$0xff]
        %v595 = vld [vmem:[#allocation2 + $0x130] sm:$0xff]
        %v596 = vld [vmem:[#allocation2 + $0x138] sm:$0xff]
        %v597 = vld [vmem:[#allocation2 + $0x140] sm:$0xff]
        %v598 = vld [vmem:[#allocation2 + $0x148] sm:$0xff]
        %v599 = vld [vmem:[#allocation2 + $0x150] sm:$0xff]
        %v600 = vld [vmem:[#allocation2 + $0x158] sm:$0xff]
        %v601 = vld [vmem:[#allocation2 + $0x160] sm:$0xff]
        %v602 = vld [vmem:[#allocation6] sm:$0xff]
        %v603 = vld [vmem:[#allocation6 + $0x8] sm:$0xff]
        %v604 = vld [vmem:[#allocation6 + $0x10] sm:$0xff]
        %v605 = vld [vmem:[#allocation6 + $0x18] sm:$0xff]
        %651 = vrot.lane.b32.xlu0 %v557, 113
        %v652 = vpop.permute.xlu0 %651
        %653 = vrot.lane.b32.xlu0 %v558, 113
        %v654 = vpop.permute.xlu0 %653
        %655 = vrot.lane.b32.xlu0 %v559, 113
        %v656 = vpop.permute.xlu0 %655
        %657 = vrot.lane.b32.xlu0 %v560, 113
        %v658 = vpop.permute.xlu0 %657
        %659 = vrot.lane.b32.xlu0 %v561, 113
        %v660 = vpop.permute.xlu0 %659
        %661 = vrot.lane.b32.xlu0 %v562, 113
        %v662 = vpop.permute.xlu0 %661
        %663 = vrot.lane.b32.xlu0 %v563, 113
        %v664 = vpop.permute.xlu0 %663
        %665 = vrot.lane.b32.xlu0 %v564, 113
        %v666 = vpop.permute.xlu0 %665
        %667 = vrot.lane.b32.xlu0 %v565, 113
        %v668 = vpop.permute.xlu0 %667
        %669 = vrot.lane.b32.xlu0 %v566, 113
        %v670 = vpop.permute.xlu0 %669
        %671 = vrot.lane.b32.xlu0 %v567, 113
        %v672 = vpop.permute.xlu0 %671
        %673 = vrot.lane.b32.xlu0 %v568, 113
        %v674 = vpop.permute.xlu0 %673
        %675 = vrot.lane.b32.xlu0 %v569, 113
        %v676 = vpop.permute.xlu0 %675
        %677 = vrot.lane.b32.xlu0 %v570, 113
        %v678 = vpop.permute.xlu0 %677
        %679 = vrot.lane.b32.xlu0 %v571, 113
        %v680 = vpop.permute.xlu0 %679
        %681 = vrot.lane.b32.xlu0 %v572, 113
        %v682 = vpop.permute.xlu0 %681
        %683 = vrot.lane.b32.xlu0 %v573, 113
        %v684 = vpop.permute.xlu0 %683
        %685 = vrot.lane.b32.xlu0 %v574, 113
        %v686 = vpop.permute.xlu0 %685
        %687 = vrot.lane.b32.xlu0 %v575, 113
        %v688 = vpop.permute.xlu0 %687
        %689 = vrot.lane.b32.xlu0 %v576, 113
        %v690 = vpop.permute.xlu0 %689
        %691 = vrot.lane.b32.xlu0 %v577, 113
        %v692 = vpop.permute.xlu0 %691
        %693 = vrot.lane.b32.xlu0 %v578, 113
        %v694 = vpop.permute.xlu0 %693
        %695 = vrot.lane.b32.xlu0 %v579, 113
        %v696 = vpop.permute.xlu0 %695
        %697 = vrot.lane.b32.xlu0 %v580, 113
        %v698 = vpop.permute.xlu0 %697
        %699 = vrot.lane.b32.xlu0 %v581, 113
        %v700 = vpop.permute.xlu0 %699
        %701 = vrot.lane.b32.xlu0 %v582, 113
        %v702 = vpop.permute.xlu0 %701
        %703 = vrot.lane.b32.xlu0 %v583, 113
        %v704 = vpop.permute.xlu0 %703
        %705 = vrot.lane.b32.xlu0 %v584, 113
        %v706 = vpop.permute.xlu0 %705
        %707 = vrot.lane.b32.xlu0 %v585, 113
        %v708 = vpop.permute.xlu0 %707
        %709 = vrot.lane.b32.xlu0 %v586, 113
        %v710 = vpop.permute.xlu0 %709
        %711 = vrot.lane.b32.xlu0 %v587, 113
        %v712 = vpop.permute.xlu0 %711
        %713 = vrot.lane.b32.xlu0 %v588, 113
        %v714 = vpop.permute.xlu0 %713
        %715 = vrot.lane.b32.xlu0 %v589, 113
        %v716 = vpop.permute.xlu0 %715
        %717 = vrot.lane.b32.xlu0 %v590, 113
        %v718 = vpop.permute.xlu0 %717
        %719 = vrot.lane.b32.xlu0 %v591, 113
        %v720 = vpop.permute.xlu0 %719
        %721 = vrot.lane.b32.xlu0 %v592, 113
        %v722 = vpop.permute.xlu0 %721
        %723 = vrot.lane.b32.xlu0 %v593, 113
        %v724 = vpop.permute.xlu0 %723
        %725 = vrot.lane.b32.xlu0 %v594, 113
        %v726 = vpop.permute.xlu0 %725
        %727 = vrot.lane.b32.xlu0 %v595, 113
        %v728 = vpop.permute.xlu0 %727
        %729 = vrot.lane.b32.xlu0 %v596, 113
        %v730 = vpop.permute.xlu0 %729
        %731 = vrot.lane.b32.xlu0 %v597, 113
        %v732 = vpop.permute.xlu0 %731
        %733 = vrot.lane.b32.xlu0 %v598, 113
        %v734 = vpop.permute.xlu0 %733
        %735 = vrot.lane.b32.xlu0 %v599, 113
        %v736 = vpop.permute.xlu0 %735
        %737 = vrot.lane.b32.xlu0 %v600, 113
        %v738 = vpop.permute.xlu0 %737
        %739 = vrot.lane.b32.xlu0 %v601, 113
        %v740 = vpop.permute.xlu0 %739
        %vm741 = vcmask 924672
        %v742 = vsel %vm741, %v652, %v654
        %v743 = vsel %vm741, %v654, %v656
        %v744 = vsel %vm741, %v658, %v660
        %v745 = vsel %vm741, %v660, %v662
        %v746 = vsel %vm741, %v664, %v666
        %v747 = vsel %vm741, %v666, %v668
        %v748 = vsel %vm741, %v670, %v672
        %v749 = vsel %vm741, %v672, %v674
        %v750 = vsel %vm741, %v676, %v678
        %v751 = vsel %vm741, %v678, %v680
        %v752 = vsel %vm741, %v682, %v684
        %v753 = vsel %vm741, %v684, %v686
        %v754 = vsel %vm741, %v688, %v690
        %v755 = vsel %vm741, %v690, %v692
        %v756 = vsel %vm741, %v694, %v696
        %v757 = vsel %vm741, %v696, %v698
        %v758 = vsel %vm741, %v700, %v702
        %v759 = vsel %vm741, %v702, %v704
        %v760 = vsel %vm741, %v706, %v708
        %v761 = vsel %vm741, %v708, %v710
        %v762 = vsel %vm741, %v712, %v714
        %v763 = vsel %vm741, %v714, %v716
        %v764 = vsel %vm741, %v718, %v720
        %v765 = vsel %vm741, %v720, %v722
        %v766 = vsel %vm741, %v724, %v726
        %v767 = vsel %vm741, %v726, %v728
        %v768 = vsel %vm741, %v730, %v732
        %v769 = vsel %vm741, %v732, %v734
        %v770 = vsel %vm741, %v736, %v738
        %v771 = vsel %vm741, %v738, %v740
        %vm802 = vcmask 982016
        %v804 = vsel %vm802, %v602, 0
        %v807 = vsel %vm802, %v603, 0
        %v810 = vsel %vm802, %v604, 0
        %v813 = vsel %vm802, %v605, 0
        %815 = vmatpush.msra.mxu0 0.0
        %816 = vmatpush.msra.mxu0 %v770
        %817 = vmatpush.msra.mxu0 %v768
        %818 = vmatpush.msra.mxu0 %v766
        %819 = vmatpush.msra.mxu0 %v764
        %820 = vmatpush.msra.mxu0 %v762
        %821 = vmatpush.msra.mxu0 %v760
        %822 = vmatpush.msra.mxu0 %v758
        %823 = vmatpush.msra.mxu0 %v756
        %824 = vmatpush.msra.mxu0 %v754
        %825 = vmatpush.msra.mxu0 %v752
        %826 = vmatpush.msra.mxu0 %v750
        %827 = vmatpush.msra.mxu0 %v748
        %828 = vmatpush.msra.mxu0 %v746
        %829 = vmatpush.msra.mxu0 %v744
        %830 = vmatpush.msra.mxu0 %v742
        %831 = vmatmul.f32.gmra.mxu0 %v804
        %v832 = vpop.f32.mrf.mxu0
        %v833 = vadd.f32 0.0, %v832
        %834 = vmatmul.f32.gmra.mxu0 %v807
        %v835 = vpop.f32.mrf.mxu0
        %v836 = vadd.f32 0.0, %v835
        %837 = vmatmul.f32.gmra.mxu0 %v810
        %v838 = vpop.f32.mrf.mxu0
        %v839 = vadd.f32 0.0, %v838
        %840 = vmatmul.f32.gmra.mxu0 %v813
        %v841 = vpop.f32.mrf.mxu0
        %v842 = vadd.f32 0.0, %v841
        %843 = vdwg.mxu0
        %844 = vmatpush.msra.mxu0 0.0
        %845 = vmatpush.msra.mxu0 %v771
        %846 = vmatpush.msra.mxu0 %v769
        %847 = vmatpush.msra.mxu0 %v767
        %848 = vmatpush.msra.mxu0 %v765
        %849 = vmatpush.msra.mxu0 %v763
        %850 = vmatpush.msra.mxu0 %v761
        %851 = vmatpush.msra.mxu0 %v759
        %852 = vmatpush.msra.mxu0 %v757
        %853 = vmatpush.msra.mxu0 %v755
        %854 = vmatpush.msra.mxu0 %v753
        %855 = vmatpush.msra.mxu0 %v751
        %856 = vmatpush.msra.mxu0 %v749
        %857 = vmatpush.msra.mxu0 %v747
        %858 = vmatpush.msra.mxu0 %v745
        %859 = vmatpush.msra.mxu0 %v743
        %860 = vmatmul.f32.gmra.mxu0 %v804
        %v861 = vpop.f32.mrf.mxu0
        %v862 = vadd.f32 0.0, %v861
        %863 = vmatmul.f32.gmra.mxu0 %v807
        %v864 = vpop.f32.mrf.mxu0
        %v865 = vadd.f32 0.0, %v864
        %866 = vmatmul.f32.gmra.mxu0 %v810
        %v867 = vpop.f32.mrf.mxu0
        %v868 = vadd.f32 0.0, %v867
        %869 = vmatmul.f32.gmra.mxu0 %v813
        %v870 = vpop.f32.mrf.mxu0
        %v871 = vadd.f32 0.0, %v870
        %872 = vdwg.mxu0
        %v873 = vmul.f32 %v833, %v549
        %v874 = vmul.f32 %v862, %v550
        %v875 = vmul.f32 %v836, %v549
        %v876 = vmul.f32 %v865, %v550
        %v877 = vmul.f32 %v839, %v549
        %v878 = vmul.f32 %v868, %v550
        %v879 = vmul.f32 %v842, %v549
        %v880 = vmul.f32 %v871, %v550
        %v881 = vadd.f32 %v873, 0.0
        %v882 = vadd.f32 %v874, 0.0
        %v883 = vadd.f32 %v875, 0.0
        %v884 = vadd.f32 %v876, 0.0
        %v885 = vadd.f32 %v877, 0.0
        %v886 = vadd.f32 %v878, 0.0
        %v887 = vadd.f32 %v879, 0.0
        %v888 = vadd.f32 %v880, 0.0
        %s889 = scalar_lea.vmem [#allocation6], 32
        %v890 = vld [vmem:[%s889] sm:$0xff]
        %v891 = vld [vmem:[%s889 + $0x8] sm:$0xff]
        %v892 = vld [vmem:[%s889 + $0x10] sm:$0xff]
        %v893 = vld [vmem:[%s889 + $0x18] sm:$0xff]
        %894 = vrot.lane.b32.xlu0 %v557, 112
        %v895 = vpop.permute.xlu0 %894
        %896 = vrot.lane.b32.xlu0 %v558, 112
        %v897 = vpop.permute.xlu0 %896
        %898 = vrot.lane.b32.xlu0 %v559, 112
        %v899 = vpop.permute.xlu0 %898
        %900 = vrot.lane.b32.xlu0 %v560, 112
        %v901 = vpop.permute.xlu0 %900
        %902 = vrot.lane.b32.xlu0 %v561, 112
        %v903 = vpop.permute.xlu0 %902
        %904 = vrot.lane.b32.xlu0 %v562, 112
        %v905 = vpop.permute.xlu0 %904
        %906 = vrot.lane.b32.xlu0 %v563, 112
        %v907 = vpop.permute.xlu0 %906
        %908 = vrot.lane.b32.xlu0 %v564, 112
        %v909 = vpop.permute.xlu0 %908
        %910 = vrot.lane.b32.xlu0 %v565, 112
        %v911 = vpop.permute.xlu0 %910
        %912 = vrot.lane.b32.xlu0 %v566, 112
        %v913 = vpop.permute.xlu0 %912
        %914 = vrot.lane.b32.xlu0 %v567, 112
        %v915 = vpop.permute.xlu0 %914
        %916 = vrot.lane.b32.xlu0 %v568, 112
        %v917 = vpop.permute.xlu0 %916
        %918 = vrot.lane.b32.xlu0 %v569, 112
        %v919 = vpop.permute.xlu0 %918
        %920 = vrot.lane.b32.xlu0 %v570, 112
        %v921 = vpop.permute.xlu0 %920
        %922 = vrot.lane.b32.xlu0 %v571, 112
        %v923 = vpop.permute.xlu0 %922
        %924 = vrot.lane.b32.xlu0 %v572, 112
        %v925 = vpop.permute.xlu0 %924
        %926 = vrot.lane.b32.xlu0 %v573, 112
        %v927 = vpop.permute.xlu0 %926
        %928 = vrot.lane.b32.xlu0 %v574, 112
        %v929 = vpop.permute.xlu0 %928
        %930 = vrot.lane.b32.xlu0 %v575, 112
        %v931 = vpop.permute.xlu0 %930
        %932 = vrot.lane.b32.xlu0 %v576, 112
        %v933 = vpop.permute.xlu0 %932
        %934 = vrot.lane.b32.xlu0 %v577, 112
        %v935 = vpop.permute.xlu0 %934
        %936 = vrot.lane.b32.xlu0 %v578, 112
        %v937 = vpop.permute.xlu0 %936
        %938 = vrot.lane.b32.xlu0 %v579, 112
        %v939 = vpop.permute.xlu0 %938
        %940 = vrot.lane.b32.xlu0 %v580, 112
        %v941 = vpop.permute.xlu0 %940
        %942 = vrot.lane.b32.xlu0 %v581, 112
        %v943 = vpop.permute.xlu0 %942
        %944 = vrot.lane.b32.xlu0 %v582, 112
        %v945 = vpop.permute.xlu0 %944
        %946 = vrot.lane.b32.xlu0 %v583, 112
        %v947 = vpop.permute.xlu0 %946
        %948 = vrot.lane.b32.xlu0 %v584, 112
        %v949 = vpop.permute.xlu0 %948
        %950 = vrot.lane.b32.xlu0 %v585, 112
        %v951 = vpop.permute.xlu0 %950
        %952 = vrot.lane.b32.xlu0 %v586, 112
        %v953 = vpop.permute.xlu0 %952
        %954 = vrot.lane.b32.xlu0 %v587, 112
        %v955 = vpop.permute.xlu0 %954
        %956 = vrot.lane.b32.xlu0 %v588, 112
        %v957 = vpop.permute.xlu0 %956
        %958 = vrot.lane.b32.xlu0 %v589, 112
        %v959 = vpop.permute.xlu0 %958
        %960 = vrot.lane.b32.xlu0 %v590, 112
        %v961 = vpop.permute.xlu0 %960
        %962 = vrot.lane.b32.xlu0 %v591, 112
        %v963 = vpop.permute.xlu0 %962
        %964 = vrot.lane.b32.xlu0 %v592, 112
        %v965 = vpop.permute.xlu0 %964
        %966 = vrot.lane.b32.xlu0 %v593, 112
        %v967 = vpop.permute.xlu0 %966
        %968 = vrot.lane.b32.xlu0 %v594, 112
        %v969 = vpop.permute.xlu0 %968
        %970 = vrot.lane.b32.xlu0 %v595, 112
        %v971 = vpop.permute.xlu0 %970
        %972 = vrot.lane.b32.xlu0 %v596, 112
        %v973 = vpop.permute.xlu0 %972
        %974 = vrot.lane.b32.xlu0 %v597, 112
        %v975 = vpop.permute.xlu0 %974
        %976 = vrot.lane.b32.xlu0 %v598, 112
        %v977 = vpop.permute.xlu0 %976
        %978 = vrot.lane.b32.xlu0 %v599, 112
        %v979 = vpop.permute.xlu0 %978
        %980 = vrot.lane.b32.xlu0 %v600, 112
        %v981 = vpop.permute.xlu0 %980
        %982 = vrot.lane.b32.xlu0 %v601, 112
        %v983 = vpop.permute.xlu0 %982
        %vm984 = vcmask 916480
        %v985 = vsel %vm984, %v895, %v897
        %v986 = vsel %vm984, %v897, %v899
        %v987 = vsel %vm984, %v901, %v903
        %v988 = vsel %vm984, %v903, %v905
        %v989 = vsel %vm984, %v907, %v909
        %v990 = vsel %vm984, %v909, %v911
        %v991 = vsel %vm984, %v913, %v915
        %v992 = vsel %vm984, %v915, %v917
        %v993 = vsel %vm984, %v919, %v921
        %v994 = vsel %vm984, %v921, %v923
        %v995 = vsel %vm984, %v925, %v927
        %v996 = vsel %vm984, %v927, %v929
        %v997 = vsel %vm984, %v931, %v933
        %v998 = vsel %vm984, %v933, %v935
        %v999 = vsel %vm984, %v937, %v939
        %v1000 = vsel %vm984, %v939, %v941
        %v1001 = vsel %vm984, %v943, %v945
        %v1002 = vsel %vm984, %v945, %v947
        %v1003 = vsel %vm984, %v949, %v951
        %v1004 = vsel %vm984, %v951, %v953
        %v1005 = vsel %vm984, %v955, %v957
        %v1006 = vsel %vm984, %v957, %v959
        %v1007 = vsel %vm984, %v961, %v963
        %v1008 = vsel %vm984, %v963, %v965
        %v1009 = vsel %vm984, %v967, %v969
        %v1010 = vsel %vm984, %v969, %v971
        %v1011 = vsel %vm984, %v973, %v975
        %v1012 = vsel %vm984, %v975, %v977
        %v1013 = vsel %vm984, %v979, %v981
        %v1014 = vsel %vm984, %v981, %v983
        %v1046 = vsel %vm802, %v890, 0
        %v1049 = vsel %vm802, %v891, 0
        %v1052 = vsel %vm802, %v892, 0
        %v1055 = vsel %vm802, %v893, 0
        %1057 = vmatpush.msra.mxu0 0.0
        %1058 = vmatpush.msra.mxu0 %v1013
        %1059 = vmatpush.msra.mxu0 %v1011
        %1060 = vmatpush.msra.mxu0 %v1009
        %1061 = vmatpush.msra.mxu0 %v1007
        %1062 = vmatpush.msra.mxu0 %v1005
        %1063 = vmatpush.msra.mxu0 %v1003
        %1064 = vmatpush.msra.mxu0 %v1001
        %1065 = vmatpush.msra.mxu0 %v999
        %1066 = vmatpush.msra.mxu0 %v997
        %1067 = vmatpush.msra.mxu0 %v995
        %1068 = vmatpush.msra.mxu0 %v993
        %1069 = vmatpush.msra.mxu0 %v991
        %1070 = vmatpush.msra.mxu0 %v989
        %1071 = vmatpush.msra.mxu0 %v987
        %1072 = vmatpush.msra.mxu0 %v985
        %1073 = vmatmul.f32.gmra.mxu0 %v1046
        %v1074 = vpop.f32.mrf.mxu0
        %v1075 = vadd.f32 0.0, %v1074
        %1076 = vmatmul.f32.gmra.mxu0 %v1049
        %v1077 = vpop.f32.mrf.mxu0
        %v1078 = vadd.f32 0.0, %v1077
        %1079 = vmatmul.f32.gmra.mxu0 %v1052
        %v1080 = vpop.f32.mrf.mxu0
        %v1081 = vadd.f32 0.0, %v1080
        %1082 = vmatmul.f32.gmra.mxu0 %v1055
        %v1083 = vpop.f32.mrf.mxu0
        %v1084 = vadd.f32 0.0, %v1083
        %1085 = vdwg.mxu0
        %1086 = vmatpush.msra.mxu0 0.0
        %1087 = vmatpush.msra.mxu0 %v1014
        %1088 = vmatpush.msra.mxu0 %v1012
        %1089 = vmatpush.msra.mxu0 %v1010
        %1090 = vmatpush.msra.mxu0 %v1008
        %1091 = vmatpush.msra.mxu0 %v1006
        %1092 = vmatpush.msra.mxu0 %v1004
        %1093 = vmatpush.msra.mxu0 %v1002
        %1094 = vmatpush.msra.mxu0 %v1000
        %1095 = vmatpush.msra.mxu0 %v998
        %1096 = vmatpush.msra.mxu0 %v996
        %1097 = vmatpush.msra.mxu0 %v994
        %1098 = vmatpush.msra.mxu0 %v992
        %1099 = vmatpush.msra.mxu0 %v990
        %1100 = vmatpush.msra.mxu0 %v988
        %1101 = vmatpush.msra.mxu0 %v986
        %1102 = vmatmul.f32.gmra.mxu0 %v1046
        %v1103 = vpop.f32.mrf.mxu0
        %v1104 = vadd.f32 0.0, %v1103
        %1105 = vmatmul.f32.gmra.mxu0 %v1049
        %v1106 = vpop.f32.mrf.mxu0
        %v1107 = vadd.f32 0.0, %v1106
        %1108 = vmatmul.f32.gmra.mxu0 %v1052
        %v1109 = vpop.f32.mrf.mxu0
        %v1110 = vadd.f32 0.0, %v1109
        %1111 = vmatmul.f32.gmra.mxu0 %v1055
        %v1112 = vpop.f32.mrf.mxu0
        %v1113 = vadd.f32 0.0, %v1112
        %1114 = vdwg.mxu0
        %v1115 = vadd.f32 %v881, %v1075
        %v1116 = vadd.f32 %v882, %v1104
        %v1117 = vadd.f32 %v883, %v1078
        %v1118 = vadd.f32 %v884, %v1107
        %v1119 = vadd.f32 %v885, %v1081
        %v1120 = vadd.f32 %v886, %v1110
        %v1121 = vadd.f32 %v887, %v1084
        %v1122 = vadd.f32 %v888, %v1113
        %s1123 = scalar_lea.vmem [#allocation6], 64
        %v1124 = vld [vmem:[%s1123] sm:$0xff]
        %v1125 = vld [vmem:[%s1123 + $0x8] sm:$0xff]
        %v1126 = vld [vmem:[%s1123 + $0x10] sm:$0xff]
        %v1127 = vld [vmem:[%s1123 + $0x18] sm:$0xff]
        %1128 = vrot.lane.b32.xlu0 %v557, 111
        %v1129 = vpop.permute.xlu0 %1128
        %1130 = vrot.lane.b32.xlu0 %v558, 111
        %v1131 = vpop.permute.xlu0 %1130
        %1132 = vrot.lane.b32.xlu0 %v559, 111
        %v1133 = vpop.permute.xlu0 %1132
        %1134 = vrot.lane.b32.xlu0 %v560, 111
        %v1135 = vpop.permute.xlu0 %1134
        %1136 = vrot.lane.b32.xlu0 %v561, 111
        %v1137 = vpop.permute.xlu0 %1136
        %1138 = vrot.lane.b32.xlu0 %v562, 111
        %v1139 = vpop.permute.xlu0 %1138
        %1140 = vrot.lane.b32.xlu0 %v563, 111
        %v1141 = vpop.permute.xlu0 %1140
        %1142 = vrot.lane.b32.xlu0 %v564, 111
        %v1143 = vpop.permute.xlu0 %1142
        %1144 = vrot.lane.b32.xlu0 %v565, 111
        %v1145 = vpop.permute.xlu0 %1144
        %1146 = vrot.lane.b32.xlu0 %v566, 111
        %v1147 = vpop.permute.xlu0 %1146
        %1148 = vrot.lane.b32.xlu0 %v567, 111
        %v1149 = vpop.permute.xlu0 %1148
        %1150 = vrot.lane.b32.xlu0 %v568, 111
        %v1151 = vpop.permute.xlu0 %1150
        %1152 = vrot.lane.b32.xlu0 %v569, 111
        %v1153 = vpop.permute.xlu0 %1152
        %1154 = vrot.lane.b32.xlu0 %v570, 111
        %v1155 = vpop.permute.xlu0 %1154
        %1156 = vrot.lane.b32.xlu0 %v571, 111
        %v1157 = vpop.permute.xlu0 %1156
        %1158 = vrot.lane.b32.xlu0 %v572, 111
        %v1159 = vpop.permute.xlu0 %1158
        %1160 = vrot.lane.b32.xlu0 %v573, 111
        %v1161 = vpop.permute.xlu0 %1160
        %1162 = vrot.lane.b32.xlu0 %v574, 111
        %v1163 = vpop.permute.xlu0 %1162
        %1164 = vrot.lane.b32.xlu0 %v575, 111
        %v1165 = vpop.permute.xlu0 %1164
        %1166 = vrot.lane.b32.xlu0 %v576, 111
        %v1167 = vpop.permute.xlu0 %1166
        %1168 = vrot.lane.b32.xlu0 %v577, 111
        %v1169 = vpop.permute.xlu0 %1168
        %1170 = vrot.lane.b32.xlu0 %v578, 111
        %v1171 = vpop.permute.xlu0 %1170
        %1172 = vrot.lane.b32.xlu0 %v579, 111
        %v1173 = vpop.permute.xlu0 %1172
        %1174 = vrot.lane.b32.xlu0 %v580, 111
        %v1175 = vpop.permute.xlu0 %1174
        %1176 = vrot.lane.b32.xlu0 %v581, 111
        %v1177 = vpop.permute.xlu0 %1176
        %1178 = vrot.lane.b32.xlu0 %v582, 111
        %v1179 = vpop.permute.xlu0 %1178
        %1180 = vrot.lane.b32.xlu0 %v583, 111
        %v1181 = vpop.permute.xlu0 %1180
        %1182 = vrot.lane.b32.xlu0 %v584, 111
        %v1183 = vpop.permute.xlu0 %1182
        %1184 = vrot.lane.b32.xlu0 %v585, 111
        %v1185 = vpop.permute.xlu0 %1184
        %1186 = vrot.lane.b32.xlu0 %v586, 111
        %v1187 = vpop.permute.xlu0 %1186
        %1188 = vrot.lane.b32.xlu0 %v587, 111
        %v1189 = vpop.permute.xlu0 %1188
        %1190 = vrot.lane.b32.xlu0 %v588, 111
        %v1191 = vpop.permute.xlu0 %1190
        %1192 = vrot.lane.b32.xlu0 %v589, 111
        %v1193 = vpop.permute.xlu0 %1192
        %1194 = vrot.lane.b32.xlu0 %v590, 111
        %v1195 = vpop.permute.xlu0 %1194
        %1196 = vrot.lane.b32.xlu0 %v591, 111
        %v1197 = vpop.permute.xlu0 %1196
        %1198 = vrot.lane.b32.xlu0 %v592, 111
        %v1199 = vpop.permute.xlu0 %1198
        %1200 = vrot.lane.b32.xlu0 %v593, 111
        %v1201 = vpop.permute.xlu0 %1200
        %1202 = vrot.lane.b32.xlu0 %v594, 111
        %v1203 = vpop.permute.xlu0 %1202
        %1204 = vrot.lane.b32.xlu0 %v595, 111
        %v1205 = vpop.permute.xlu0 %1204
        %1206 = vrot.lane.b32.xlu0 %v596, 111
        %v1207 = vpop.permute.xlu0 %1206
        %1208 = vrot.lane.b32.xlu0 %v597, 111
        %v1209 = vpop.permute.xlu0 %1208
        %1210 = vrot.lane.b32.xlu0 %v598, 111
        %v1211 = vpop.permute.xlu0 %1210
        %1212 = vrot.lane.b32.xlu0 %v599, 111
        %v1213 = vpop.permute.xlu0 %1212
        %1214 = vrot.lane.b32.xlu0 %v600, 111
        %v1215 = vpop.permute.xlu0 %1214
        %1216 = vrot.lane.b32.xlu0 %v601, 111
        %v1217 = vpop.permute.xlu0 %1216
        %vm1218 = vcmask 908288
        %v1219 = vsel %vm1218, %v1129, %v1131
        %v1220 = vsel %vm1218, %v1131, %v1133
        %v1221 = vsel %vm1218, %v1135, %v1137
        %v1222 = vsel %vm1218, %v1137, %v1139
        %v1223 = vsel %vm1218, %v1141, %v1143
        %v1224 = vsel %vm1218, %v1143, %v1145
        %v1225 = vsel %vm1218, %v1147, %v1149
        %v1226 = vsel %vm1218, %v1149, %v1151
        %v1227 = vsel %vm1218, %v1153, %v1155
        %v1228 = vsel %vm1218, %v1155, %v1157
        %v1229 = vsel %vm1218, %v1159, %v1161
        %v1230 = vsel %vm1218, %v1161, %v1163
        %v1231 = vsel %vm1218, %v1165, %v1167
        %v1232 = vsel %vm1218, %v1167, %v1169
        %v1233 = vsel %vm1218, %v1171, %v1173
        %v1234 = vsel %vm1218, %v1173, %v1175
        %v1235 = vsel %vm1218, %v1177, %v1179
        %v1236 = vsel %vm1218, %v1179, %v1181
        %v1237 = vsel %vm1218, %v1183, %v1185
        %v1238 = vsel %vm1218, %v1185, %v1187
        %v1239 = vsel %vm1218, %v1189, %v1191
        %v1240 = vsel %vm1218, %v1191, %v1193
        %v1241 = vsel %vm1218, %v1195, %v1197
        %v1242 = vsel %vm1218, %v1197, %v1199
        %v1243 = vsel %vm1218, %v1201, %v1203
        %v1244 = vsel %vm1218, %v1203, %v1205
        %v1245 = vsel %vm1218, %v1207, %v1209
        %v1246 = vsel %vm1218, %v1209, %v1211
        %v1247 = vsel %vm1218, %v1213, %v1215
        %v1248 = vsel %vm1218, %v1215, %v1217
        %v1280 = vsel %vm802, %v1124, 0
        %v1283 = vsel %vm802, %v1125, 0
        %v1286 = vsel %vm802, %v1126, 0
        %v1289 = vsel %vm802, %v1127, 0
        %1291 = vmatpush.msra.mxu0 0.0
        %1292 = vmatpush.msra.mxu0 %v1247
        %1293 = vmatpush.msra.mxu0 %v1245
        %1294 = vmatpush.msra.mxu0 %v1243
        %1295 = vmatpush.msra.mxu0 %v1241
        %1296 = vmatpush.msra.mxu0 %v1239
        %1297 = vmatpush.msra.mxu0 %v1237
        %1298 = vmatpush.msra.mxu0 %v1235
        %1299 = vmatpush.msra.mxu0 %v1233
        %1300 = vmatpush.msra.mxu0 %v1231
        %1301 = vmatpush.msra.mxu0 %v1229
        %1302 = vmatpush.msra.mxu0 %v1227
        %1303 = vmatpush.msra.mxu0 %v1225
        %1304 = vmatpush.msra.mxu0 %v1223
        %1305 = vmatpush.msra.mxu0 %v1221
        %1306 = vmatpush.msra.mxu0 %v1219
        %1307 = vmatmul.f32.gmra.mxu0 %v1280
        %v1308 = vpop.f32.mrf.mxu0
        %v1309 = vadd.f32 0.0, %v1308
        %1310 = vmatmul.f32.gmra.mxu0 %v1283
        %v1311 = vpop.f32.mrf.mxu0
        %v1312 = vadd.f32 0.0, %v1311
        %1313 = vmatmul.f32.gmra.mxu0 %v1286
        %v1314 = vpop.f32.mrf.mxu0
        %v1315 = vadd.f32 0.0, %v1314
        %1316 = vmatmul.f32.gmra.mxu0 %v1289
        %v1317 = vpop.f32.mrf.mxu0
        %v1318 = vadd.f32 0.0, %v1317
        %1319 = vdwg.mxu0
        %1320 = vmatpush.msra.mxu0 0.0
        %1321 = vmatpush.msra.mxu0 %v1248
        %1322 = vmatpush.msra.mxu0 %v1246
        %1323 = vmatpush.msra.mxu0 %v1244
        %1324 = vmatpush.msra.mxu0 %v1242
        %1325 = vmatpush.msra.mxu0 %v1240
        %1326 = vmatpush.msra.mxu0 %v1238
        %1327 = vmatpush.msra.mxu0 %v1236
        %1328 = vmatpush.msra.mxu0 %v1234
        %1329 = vmatpush.msra.mxu0 %v1232
        %1330 = vmatpush.msra.mxu0 %v1230
        %1331 = vmatpush.msra.mxu0 %v1228
        %1332 = vmatpush.msra.mxu0 %v1226
        %1333 = vmatpush.msra.mxu0 %v1224
        %1334 = vmatpush.msra.mxu0 %v1222
        %1335 = vmatpush.msra.mxu0 %v1220
        %1336 = vmatmul.f32.gmra.mxu0 %v1280
        %v1337 = vpop.f32.mrf.mxu0
        %v1338 = vadd.f32 0.0, %v1337
        %1339 = vmatmul.f32.gmra.mxu0 %v1283
        %v1340 = vpop.f32.mrf.mxu0
        %v1341 = vadd.f32 0.0, %v1340
        %1342 = vmatmul.f32.gmra.mxu0 %v1286
        %v1343 = vpop.f32.mrf.mxu0
        %v1344 = vadd.f32 0.0, %v1343
        %1345 = vmatmul.f32.gmra.mxu0 %v1289
        %v1346 = vpop.f32.mrf.mxu0
        %v1347 = vadd.f32 0.0, %v1346
        %1348 = vdwg.mxu0
        %v1349 = vmul.f32 %v1309, %v555
        %v1350 = vmul.f32 %v1338, %v556
        %v1351 = vmul.f32 %v1312, %v555
        %v1352 = vmul.f32 %v1341, %v556
        %v1353 = vmul.f32 %v1315, %v555
        %v1354 = vmul.f32 %v1344, %v556
        %v1355 = vmul.f32 %v1318, %v555
        %v1356 = vmul.f32 %v1347, %v556
        %v1357 = vadd.f32 %v1115, %v1349
        %v1358 = vadd.f32 %v1116, %v1350
        %v1359 = vadd.f32 %v1117, %v1351
        %v1360 = vadd.f32 %v1118, %v1352
        %v1361 = vadd.f32 %v1119, %v1353
        %v1362 = vadd.f32 %v1120, %v1354
        %v1363 = vadd.f32 %v1121, %v1355
        %v1364 = vadd.f32 %v1122, %v1356
        %v1365 = vld [vmem:[#allocation2 + $0x60] sm:$0xff]
        %v1366 = vld [vmem:[#allocation2 + $0x68] sm:$0xff]
        %v1367 = vld [vmem:[#allocation2 + $0x70] sm:$0xff]
        %v1368 = vld [vmem:[#allocation2 + $0x78] sm:$0xff]
        %v1369 = vld [vmem:[#allocation2 + $0x80] sm:$0xff]
        %v1370 = vld [vmem:[#allocation2 + $0x88] sm:$0xff]
        %v1371 = vld [vmem:[#allocation2 + $0x90] sm:$0xff]
        %v1372 = vld [vmem:[#allocation2 + $0x98] sm:$0xff]
        %v1373 = vld [vmem:[#allocation2 + $0xa0] sm:$0xff]
        %v1374 = vld [vmem:[#allocation2 + $0xa8] sm:$0xff]
        %v1375 = vld [vmem:[#allocation2 + $0xb0] sm:$0xff]
        %v1376 = vld [vmem:[#allocation2 + $0xb8] sm:$0xff]
        %v1377 = vld [vmem:[%s3] sm:$0xff]
        %v1378 = vld [vmem:[%s3 + $0x8] sm:$0xff]
        %v1379 = vld [vmem:[%s3 + $0x10] sm:$0xff]
        %v1380 = vld [vmem:[%s3 + $0x18] sm:$0xff]
        %1382 = vset.pattern.permute.xlu0 0
        %1383 = vperm.xlu0 %1382, %v1377
        %v1384 = vpop.permute.xlu0 %1383
        %1387 = vset.pattern.permute.xlu0 0
        %1388 = vperm.xlu0 %1387, %v1378
        %v1389 = vpop.permute.xlu0 %1388
        %1392 = vset.pattern.permute.xlu0 0
        %1393 = vperm.xlu0 %1392, %v1379
        %v1394 = vpop.permute.xlu0 %1393
        %1397 = vset.pattern.permute.xlu0 0
        %1398 = vperm.xlu0 %1397, %v1380
        %v1399 = vpop.permute.xlu0 %1398
        %v1401 = vadd.f32 %v1357, %v1384
        %v1402 = vadd.f32 %v1358, %v1384
        %v1403 = vadd.f32 %v1359, %v1389
        %v1404 = vadd.f32 %v1360, %v1389
        %v1405 = vadd.f32 %v1361, %v1394
        %v1406 = vadd.f32 %v1362, %v1394
        %v1407 = vadd.f32 %v1363, %v1399
        %v1408 = vadd.f32 %v1364, %v1399
        %v1409 = vmax.f32 %v1401, 0.0
        %v1410 = vmax.f32 %v1402, 0.0
        %v1411 = vmax.f32 %v1403, 0.0
        %v1412 = vmax.f32 %v1404, 0.0
        %v1413 = vmax.f32 %v1405, 0.0
        %v1414 = vmax.f32 %v1406, 0.0
        %v1415 = vmax.f32 %v1407, 0.0
        %v1416 = vmax.f32 %v1408, 0.0
        %1425 = vrot.lane.b32.xlu0 %v1409, 16
        %v1426 = vpop.permute.xlu0 %1425
        %1427 = vrot.lane.b32.xlu0 %v1410, 16
        %v1428 = vpop.permute.xlu0 %1427
        %1429 = vrot.lane.b32.xlu0 %v1411, 16
        %v1430 = vpop.permute.xlu0 %1429
        %1431 = vrot.lane.b32.xlu0 %v1412, 16
        %v1432 = vpop.permute.xlu0 %1431
        %1433 = vrot.lane.b32.xlu0 %v1413, 16
        %v1434 = vpop.permute.xlu0 %1433
        %1435 = vrot.lane.b32.xlu0 %v1414, 16
        %v1436 = vpop.permute.xlu0 %1435
        %1437 = vrot.lane.b32.xlu0 %v1415, 16
        %v1438 = vpop.permute.xlu0 %1437
        %1439 = vrot.lane.b32.xlu0 %v1416, 16
        %v1440 = vpop.permute.xlu0 %1439
        %v1441 = vsel %vm463, %v1426, %v1428
        %v1442 = vsel %vm463, %v1430, %v1432
        %v1443 = vsel %vm463, %v1434, %v1436
        %v1444 = vsel %vm463, %v1438, %v1440
        %v1457 = vadd.f32 %v1365, %v1426
        %v1458 = vadd.f32 %v1366, %v1441
        %v1459 = vadd.f32 %v1367, %v1428
        %v1460 = vadd.f32 %v1368, %v1430
        %v1461 = vadd.f32 %v1369, %v1442
        %v1462 = vadd.f32 %v1370, %v1432
        %v1463 = vadd.f32 %v1371, %v1434
        %v1464 = vadd.f32 %v1372, %v1443
        %v1465 = vadd.f32 %v1373, %v1436
        %v1466 = vadd.f32 %v1374, %v1438
        %v1467 = vadd.f32 %v1375, %v1444
        %v1468 = vadd.f32 %v1376, %v1440
        %1481 = vrot.lane.b32.xlu0 %v1457, 16
        %v1482 = vpop.permute.xlu0 %1481
        %1483 = vrot.lane.b32.xlu0 %v1458, 16
        %v1484 = vpop.permute.xlu0 %1483
        %1485 = vrot.lane.b32.xlu0 %v1459, 16
        %v1486 = vpop.permute.xlu0 %1485
        %1487 = vrot.lane.b32.xlu0 %v1460, 16
        %v1488 = vpop.permute.xlu0 %1487
        %1489 = vrot.lane.b32.xlu0 %v1461, 16
        %v1490 = vpop.permute.xlu0 %1489
        %1491 = vrot.lane.b32.xlu0 %v1462, 16
        %v1492 = vpop.permute.xlu0 %1491
        %1493 = vrot.lane.b32.xlu0 %v1463, 16
        %v1494 = vpop.permute.xlu0 %1493
        %1495 = vrot.lane.b32.xlu0 %v1464, 16
        %v1496 = vpop.permute.xlu0 %1495
        %1497 = vrot.lane.b32.xlu0 %v1465, 16
        %v1498 = vpop.permute.xlu0 %1497
        %1499 = vrot.lane.b32.xlu0 %v1466, 16
        %v1500 = vpop.permute.xlu0 %1499
        %1501 = vrot.lane.b32.xlu0 %v1467, 16
        %v1502 = vpop.permute.xlu0 %1501
        %1503 = vrot.lane.b32.xlu0 %v1468, 16
        %v1504 = vpop.permute.xlu0 %1503
        %v1505 = vsel %vm463, %v1482, %v1484
        %v1506 = vsel %vm463, %v1484, %v1486
        %v1507 = vsel %vm463, %v1488, %v1490
        %v1508 = vsel %vm463, %v1490, %v1492
        %v1509 = vsel %vm463, %v1494, %v1496
        %v1510 = vsel %vm463, %v1496, %v1498
        %v1511 = vsel %vm463, %v1500, %v1502
        %v1512 = vsel %vm463, %v1502, %v1504
        %1525 = vst.msk [vmem:[#allocation2] sm:$0xff] %vm421, %v1482
        %1526 = vst [vmem:[#allocation2 + $0x8] sm:$0xff] %v1505
        %1527 = vst.msk [vmem:[#allocation2 + $0x10] sm:$0xff] %vm308, %v1506
        %1528 = vst.msk [vmem:[#allocation2 + $0x18] sm:$0xff] %vm421, %v1488
        %1529 = vst [vmem:[#allocation2 + $0x20] sm:$0xff] %v1507
        %1530 = vst.msk [vmem:[#allocation2 + $0x28] sm:$0xff] %vm308, %v1508
        %1531 = vst.msk [vmem:[#allocation2 + $0x30] sm:$0xff] %vm421, %v1494
        %1532 = vst [vmem:[#allocation2 + $0x38] sm:$0xff] %v1509
        %1533 = vst.msk [vmem:[#allocation2 + $0x40] sm:$0xff] %vm308, %v1510
        %1534 = vst.msk [vmem:[#allocation2 + $0x48] sm:$0xff] %vm421, %v1500
        %1535 = vst [vmem:[#allocation2 + $0x50] sm:$0xff] %v1511
        %1536 = vst.msk [vmem:[#allocation2 + $0x58] sm:$0xff] %vm308, %v1512
        %1537 = vst.msk [vmem:[#allocation2 + $0x60] sm:$0xff] %vm480, %v1457
        %1538 = vst [vmem:[#allocation2 + $0x68] sm:$0xff] %v1458
        %1539 = vst.msk [vmem:[#allocation2 + $0x70] sm:$0xff] %vm463, %v1459
        %1540 = vst.msk [vmem:[#allocation2 + $0x78] sm:$0xff] %vm480, %v1460
        %1541 = vst [vmem:[#allocation2 + $0x80] sm:$0xff] %v1461
        %1542 = vst.msk [vmem:[#allocation2 + $0x88] sm:$0xff] %vm463, %v1462
        %1543 = vst.msk [vmem:[#allocation2 + $0x90] sm:$0xff] %vm480, %v1463
        %1544 = vst [vmem:[#allocation2 + $0x98] sm:$0xff] %v1464
        %1545 = vst.msk [vmem:[#allocation2 + $0xa0] sm:$0xff] %vm463, %v1465
        %1546 = vst.msk [vmem:[#allocation2 + $0xa8] sm:$0xff] %vm480, %v1466
        %1547 = vst [vmem:[#allocation2 + $0xb0] sm:$0xff] %v1467
        %1548 = vst.msk [vmem:[#allocation2 + $0xb8] sm:$0xff] %vm463, %v1468
        %1549 = vrot.lane.b32.xlu0 %v1457, 112
        %v1550 = vpop.permute.xlu0 %1549
        %1551 = vrot.lane.b32.xlu0 %v1458, 112
        %v1552 = vpop.permute.xlu0 %1551
        %1553 = vrot.lane.b32.xlu0 %v1459, 112
        %v1554 = vpop.permute.xlu0 %1553
        %1555 = vrot.lane.b32.xlu0 %v1460, 112
        %v1556 = vpop.permute.xlu0 %1555
        %1557 = vrot.lane.b32.xlu0 %v1461, 112
        %v1558 = vpop.permute.xlu0 %1557
        %1559 = vrot.lane.b32.xlu0 %v1462, 112
        %v1560 = vpop.permute.xlu0 %1559
        %1561 = vrot.lane.b32.xlu0 %v1463, 112
        %v1562 = vpop.permute.xlu0 %1561
        %1563 = vrot.lane.b32.xlu0 %v1464, 112
        %v1564 = vpop.permute.xlu0 %1563
        %1565 = vrot.lane.b32.xlu0 %v1465, 112
        %v1566 = vpop.permute.xlu0 %1565
        %1567 = vrot.lane.b32.xlu0 %v1466, 112
        %v1568 = vpop.permute.xlu0 %1567
        %1569 = vrot.lane.b32.xlu0 %v1467, 112
        %v1570 = vpop.permute.xlu0 %1569
        %1571 = vrot.lane.b32.xlu0 %v1468, 112
        %v1572 = vpop.permute.xlu0 %1571
        %v1573 = vsel %vm984, %v1550, %v1552
        %v1574 = vsel %vm984, %v1552, %v1554
        %v1575 = vsel %vm984, %v1556, %v1558
        %v1576 = vsel %vm984, %v1558, %v1560
        %v1577 = vsel %vm984, %v1562, %v1564
        %v1578 = vsel %vm984, %v1564, %v1566
        %v1579 = vsel %vm984, %v1568, %v1570
        %v1580 = vsel %vm984, %v1570, %v1572
        %1589 = vst [vmem:[#allocation2 + $0xc0] sm:$0xff] %v1573
        %1590 = vst [vmem:[#allocation2 + $0xc8] sm:$0xff] %v1574
        %1591 = vst [vmem:[#allocation2 + $0xd8] sm:$0xff] %v1575
        %1592 = vst [vmem:[#allocation2 + $0xe0] sm:$0xff] %v1576
        %1593 = vst [vmem:[#allocation2 + $0xf0] sm:$0xff] %v1577
        %1594 = vst [vmem:[#allocation2 + $0xf8] sm:$0xff] %v1578
        %1595 = vst [vmem:[#allocation2 + $0x108] sm:$0xff] %v1579
        %1596 = vst [vmem:[#allocation2 + $0x110] sm:$0xff] %v1580
        %v1597 = vld [vmem:[#allocation2] sm:$0xff]
        %v1598 = vld [vmem:[#allocation2 + $0x8] sm:$0xff]
        %v1599 = vld [vmem:[#allocation2 + $0x10] sm:$0xff]
        %v1600 = vld [vmem:[#allocation2 + $0x18] sm:$0xff]
        %v1601 = vld [vmem:[#allocation2 + $0x20] sm:$0xff]
        %v1602 = vld [vmem:[#allocation2 + $0x28] sm:$0xff]
        %v1603 = vld [vmem:[#allocation2 + $0x30] sm:$0xff]
        %v1604 = vld [vmem:[#allocation2 + $0x38] sm:$0xff]
        %v1605 = vld [vmem:[#allocation2 + $0x40] sm:$0xff]
        %v1606 = vld [vmem:[#allocation2 + $0x48] sm:$0xff]
        %v1607 = vld [vmem:[#allocation2 + $0x50] sm:$0xff]
        %v1608 = vld [vmem:[#allocation2 + $0x58] sm:$0xff]
        %v1609 = vld [vmem:[#allocation2 + $0x60] sm:$0xff]
        %v1610 = vld [vmem:[#allocation2 + $0x68] sm:$0xff]
        %v1611 = vld [vmem:[#allocation2 + $0x70] sm:$0xff]
        %v1612 = vld [vmem:[#allocation2 + $0x78] sm:$0xff]
        %v1613 = vld [vmem:[#allocation2 + $0x80] sm:$0xff]
        %v1614 = vld [vmem:[#allocation2 + $0x88] sm:$0xff]
        %v1615 = vld [vmem:[#allocation2 + $0x90] sm:$0xff]
        %v1616 = vld [vmem:[#allocation2 + $0x98] sm:$0xff]
        %v1617 = vld [vmem:[#allocation2 + $0xa0] sm:$0xff]
        %v1618 = vld [vmem:[#allocation2 + $0xa8] sm:$0xff]
        %v1619 = vld [vmem:[#allocation2 + $0xb0] sm:$0xff]
        %v1620 = vld [vmem:[#allocation2 + $0xb8] sm:$0xff]
        %v1621 = vld [vmem:[#allocation2 + $0xc0] sm:$0xff]
        %v1622 = vld [vmem:[#allocation2 + $0xc8] sm:$0xff]
        %v1623 = vld [vmem:[#allocation2 + $0xd0] sm:$0xff]
        %v1624 = vld [vmem:[#allocation2 + $0xd8] sm:$0xff]
        %v1625 = vld [vmem:[#allocation2 + $0xe0] sm:$0xff]
        %v1626 = vld [vmem:[#allocation2 + $0xe8] sm:$0xff]
        %v1627 = vld [vmem:[#allocation2 + $0xf0] sm:$0xff]
        %v1628 = vld [vmem:[#allocation2 + $0xf8] sm:$0xff]
        %v1629 = vld [vmem:[#allocation2 + $0x100] sm:$0xff]
        %v1630 = vld [vmem:[#allocation2 + $0x108] sm:$0xff]
        %v1631 = vld [vmem:[#allocation2 + $0x110] sm:$0xff]
        %v1632 = vld [vmem:[#allocation2 + $0x118] sm:$0xff]
        %v1633 = vld [vmem:[#allocation2 + $0x120] sm:$0xff]
        %v1634 = vld [vmem:[#allocation2 + $0x128] sm:$0xff]
        %v1635 = vld [vmem:[#allocation2 + $0x130] sm:$0xff]
        %v1636 = vld [vmem:[#allocation2 + $0x138] sm:$0xff]
        %v1637 = vld [vmem:[#allocation2 + $0x140] sm:$0xff]
        %v1638 = vld [vmem:[#allocation2 + $0x148] sm:$0xff]
        %v1639 = vld [vmem:[#allocation2 + $0x150] sm:$0xff]
        %v1640 = vld [vmem:[#allocation2 + $0x158] sm:$0xff]
        %v1641 = vld [vmem:[#allocation2 + $0x160] sm:$0xff]
        %v1642 = vld [vmem:[%s4] sm:$0xff]
        %1688 = vrot.lane.b32.xlu0 %v1597, 113
        %v1689 = vpop.permute.xlu0 %1688
        %1690 = vrot.lane.b32.xlu0 %v1598, 113
        %v1691 = vpop.permute.xlu0 %1690
        %1692 = vrot.lane.b32.xlu0 %v1599, 113
        %v1693 = vpop.permute.xlu0 %1692
        %1694 = vrot.lane.b32.xlu0 %v1600, 113
        %v1695 = vpop.permute.xlu0 %1694
        %1696 = vrot.lane.b32.xlu0 %v1601, 113
        %v1697 = vpop.permute.xlu0 %1696
        %1698 = vrot.lane.b32.xlu0 %v1602, 113
        %v1699 = vpop.permute.xlu0 %1698
        %1700 = vrot.lane.b32.xlu0 %v1603, 113
        %v1701 = vpop.permute.xlu0 %1700
        %1702 = vrot.lane.b32.xlu0 %v1604, 113
        %v1703 = vpop.permute.xlu0 %1702
        %1704 = vrot.lane.b32.xlu0 %v1605, 113
        %v1705 = vpop.permute.xlu0 %1704
        %1706 = vrot.lane.b32.xlu0 %v1606, 113
        %v1707 = vpop.permute.xlu0 %1706
        %1708 = vrot.lane.b32.xlu0 %v1607, 113
        %v1709 = vpop.permute.xlu0 %1708
        %1710 = vrot.lane.b32.xlu0 %v1608, 113
        %v1711 = vpop.permute.xlu0 %1710
        %1712 = vrot.lane.b32.xlu0 %v1609, 113
        %v1713 = vpop.permute.xlu0 %1712
        %1714 = vrot.lane.b32.xlu0 %v1610, 113
        %v1715 = vpop.permute.xlu0 %1714
        %1716 = vrot.lane.b32.xlu0 %v1611, 113
        %v1717 = vpop.permute.xlu0 %1716
        %1718 = vrot.lane.b32.xlu0 %v1612, 113
        %v1719 = vpop.permute.xlu0 %1718
        %1720 = vrot.lane.b32.xlu0 %v1613, 113
        %v1721 = vpop.permute.xlu0 %1720
        %1722 = vrot.lane.b32.xlu0 %v1614, 113
        %v1723 = vpop.permute.xlu0 %1722
        %1724 = vrot.lane.b32.xlu0 %v1615, 113
        %v1725 = vpop.permute.xlu0 %1724
        %1726 = vrot.lane.b32.xlu0 %v1616, 113
        %v1727 = vpop.permute.xlu0 %1726
        %1728 = vrot.lane.b32.xlu0 %v1617, 113
        %v1729 = vpop.permute.xlu0 %1728
        %1730 = vrot.lane.b32.xlu0 %v1618, 113
        %v1731 = vpop.permute.xlu0 %1730
        %1732 = vrot.lane.b32.xlu0 %v1619, 113
        %v1733 = vpop.permute.xlu0 %1732
        %1734 = vrot.lane.b32.xlu0 %v1620, 113
        %v1735 = vpop.permute.xlu0 %1734
        %1736 = vrot.lane.b32.xlu0 %v1621, 113
        %v1737 = vpop.permute.xlu0 %1736
        %1738 = vrot.lane.b32.xlu0 %v1622, 113
        %v1739 = vpop.permute.xlu0 %1738
        %1740 = vrot.lane.b32.xlu0 %v1623, 113
        %v1741 = vpop.permute.xlu0 %1740
        %1742 = vrot.lane.b32.xlu0 %v1624, 113
        %v1743 = vpop.permute.xlu0 %1742
        %1744 = vrot.lane.b32.xlu0 %v1625, 113
        %v1745 = vpop.permute.xlu0 %1744
        %1746 = vrot.lane.b32.xlu0 %v1626, 113
        %v1747 = vpop.permute.xlu0 %1746
        %1748 = vrot.lane.b32.xlu0 %v1627, 113
        %v1749 = vpop.permute.xlu0 %1748
        %1750 = vrot.lane.b32.xlu0 %v1628, 113
        %v1751 = vpop.permute.xlu0 %1750
        %1752 = vrot.lane.b32.xlu0 %v1629, 113
        %v1753 = vpop.permute.xlu0 %1752
        %1754 = vrot.lane.b32.xlu0 %v1630, 113
        %v1755 = vpop.permute.xlu0 %1754
        %1756 = vrot.lane.b32.xlu0 %v1631, 113
        %v1757 = vpop.permute.xlu0 %1756
        %1758 = vrot.lane.b32.xlu0 %v1632, 113
        %v1759 = vpop.permute.xlu0 %1758
        %1760 = vrot.lane.b32.xlu0 %v1633, 113
        %v1761 = vpop.permute.xlu0 %1760
        %1762 = vrot.lane.b32.xlu0 %v1634, 113
        %v1763 = vpop.permute.xlu0 %1762
        %1764 = vrot.lane.b32.xlu0 %v1635, 113
        %v1765 = vpop.permute.xlu0 %1764
        %1766 = vrot.lane.b32.xlu0 %v1636, 113
        %v1767 = vpop.permute.xlu0 %1766
        %1768 = vrot.lane.b32.xlu0 %v1637, 113
        %v1769 = vpop.permute.xlu0 %1768
        %1770 = vrot.lane.b32.xlu0 %v1638, 113
        %v1771 = vpop.permute.xlu0 %1770
        %1772 = vrot.lane.b32.xlu0 %v1639, 113
        %v1773 = vpop.permute.xlu0 %1772
        %1774 = vrot.lane.b32.xlu0 %v1640, 113
        %v1775 = vpop.permute.xlu0 %1774
        %1776 = vrot.lane.b32.xlu0 %v1641, 113
        %v1777 = vpop.permute.xlu0 %1776
        %v1778 = vsel %vm741, %v1689, %v1691
        %v1779 = vsel %vm741, %v1691, %v1693
        %v1780 = vsel %vm741, %v1695, %v1697
        %v1781 = vsel %vm741, %v1697, %v1699
        %v1782 = vsel %vm741, %v1701, %v1703
        %v1783 = vsel %vm741, %v1703, %v1705
        %v1784 = vsel %vm741, %v1707, %v1709
        %v1785 = vsel %vm741, %v1709, %v1711
        %v1786 = vsel %vm741, %v1713, %v1715
        %v1787 = vsel %vm741, %v1715, %v1717
        %v1788 = vsel %vm741, %v1719, %v1721
        %v1789 = vsel %vm741, %v1721, %v1723
        %v1790 = vsel %vm741, %v1725, %v1727
        %v1791 = vsel %vm741, %v1727, %v1729
        %v1792 = vsel %vm741, %v1731, %v1733
        %v1793 = vsel %vm741, %v1733, %v1735
        %v1794 = vsel %vm741, %v1737, %v1739
        %v1795 = vsel %vm741, %v1739, %v1741
        %v1796 = vsel %vm741, %v1743, %v1745
        %v1797 = vsel %vm741, %v1745, %v1747
        %v1798 = vsel %vm741, %v1749, %v1751
        %v1799 = vsel %vm741, %v1751, %v1753
        %v1800 = vsel %vm741, %v1755, %v1757
        %v1801 = vsel %vm741, %v1757, %v1759
        %v1802 = vsel %vm741, %v1761, %v1763
        %v1803 = vsel %vm741, %v1763, %v1765
        %v1804 = vsel %vm741, %v1767, %v1769
        %v1805 = vsel %vm741, %v1769, %v1771
        %v1806 = vsel %vm741, %v1773, %v1775
        %v1807 = vsel %vm741, %v1775, %v1777
        %v1839 = vsel %vm802, %v1642, 0
        %1841 = vmatpush.msra.mxu0 0.0
        %1842 = vmatpush.msra.mxu0 %v1806
        %1843 = vmatpush.msra.mxu0 %v1804
        %1844 = vmatpush.msra.mxu0 %v1802
        %1845 = vmatpush.msra.mxu0 %v1800
        %1846 = vmatpush.msra.mxu0 %v1798
        %1847 = vmatpush.msra.mxu0 %v1796
        %1848 = vmatpush.msra.mxu0 %v1794
        %1849 = vmatpush.msra.mxu0 %v1792
        %1850 = vmatpush.msra.mxu0 %v1790
        %1851 = vmatpush.msra.mxu0 %v1788
        %1852 = vmatpush.msra.mxu0 %v1786
        %1853 = vmatpush.msra.mxu0 %v1784
        %1854 = vmatpush.msra.mxu0 %v1782
        %1855 = vmatpush.msra.mxu0 %v1780
        %1856 = vmatpush.msra.mxu0 %v1778
        %1857 = vmatmul.f32.gmra.mxu0 %v1839
        %v1858 = vpop.f32.mrf.mxu0
        %v1859 = vadd.f32 0.0, %v1858
        %1860 = vdwg.mxu0
        %1861 = vmatpush.msra.mxu0 0.0
        %1862 = vmatpush.msra.mxu0 %v1807
        %1863 = vmatpush.msra.mxu0 %v1805
        %1864 = vmatpush.msra.mxu0 %v1803
        %1865 = vmatpush.msra.mxu0 %v1801
        %1866 = vmatpush.msra.mxu0 %v1799
        %1867 = vmatpush.msra.mxu0 %v1797
        %1868 = vmatpush.msra.mxu0 %v1795
        %1869 = vmatpush.msra.mxu0 %v1793
        %1870 = vmatpush.msra.mxu0 %v1791
        %1871 = vmatpush.msra.mxu0 %v1789
        %1872 = vmatpush.msra.mxu0 %v1787
        %1873 = vmatpush.msra.mxu0 %v1785
        %1874 = vmatpush.msra.mxu0 %v1783
        %1875 = vmatpush.msra.mxu0 %v1781
        %1876 = vmatpush.msra.mxu0 %v1779
        %1877 = vmatmul.f32.gmra.mxu0 %v1839
        %v1878 = vpop.f32.mrf.mxu0
        %v1879 = vadd.f32 0.0, %v1878
        %1880 = vdwg.mxu0
        %v1881 = vmul.f32 %v1859, %v549
        %v1882 = vmul.f32 %v1879, %v550
        %v1883 = vadd.f32 %v1881, 0.0
        %v1884 = vadd.f32 %v1882, 0.0
        %s1885 = scalar_lea.vmem %s4, 8
        %v1886 = vld [vmem:[%s1885] sm:$0xff]
        %1887 = vrot.lane.b32.xlu0 %v1597, 112
        %v1888 = vpop.permute.xlu0 %1887
        %1889 = vrot.lane.b32.xlu0 %v1598, 112
        %v1890 = vpop.permute.xlu0 %1889
        %1891 = vrot.lane.b32.xlu0 %v1599, 112
        %v1892 = vpop.permute.xlu0 %1891
        %1893 = vrot.lane.b32.xlu0 %v1600, 112
        %v1894 = vpop.permute.xlu0 %1893
        %1895 = vrot.lane.b32.xlu0 %v1601, 112
        %v1896 = vpop.permute.xlu0 %1895
        %1897 = vrot.lane.b32.xlu0 %v1602, 112
        %v1898 = vpop.permute.xlu0 %1897
        %1899 = vrot.lane.b32.xlu0 %v1603, 112
        %v1900 = vpop.permute.xlu0 %1899
        %1901 = vrot.lane.b32.xlu0 %v1604, 112
        %v1902 = vpop.permute.xlu0 %1901
        %1903 = vrot.lane.b32.xlu0 %v1605, 112
        %v1904 = vpop.permute.xlu0 %1903
        %1905 = vrot.lane.b32.xlu0 %v1606, 112
        %v1906 = vpop.permute.xlu0 %1905
        %1907 = vrot.lane.b32.xlu0 %v1607, 112
        %v1908 = vpop.permute.xlu0 %1907
        %1909 = vrot.lane.b32.xlu0 %v1608, 112
        %v1910 = vpop.permute.xlu0 %1909
        %1911 = vrot.lane.b32.xlu0 %v1609, 112
        %v1912 = vpop.permute.xlu0 %1911
        %1913 = vrot.lane.b32.xlu0 %v1610, 112
        %v1914 = vpop.permute.xlu0 %1913
        %1915 = vrot.lane.b32.xlu0 %v1611, 112
        %v1916 = vpop.permute.xlu0 %1915
        %1917 = vrot.lane.b32.xlu0 %v1612, 112
        %v1918 = vpop.permute.xlu0 %1917
        %1919 = vrot.lane.b32.xlu0 %v1613, 112
        %v1920 = vpop.permute.xlu0 %1919
        %1921 = vrot.lane.b32.xlu0 %v1614, 112
        %v1922 = vpop.permute.xlu0 %1921
        %1923 = vrot.lane.b32.xlu0 %v1615, 112
        %v1924 = vpop.permute.xlu0 %1923
        %1925 = vrot.lane.b32.xlu0 %v1616, 112
        %v1926 = vpop.permute.xlu0 %1925
        %1927 = vrot.lane.b32.xlu0 %v1617, 112
        %v1928 = vpop.permute.xlu0 %1927
        %1929 = vrot.lane.b32.xlu0 %v1618, 112
        %v1930 = vpop.permute.xlu0 %1929
        %1931 = vrot.lane.b32.xlu0 %v1619, 112
        %v1932 = vpop.permute.xlu0 %1931
        %1933 = vrot.lane.b32.xlu0 %v1620, 112
        %v1934 = vpop.permute.xlu0 %1933
        %1935 = vrot.lane.b32.xlu0 %v1621, 112
        %v1936 = vpop.permute.xlu0 %1935
        %1937 = vrot.lane.b32.xlu0 %v1622, 112
        %v1938 = vpop.permute.xlu0 %1937
        %1939 = vrot.lane.b32.xlu0 %v1623, 112
        %v1940 = vpop.permute.xlu0 %1939
        %1941 = vrot.lane.b32.xlu0 %v1624, 112
        %v1942 = vpop.permute.xlu0 %1941
        %1943 = vrot.lane.b32.xlu0 %v1625, 112
        %v1944 = vpop.permute.xlu0 %1943
        %1945 = vrot.lane.b32.xlu0 %v1626, 112
        %v1946 = vpop.permute.xlu0 %1945
        %1947 = vrot.lane.b32.xlu0 %v1627, 112
        %v1948 = vpop.permute.xlu0 %1947
        %1949 = vrot.lane.b32.xlu0 %v1628, 112
        %v1950 = vpop.permute.xlu0 %1949
        %1951 = vrot.lane.b32.xlu0 %v1629, 112
        %v1952 = vpop.permute.xlu0 %1951
        %1953 = vrot.lane.b32.xlu0 %v1630, 112
        %v1954 = vpop.permute.xlu0 %1953
        %1955 = vrot.lane.b32.xlu0 %v1631, 112
        %v1956 = vpop.permute.xlu0 %1955
        %1957 = vrot.lane.b32.xlu0 %v1632, 112
        %v1958 = vpop.permute.xlu0 %1957
        %1959 = vrot.lane.b32.xlu0 %v1633, 112
        %v1960 = vpop.permute.xlu0 %1959
        %1961 = vrot.lane.b32.xlu0 %v1634, 112
        %v1962 = vpop.permute.xlu0 %1961
        %1963 = vrot.lane.b32.xlu0 %v1635, 112
        %v1964 = vpop.permute.xlu0 %1963
        %1965 = vrot.lane.b32.xlu0 %v1636, 112
        %v1966 = vpop.permute.xlu0 %1965
        %1967 = vrot.lane.b32.xlu0 %v1637, 112
        %v1968 = vpop.permute.xlu0 %1967
        %1969 = vrot.lane.b32.xlu0 %v1638, 112
        %v1970 = vpop.permute.xlu0 %1969
        %1971 = vrot.lane.b32.xlu0 %v1639, 112
        %v1972 = vpop.permute.xlu0 %1971
        %1973 = vrot.lane.b32.xlu0 %v1640, 112
        %v1974 = vpop.permute.xlu0 %1973
        %1975 = vrot.lane.b32.xlu0 %v1641, 112
        %v1976 = vpop.permute.xlu0 %1975
        %v1977 = vsel %vm984, %v1888, %v1890
        %v1978 = vsel %vm984, %v1890, %v1892
        %v1979 = vsel %vm984, %v1894, %v1896
        %v1980 = vsel %vm984, %v1896, %v1898
        %v1981 = vsel %vm984, %v1900, %v1902
        %v1982 = vsel %vm984, %v1902, %v1904
        %v1983 = vsel %vm984, %v1906, %v1908
        %v1984 = vsel %vm984, %v1908, %v1910
        %v1985 = vsel %vm984, %v1912, %v1914
        %v1986 = vsel %vm984, %v1914, %v1916
        %v1987 = vsel %vm984, %v1918, %v1920
        %v1988 = vsel %vm984, %v1920, %v1922
        %v1989 = vsel %vm984, %v1924, %v1926
        %v1990 = vsel %vm984, %v1926, %v1928
        %v1991 = vsel %vm984, %v1930, %v1932
        %v1992 = vsel %vm984, %v1932, %v1934
        %v1993 = vsel %vm984, %v1936, %v1938
        %v1994 = vsel %vm984, %v1938, %v1940
        %v1995 = vsel %vm984, %v1942, %v1944
        %v1996 = vsel %vm984, %v1944, %v1946
        %v1997 = vsel %vm984, %v1948, %v1950
        %v1998 = vsel %vm984, %v1950, %v1952
        %v1999 = vsel %vm984, %v1954, %v1956
        %v2000 = vsel %vm984, %v1956, %v1958
        %v2001 = vsel %vm984, %v1960, %v1962
        %v2002 = vsel %vm984, %v1962, %v1964
        %v2003 = vsel %vm984, %v1966, %v1968
        %v2004 = vsel %vm984, %v1968, %v1970
        %v2005 = vsel %vm984, %v1972, %v1974
        %v2006 = vsel %vm984, %v1974, %v1976
        %v2038 = vsel %vm802, %v1886, 0
        %2040 = vmatpush.msra.mxu0 0.0
        %2041 = vmatpush.msra.mxu0 %v2005
        %2042 = vmatpush.msra.mxu0 %v2003
        %2043 = vmatpush.msra.mxu0 %v2001
        %2044 = vmatpush.msra.mxu0 %v1999
        %2045 = vmatpush.msra.mxu0 %v1997
        %2046 = vmatpush.msra.mxu0 %v1995
        %2047 = vmatpush.msra.mxu0 %v1993
        %2048 = vmatpush.msra.mxu0 %v1991
        %2049 = vmatpush.msra.mxu0 %v1989
        %2050 = vmatpush.msra.mxu0 %v1987
        %2051 = vmatpush.msra.mxu0 %v1985
        %2052 = vmatpush.msra.mxu0 %v1983
        %2053 = vmatpush.msra.mxu0 %v1981
        %2054 = vmatpush.msra.mxu0 %v1979
        %2055 = vmatpush.msra.mxu0 %v1977
        %2056 = vmatmul.f32.gmra.mxu0 %v2038
        %v2057 = vpop.f32.mrf.mxu0
        %v2058 = vadd.f32 0.0, %v2057
        %2059 = vdwg.mxu0
        %2060 = vmatpush.msra.mxu0 0.0
        %2061 = vmatpush.msra.mxu0 %v2006
        %2062 = vmatpush.msra.mxu0 %v2004
        %2063 = vmatpush.msra.mxu0 %v2002
        %2064 = vmatpush.msra.mxu0 %v2000
        %2065 = vmatpush.msra.mxu0 %v1998
        %2066 = vmatpush.msra.mxu0 %v1996
        %2067 = vmatpush.msra.mxu0 %v1994
        %2068 = vmatpush.msra.mxu0 %v1992
        %2069 = vmatpush.msra.mxu0 %v1990
        %2070 = vmatpush.msra.mxu0 %v1988
        %2071 = vmatpush.msra.mxu0 %v1986
        %2072 = vmatpush.msra.mxu0 %v1984
        %2073 = vmatpush.msra.mxu0 %v1982
        %2074 = vmatpush.msra.mxu0 %v1980
        %2075 = vmatpush.msra.mxu0 %v1978
        %2076 = vmatmul.f32.gmra.mxu0 %v2038
        %v2077 = vpop.f32.mrf.mxu0
        %v2078 = vadd.f32 0.0, %v2077
        %2079 = vdwg.mxu0
        %v2080 = vadd.f32 %v1883, %v2058
        %v2081 = vadd.f32 %v1884, %v2078
        %s2082 = scalar_lea.vmem %s4, 16
        %v2083 = vld [vmem:[%s2082] sm:$0xff]
        %2084 = vrot.lane.b32.xlu0 %v1597, 111
        %v2085 = vpop.permute.xlu0 %2084
        %2086 = vrot.lane.b32.xlu0 %v1598, 111
        %v2087 = vpop.permute.xlu0 %2086
        %2088 = vrot.lane.b32.xlu0 %v1599, 111
        %v2089 = vpop.permute.xlu0 %2088
        %2090 = vrot.lane.b32.xlu0 %v1600, 111
        %v2091 = vpop.permute.xlu0 %2090
        %2092 = vrot.lane.b32.xlu0 %v1601, 111
        %v2093 = vpop.permute.xlu0 %2092
        %2094 = vrot.lane.b32.xlu0 %v1602, 111
        %v2095 = vpop.permute.xlu0 %2094
        %2096 = vrot.lane.b32.xlu0 %v1603, 111
        %v2097 = vpop.permute.xlu0 %2096
        %2098 = vrot.lane.b32.xlu0 %v1604, 111
        %v2099 = vpop.permute.xlu0 %2098
        %2100 = vrot.lane.b32.xlu0 %v1605, 111
        %v2101 = vpop.permute.xlu0 %2100
        %2102 = vrot.lane.b32.xlu0 %v1606, 111
        %v2103 = vpop.permute.xlu0 %2102
        %2104 = vrot.lane.b32.xlu0 %v1607, 111
        %v2105 = vpop.permute.xlu0 %2104
        %2106 = vrot.lane.b32.xlu0 %v1608, 111
        %v2107 = vpop.permute.xlu0 %2106
        %2108 = vrot.lane.b32.xlu0 %v1609, 111
        %v2109 = vpop.permute.xlu0 %2108
        %2110 = vrot.lane.b32.xlu0 %v1610, 111
        %v2111 = vpop.permute.xlu0 %2110
        %2112 = vrot.lane.b32.xlu0 %v1611, 111
        %v2113 = vpop.permute.xlu0 %2112
        %2114 = vrot.lane.b32.xlu0 %v1612, 111
        %v2115 = vpop.permute.xlu0 %2114
        %2116 = vrot.lane.b32.xlu0 %v1613, 111
        %v2117 = vpop.permute.xlu0 %2116
        %2118 = vrot.lane.b32.xlu0 %v1614, 111
        %v2119 = vpop.permute.xlu0 %2118
        %2120 = vrot.lane.b32.xlu0 %v1615, 111
        %v2121 = vpop.permute.xlu0 %2120
        %2122 = vrot.lane.b32.xlu0 %v1616, 111
        %v2123 = vpop.permute.xlu0 %2122
        %2124 = vrot.lane.b32.xlu0 %v1617, 111
        %v2125 = vpop.permute.xlu0 %2124
        %2126 = vrot.lane.b32.xlu0 %v1618, 111
        %v2127 = vpop.permute.xlu0 %2126
        %2128 = vrot.lane.b32.xlu0 %v1619, 111
        %v2129 = vpop.permute.xlu0 %2128
        %2130 = vrot.lane.b32.xlu0 %v1620, 111
        %v2131 = vpop.permute.xlu0 %2130
        %2132 = vrot.lane.b32.xlu0 %v1621, 111
        %v2133 = vpop.permute.xlu0 %2132
        %2134 = vrot.lane.b32.xlu0 %v1622, 111
        %v2135 = vpop.permute.xlu0 %2134
        %2136 = vrot.lane.b32.xlu0 %v1623, 111
        %v2137 = vpop.permute.xlu0 %2136
        %2138 = vrot.lane.b32.xlu0 %v1624, 111
        %v2139 = vpop.permute.xlu0 %2138
        %2140 = vrot.lane.b32.xlu0 %v1625, 111
        %v2141 = vpop.permute.xlu0 %2140
        %2142 = vrot.lane.b32.xlu0 %v1626, 111
        %v2143 = vpop.permute.xlu0 %2142
        %2144 = vrot.lane.b32.xlu0 %v1627, 111
        %v2145 = vpop.permute.xlu0 %2144
        %2146 = vrot.lane.b32.xlu0 %v1628, 111
        %v2147 = vpop.permute.xlu0 %2146
        %2148 = vrot.lane.b32.xlu0 %v1629, 111
        %v2149 = vpop.permute.xlu0 %2148
        %2150 = vrot.lane.b32.xlu0 %v1630, 111
        %v2151 = vpop.permute.xlu0 %2150
        %2152 = vrot.lane.b32.xlu0 %v1631, 111
        %v2153 = vpop.permute.xlu0 %2152
        %2154 = vrot.lane.b32.xlu0 %v1632, 111
        %v2155 = vpop.permute.xlu0 %2154
        %2156 = vrot.lane.b32.xlu0 %v1633, 111
        %v2157 = vpop.permute.xlu0 %2156
        %2158 = vrot.lane.b32.xlu0 %v1634, 111
        %v2159 = vpop.permute.xlu0 %2158
        %2160 = vrot.lane.b32.xlu0 %v1635, 111
        %v2161 = vpop.permute.xlu0 %2160
        %2162 = vrot.lane.b32.xlu0 %v1636, 111
        %v2163 = vpop.permute.xlu0 %2162
        %2164 = vrot.lane.b32.xlu0 %v1637, 111
        %v2165 = vpop.permute.xlu0 %2164
        %2166 = vrot.lane.b32.xlu0 %v1638, 111
        %v2167 = vpop.permute.xlu0 %2166
        %2168 = vrot.lane.b32.xlu0 %v1639, 111
        %v2169 = vpop.permute.xlu0 %2168
        %2170 = vrot.lane.b32.xlu0 %v1640, 111
        %v2171 = vpop.permute.xlu0 %2170
        %2172 = vrot.lane.b32.xlu0 %v1641, 111
        %v2173 = vpop.permute.xlu0 %2172
        %v2174 = vsel %vm1218, %v2085, %v2087
        %v2175 = vsel %vm1218, %v2087, %v2089
        %v2176 = vsel %vm1218, %v2091, %v2093
        %v2177 = vsel %vm1218, %v2093, %v2095
        %v2178 = vsel %vm1218, %v2097, %v2099
        %v2179 = vsel %vm1218, %v2099, %v2101
        %v2180 = vsel %vm1218, %v2103, %v2105
        %v2181 = vsel %vm1218, %v2105, %v2107
        %v2182 = vsel %vm1218, %v2109, %v2111
        %v2183 = vsel %vm1218, %v2111, %v2113
        %v2184 = vsel %vm1218, %v2115, %v2117
        %v2185 = vsel %vm1218, %v2117, %v2119
        %v2186 = vsel %vm1218, %v2121, %v2123
        %v2187 = vsel %vm1218, %v2123, %v2125
        %v2188 = vsel %vm1218, %v2127, %v2129
        %v2189 = vsel %vm1218, %v2129, %v2131
        %v2190 = vsel %vm1218, %v2133, %v2135
        %v2191 = vsel %vm1218, %v2135, %v2137
        %v2192 = vsel %vm1218, %v2139, %v2141
        %v2193 = vsel %vm1218, %v2141, %v2143
        %v2194 = vsel %vm1218, %v2145, %v2147
        %v2195 = vsel %vm1218, %v2147, %v2149
        %v2196 = vsel %vm1218, %v2151, %v2153
        %v2197 = vsel %vm1218, %v2153, %v2155
        %v2198 = vsel %vm1218, %v2157, %v2159
        %v2199 = vsel %vm1218, %v2159, %v2161
        %v2200 = vsel %vm1218, %v2163, %v2165
        %v2201 = vsel %vm1218, %v2165, %v2167
        %v2202 = vsel %vm1218, %v2169, %v2171
        %v2203 = vsel %vm1218, %v2171, %v2173
        %v2235 = vsel %vm802, %v2083, 0
        %2237 = vmatpush.msra.mxu0 0.0
        %2238 = vmatpush.msra.mxu0 %v2202
        %2239 = vmatpush.msra.mxu0 %v2200
        %2240 = vmatpush.msra.mxu0 %v2198
        %2241 = vmatpush.msra.mxu0 %v2196
        %2242 = vmatpush.msra.mxu0 %v2194
        %2243 = vmatpush.msra.mxu0 %v2192
        %2244 = vmatpush.msra.mxu0 %v2190
        %2245 = vmatpush.msra.mxu0 %v2188
        %2246 = vmatpush.msra.mxu0 %v2186
        %2247 = vmatpush.msra.mxu0 %v2184
        %2248 = vmatpush.msra.mxu0 %v2182
        %2249 = vmatpush.msra.mxu0 %v2180
        %2250 = vmatpush.msra.mxu0 %v2178
        %2251 = vmatpush.msra.mxu0 %v2176
        %2252 = vmatpush.msra.mxu0 %v2174
        %2253 = vmatmul.f32.gmra.mxu0 %v2235
        %v2254 = vpop.f32.mrf.mxu0
        %v2255 = vadd.f32 0.0, %v2254
        %2256 = vdwg.mxu0
        %2257 = vmatpush.msra.mxu0 0.0
        %2258 = vmatpush.msra.mxu0 %v2203
        %2259 = vmatpush.msra.mxu0 %v2201
        %2260 = vmatpush.msra.mxu0 %v2199
        %2261 = vmatpush.msra.mxu0 %v2197
        %2262 = vmatpush.msra.mxu0 %v2195
        %2263 = vmatpush.msra.mxu0 %v2193
        %2264 = vmatpush.msra.mxu0 %v2191
        %2265 = vmatpush.msra.mxu0 %v2189
        %2266 = vmatpush.msra.mxu0 %v2187
        %2267 = vmatpush.msra.mxu0 %v2185
        %2268 = vmatpush.msra.mxu0 %v2183
        %2269 = vmatpush.msra.mxu0 %v2181
        %2270 = vmatpush.msra.mxu0 %v2179
        %2271 = vmatpush.msra.mxu0 %v2177
        %2272 = vmatpush.msra.mxu0 %v2175
        %2273 = vmatmul.f32.gmra.mxu0 %v2235
        %v2274 = vpop.f32.mrf.mxu0
        %v2275 = vadd.f32 0.0, %v2274
        %2276 = vdwg.mxu0
        %v2277 = vmul.f32 %v2255, %v555
        %v2278 = vmul.f32 %v2275, %v556
        %v2279 = vadd.f32 %v2080, %v2277
        %v2280 = vadd.f32 %v2081, %v2278
        %v2283 = vrot.slane %v2280, 7
        %vm2284 = vcmask 1040384
        %v2285 = vsel %vm2284, %v2279, %v2283
        %v2287 = vadd.f32 %v380, %v2285
        %v2288 = vld [vmem:[%s5] sm:$0x1]
        %2290 = vset.pattern.permute.xlu0 0
        %2291 = vperm.xlu0 %2290, %v2288
        %v2292 = vpop.permute.xlu0 %2291
        %v2294 = vperm.slane %v2292, 0
        %v2295 = vadd.f32 %v2287, %v2294
        %2297 = vrot.lane.b32.xlu0 %v2295, 32
        %v2298 = vpop.permute.xlu0 %2297
        %v2299 = vrot.slane %v2298, 7
        %v2300 = vsel %vm308, %v2299, %v2298
        %2302 = vst.msk [vmem:[%s444] ss:$8 sm:$0x7] %vm443, %v2300
        %2303 = vst.msk [vmem:[%s444] ss:$8 sm:$0x0] %vm443, %v2300
        %2304 = vrot.lane.b32.xlu0 %v2295, 16
        %v2305 = vpop.permute.xlu0 %2304
        %v2306 = vrot.slane %v2305, 7
        %v2307 = vsel %vm463, %v2306, %v2305
        %2309 = vst.msk [vmem:[%s501] ss:$8 sm:$0x7] %vm500, %v2307
        %2310 = vst.msk [vmem:[%s501] ss:$8 sm:$0x0] %vm500, %v2307
        %2311 = vst.msk [vmem:[%s515] ss:$8 sm:$0x3] %vm514, %v2295
        %2312 = vst.msk [vmem:[%s515] ss:$8 sm:$0x0] %vm514, %v2295
        %v2313 = vld [vmem:[#allocation2] sm:$0xff]
        %v2314 = vld [vmem:[#allocation2 + $0x8] sm:$0xff]
        %v2315 = vld [vmem:[#allocation2 + $0x10] sm:$0xff]
        %v2316 = vld [vmem:[#allocation2 + $0x18] sm:$0xff]
        %v2317 = vld [vmem:[#allocation2 + $0x20] sm:$0xff]
        %v2318 = vld [vmem:[#allocation2 + $0x28] sm:$0xff]
        %v2319 = vld [vmem:[#allocation2 + $0x30] sm:$0xff]
        %v2320 = vld [vmem:[#allocation2 + $0x38] sm:$0xff]
        %v2321 = vld [vmem:[#allocation2 + $0x40] sm:$0xff]
        %v2322 = vld [vmem:[#allocation2 + $0x48] sm:$0xff]
        %v2323 = vld [vmem:[#allocation2 + $0x50] sm:$0xff]
        %v2324 = vld [vmem:[#allocation2 + $0x58] sm:$0xff]
        %v2325 = vld [vmem:[#allocation2 + $0x60] sm:$0xff]
        %v2326 = vld [vmem:[#allocation2 + $0x68] sm:$0xff]
        %v2327 = vld [vmem:[#allocation2 + $0x70] sm:$0xff]
        %v2328 = vld [vmem:[#allocation2 + $0x78] sm:$0xff]
        %v2329 = vld [vmem:[#allocation2 + $0x80] sm:$0xff]
        %v2330 = vld [vmem:[#allocation2 + $0x88] sm:$0xff]
        %v2331 = vld [vmem:[#allocation2 + $0x90] sm:$0xff]
        %v2332 = vld [vmem:[#allocation2 + $0x98] sm:$0xff]
        %v2333 = vld [vmem:[#allocation2 + $0xa0] sm:$0xff]
        %v2334 = vld [vmem:[#allocation2 + $0xa8] sm:$0xff]
        %v2335 = vld [vmem:[#allocation2 + $0xb0] sm:$0xff]
        %v2336 = vld [vmem:[#allocation2 + $0xb8] sm:$0xff]
        %v2337 = vld [vmem:[#allocation2 + $0xc0] sm:$0xff]
        %v2338 = vld [vmem:[#allocation2 + $0xc8] sm:$0xff]
        %v2339 = vld [vmem:[#allocation2 + $0xd0] sm:$0xff]
        %v2340 = vld [vmem:[#allocation2 + $0xd8] sm:$0xff]
        %v2341 = vld [vmem:[#allocation2 + $0xe0] sm:$0xff]
        %v2342 = vld [vmem:[#allocation2 + $0xe8] sm:$0xff]
        %v2343 = vld [vmem:[#allocation2 + $0xf0] sm:$0xff]
        %v2344 = vld [vmem:[#allocation2 + $0xf8] sm:$0xff]
        %v2345 = vld [vmem:[#allocation2 + $0x100] sm:$0xff]
        %v2346 = vld [vmem:[#allocation2 + $0x108] sm:$0xff]
        %v2347 = vld [vmem:[#allocation2 + $0x110] sm:$0xff]
        %v2348 = vld [vmem:[#allocation2 + $0x118] sm:$0xff]
        %v2349 = vld [vmem:[#allocation2 + $0x120] sm:$0xff]
        %v2350 = vld [vmem:[#allocation2 + $0x128] sm:$0xff]
        %v2351 = vld [vmem:[#allocation2 + $0x130] sm:$0xff]
        %v2352 = vld [vmem:[#allocation2 + $0x138] sm:$0xff]
        %v2353 = vld [vmem:[#allocation2 + $0x140] sm:$0xff]
        %v2354 = vld [vmem:[#allocation2 + $0x148] sm:$0xff]
        %v2355 = vld [vmem:[#allocation2 + $0x150] sm:$0xff]
        %v2356 = vld [vmem:[#allocation2 + $0x158] sm:$0xff]
        %v2357 = vld [vmem:[#allocation2 + $0x160] sm:$0xff]
        %s2358 = scalar_lea.vmem [#allocation6], 96
        %v2359 = vld [vmem:[%s2358] sm:$0xff]
        %v2360 = vld [vmem:[%s2358 + $0x8] sm:$0xff]
        %v2361 = vld [vmem:[%s2358 + $0x10] sm:$0xff]
        %v2362 = vld [vmem:[%s2358 + $0x18] sm:$0xff]
        %2408 = vrot.lane.b32.xlu0 %v2313, 113
        %v2409 = vpop.permute.xlu0 %2408
        %2410 = vrot.lane.b32.xlu0 %v2314, 113
        %v2411 = vpop.permute.xlu0 %2410
        %2412 = vrot.lane.b32.xlu0 %v2315, 113
        %v2413 = vpop.permute.xlu0 %2412
        %2414 = vrot.lane.b32.xlu0 %v2316, 113
        %v2415 = vpop.permute.xlu0 %2414
        %2416 = vrot.lane.b32.xlu0 %v2317, 113
        %v2417 = vpop.permute.xlu0 %2416
        %2418 = vrot.lane.b32.xlu0 %v2318, 113
        %v2419 = vpop.permute.xlu0 %2418
        %2420 = vrot.lane.b32.xlu0 %v2319, 113
        %v2421 = vpop.permute.xlu0 %2420
        %2422 = vrot.lane.b32.xlu0 %v2320, 113
        %v2423 = vpop.permute.xlu0 %2422
        %2424 = vrot.lane.b32.xlu0 %v2321, 113
        %v2425 = vpop.permute.xlu0 %2424
        %2426 = vrot.lane.b32.xlu0 %v2322, 113
        %v2427 = vpop.permute.xlu0 %2426
        %2428 = vrot.lane.b32.xlu0 %v2323, 113
        %v2429 = vpop.permute.xlu0 %2428
        %2430 = vrot.lane.b32.xlu0 %v2324, 113
        %v2431 = vpop.permute.xlu0 %2430
        %2432 = vrot.lane.b32.xlu0 %v2325, 113
        %v2433 = vpop.permute.xlu0 %2432
        %2434 = vrot.lane.b32.xlu0 %v2326, 113
        %v2435 = vpop.permute.xlu0 %2434
        %2436 = vrot.lane.b32.xlu0 %v2327, 113
        %v2437 = vpop.permute.xlu0 %2436
        %2438 = vrot.lane.b32.xlu0 %v2328, 113
        %v2439 = vpop.permute.xlu0 %2438
        %2440 = vrot.lane.b32.xlu0 %v2329, 113
        %v2441 = vpop.permute.xlu0 %2440
        %2442 = vrot.lane.b32.xlu0 %v2330, 113
        %v2443 = vpop.permute.xlu0 %2442
        %2444 = vrot.lane.b32.xlu0 %v2331, 113
        %v2445 = vpop.permute.xlu0 %2444
        %2446 = vrot.lane.b32.xlu0 %v2332, 113
        %v2447 = vpop.permute.xlu0 %2446
        %2448 = vrot.lane.b32.xlu0 %v2333, 113
        %v2449 = vpop.permute.xlu0 %2448
        %2450 = vrot.lane.b32.xlu0 %v2334, 113
        %v2451 = vpop.permute.xlu0 %2450
        %2452 = vrot.lane.b32.xlu0 %v2335, 113
        %v2453 = vpop.permute.xlu0 %2452
        %2454 = vrot.lane.b32.xlu0 %v2336, 113
        %v2455 = vpop.permute.xlu0 %2454
        %2456 = vrot.lane.b32.xlu0 %v2337, 113
        %v2457 = vpop.permute.xlu0 %2456
        %2458 = vrot.lane.b32.xlu0 %v2338, 113
        %v2459 = vpop.permute.xlu0 %2458
        %2460 = vrot.lane.b32.xlu0 %v2339, 113
        %v2461 = vpop.permute.xlu0 %2460
        %2462 = vrot.lane.b32.xlu0 %v2340, 113
        %v2463 = vpop.permute.xlu0 %2462
        %2464 = vrot.lane.b32.xlu0 %v2341, 113
        %v2465 = vpop.permute.xlu0 %2464
        %2466 = vrot.lane.b32.xlu0 %v2342, 113
        %v2467 = vpop.permute.xlu0 %2466
        %2468 = vrot.lane.b32.xlu0 %v2343, 113
        %v2469 = vpop.permute.xlu0 %2468
        %2470 = vrot.lane.b32.xlu0 %v2344, 113
        %v2471 = vpop.permute.xlu0 %2470
        %2472 = vrot.lane.b32.xlu0 %v2345, 113
        %v2473 = vpop.permute.xlu0 %2472
        %2474 = vrot.lane.b32.xlu0 %v2346, 113
        %v2475 = vpop.permute.xlu0 %2474
        %2476 = vrot.lane.b32.xlu0 %v2347, 113
        %v2477 = vpop.permute.xlu0 %2476
        %2478 = vrot.lane.b32.xlu0 %v2348, 113
        %v2479 = vpop.permute.xlu0 %2478
        %2480 = vrot.lane.b32.xlu0 %v2349, 113
        %v2481 = vpop.permute.xlu0 %2480
        %2482 = vrot.lane.b32.xlu0 %v2350, 113
        %v2483 = vpop.permute.xlu0 %2482
        %2484 = vrot.lane.b32.xlu0 %v2351, 113
        %v2485 = vpop.permute.xlu0 %2484
        %2486 = vrot.lane.b32.xlu0 %v2352, 113
        %v2487 = vpop.permute.xlu0 %2486
        %2488 = vrot.lane.b32.xlu0 %v2353, 113
        %v2489 = vpop.permute.xlu0 %2488
        %2490 = vrot.lane.b32.xlu0 %v2354, 113
        %v2491 = vpop.permute.xlu0 %2490
        %2492 = vrot.lane.b32.xlu0 %v2355, 113
        %v2493 = vpop.permute.xlu0 %2492
        %2494 = vrot.lane.b32.xlu0 %v2356, 113
        %v2495 = vpop.permute.xlu0 %2494
        %2496 = vrot.lane.b32.xlu0 %v2357, 113
        %v2497 = vpop.permute.xlu0 %2496
        %v2498 = vsel %vm741, %v2409, %v2411
        %v2499 = vsel %vm741, %v2411, %v2413
        %v2500 = vsel %vm741, %v2415, %v2417
        %v2501 = vsel %vm741, %v2417, %v2419
        %v2502 = vsel %vm741, %v2421, %v2423
        %v2503 = vsel %vm741, %v2423, %v2425
        %v2504 = vsel %vm741, %v2427, %v2429
        %v2505 = vsel %vm741, %v2429, %v2431
        %v2506 = vsel %vm741, %v2433, %v2435
        %v2507 = vsel %vm741, %v2435, %v2437
        %v2508 = vsel %vm741, %v2439, %v2441
        %v2509 = vsel %vm741, %v2441, %v2443
        %v2510 = vsel %vm741, %v2445, %v2447
        %v2511 = vsel %vm741, %v2447, %v2449
        %v2512 = vsel %vm741, %v2451, %v2453
        %v2513 = vsel %vm741, %v2453, %v2455
        %v2514 = vsel %vm741, %v2457, %v2459
        %v2515 = vsel %vm741, %v2459, %v2461
        %v2516 = vsel %vm741, %v2463, %v2465
        %v2517 = vsel %vm741, %v2465, %v2467
        %v2518 = vsel %vm741, %v2469, %v2471
        %v2519 = vsel %vm741, %v2471, %v2473
        %v2520 = vsel %vm741, %v2475, %v2477
        %v2521 = vsel %vm741, %v2477, %v2479
        %v2522 = vsel %vm741, %v2481, %v2483
        %v2523 = vsel %vm741, %v2483, %v2485
        %v2524 = vsel %vm741, %v2487, %v2489
        %v2525 = vsel %vm741, %v2489, %v2491
        %v2526 = vsel %vm741, %v2493, %v2495
        %v2527 = vsel %vm741, %v2495, %v2497
        %v2559 = vsel %vm802, %v2359, 0
        %v2562 = vsel %vm802, %v2360, 0
        %v2565 = vsel %vm802, %v2361, 0
        %v2568 = vsel %vm802, %v2362, 0
        %2570 = vmatpush.msra.mxu0 0.0
        %2571 = vmatpush.msra.mxu0 %v2526
        %2572 = vmatpush.msra.mxu0 %v2524
        %2573 = vmatpush.msra.mxu0 %v2522
        %2574 = vmatpush.msra.mxu0 %v2520
        %2575 = vmatpush.msra.mxu0 %v2518
        %2576 = vmatpush.msra.mxu0 %v2516
        %2577 = vmatpush.msra.mxu0 %v2514
        %2578 = vmatpush.msra.mxu0 %v2512
        %2579 = vmatpush.msra.mxu0 %v2510
        %2580 = vmatpush.msra.mxu0 %v2508
        %2581 = vmatpush.msra.mxu0 %v2506
        %2582 = vmatpush.msra.mxu0 %v2504
        %2583 = vmatpush.msra.mxu0 %v2502
        %2584 = vmatpush.msra.mxu0 %v2500
        %2585 = vmatpush.msra.mxu0 %v2498
        %2586 = vmatmul.f32.gmra.mxu0 %v2559
        %v2587 = vpop.f32.mrf.mxu0
        %v2588 = vadd.f32 0.0, %v2587
        %2589 = vmatmul.f32.gmra.mxu0 %v2562
        %v2590 = vpop.f32.mrf.mxu0
        %v2591 = vadd.f32 0.0, %v2590
        %2592 = vmatmul.f32.gmra.mxu0 %v2565
        %v2593 = vpop.f32.mrf.mxu0
        %v2594 = vadd.f32 0.0, %v2593
        %2595 = vmatmul.f32.gmra.mxu0 %v2568
        %v2596 = vpop.f32.mrf.mxu0
        %v2597 = vadd.f32 0.0, %v2596
        %2598 = vdwg.mxu0
        %2599 = vmatpush.msra.mxu0 0.0
        %2600 = vmatpush.msra.mxu0 %v2527
        %2601 = vmatpush.msra.mxu0 %v2525
        %2602 = vmatpush.msra.mxu0 %v2523
        %2603 = vmatpush.msra.mxu0 %v2521
        %2604 = vmatpush.msra.mxu0 %v2519
        %2605 = vmatpush.msra.mxu0 %v2517
        %2606 = vmatpush.msra.mxu0 %v2515
        %2607 = vmatpush.msra.mxu0 %v2513
        %2608 = vmatpush.msra.mxu0 %v2511
        %2609 = vmatpush.msra.mxu0 %v2509
        %2610 = vmatpush.msra.mxu0 %v2507
        %2611 = vmatpush.msra.mxu0 %v2505
        %2612 = vmatpush.msra.mxu0 %v2503
        %2613 = vmatpush.msra.mxu0 %v2501
        %2614 = vmatpush.msra.mxu0 %v2499
        %2615 = vmatmul.f32.gmra.mxu0 %v2559
        %v2616 = vpop.f32.mrf.mxu0
        %v2617 = vadd.f32 0.0, %v2616
        %2618 = vmatmul.f32.gmra.mxu0 %v2562
        %v2619 = vpop.f32.mrf.mxu0
        %v2620 = vadd.f32 0.0, %v2619
        %2621 = vmatmul.f32.gmra.mxu0 %v2565
        %v2622 = vpop.f32.mrf.mxu0
        %v2623 = vadd.f32 0.0, %v2622
        %2624 = vmatmul.f32.gmra.mxu0 %v2568
        %v2625 = vpop.f32.mrf.mxu0
        %v2626 = vadd.f32 0.0, %v2625
        %2627 = vdwg.mxu0
        %v2628 = vmul.f32 %v2588, %v549
        %v2629 = vmul.f32 %v2617, %v550
        %v2630 = vmul.f32 %v2591, %v549
        %v2631 = vmul.f32 %v2620, %v550
        %v2632 = vmul.f32 %v2594, %v549
        %v2633 = vmul.f32 %v2623, %v550
        %v2634 = vmul.f32 %v2597, %v549
        %v2635 = vmul.f32 %v2626, %v550
        %v2636 = vadd.f32 %v2628, 0.0
        %v2637 = vadd.f32 %v2629, 0.0
        %v2638 = vadd.f32 %v2630, 0.0
        %v2639 = vadd.f32 %v2631, 0.0
        %v2640 = vadd.f32 %v2632, 0.0
        %v2641 = vadd.f32 %v2633, 0.0
        %v2642 = vadd.f32 %v2634, 0.0
        %v2643 = vadd.f32 %v2635, 0.0
        %s2644 = scalar_lea.vmem [#allocation6], 128
        %v2645 = vld [vmem:[%s2644] sm:$0xff]
        %v2646 = vld [vmem:[%s2644 + $0x8] sm:$0xff]
        %v2647 = vld [vmem:[%s2644 + $0x10] sm:$0xff]
        %v2648 = vld [vmem:[%s2644 + $0x18] sm:$0xff]
        %2649 = vrot.lane.b32.xlu0 %v2313, 112
        %v2650 = vpop.permute.xlu0 %2649
        %2651 = vrot.lane.b32.xlu0 %v2314, 112
        %v2652 = vpop.permute.xlu0 %2651
        %2653 = vrot.lane.b32.xlu0 %v2315, 112
        %v2654 = vpop.permute.xlu0 %2653
        %2655 = vrot.lane.b32.xlu0 %v2316, 112
        %v2656 = vpop.permute.xlu0 %2655
        %2657 = vrot.lane.b32.xlu0 %v2317, 112
        %v2658 = vpop.permute.xlu0 %2657
        %2659 = vrot.lane.b32.xlu0 %v2318, 112
        %v2660 = vpop.permute.xlu0 %2659
        %2661 = vrot.lane.b32.xlu0 %v2319, 112
        %v2662 = vpop.permute.xlu0 %2661
        %2663 = vrot.lane.b32.xlu0 %v2320, 112
        %v2664 = vpop.permute.xlu0 %2663
        %2665 = vrot.lane.b32.xlu0 %v2321, 112
        %v2666 = vpop.permute.xlu0 %2665
        %2667 = vrot.lane.b32.xlu0 %v2322, 112
        %v2668 = vpop.permute.xlu0 %2667
        %2669 = vrot.lane.b32.xlu0 %v2323, 112
        %v2670 = vpop.permute.xlu0 %2669
        %2671 = vrot.lane.b32.xlu0 %v2324, 112
        %v2672 = vpop.permute.xlu0 %2671
        %2673 = vrot.lane.b32.xlu0 %v2325, 112
        %v2674 = vpop.permute.xlu0 %2673
        %2675 = vrot.lane.b32.xlu0 %v2326, 112
        %v2676 = vpop.permute.xlu0 %2675
        %2677 = vrot.lane.b32.xlu0 %v2327, 112
        %v2678 = vpop.permute.xlu0 %2677
        %2679 = vrot.lane.b32.xlu0 %v2328, 112
        %v2680 = vpop.permute.xlu0 %2679
        %2681 = vrot.lane.b32.xlu0 %v2329, 112
        %v2682 = vpop.permute.xlu0 %2681
        %2683 = vrot.lane.b32.xlu0 %v2330, 112
        %v2684 = vpop.permute.xlu0 %2683
        %2685 = vrot.lane.b32.xlu0 %v2331, 112
        %v2686 = vpop.permute.xlu0 %2685
        %2687 = vrot.lane.b32.xlu0 %v2332, 112
        %v2688 = vpop.permute.xlu0 %2687
        %2689 = vrot.lane.b32.xlu0 %v2333, 112
        %v2690 = vpop.permute.xlu0 %2689
        %2691 = vrot.lane.b32.xlu0 %v2334, 112
        %v2692 = vpop.permute.xlu0 %2691
        %2693 = vrot.lane.b32.xlu0 %v2335, 112
        %v2694 = vpop.permute.xlu0 %2693
        %2695 = vrot.lane.b32.xlu0 %v2336, 112
        %v2696 = vpop.permute.xlu0 %2695
        %2697 = vrot.lane.b32.xlu0 %v2337, 112
        %v2698 = vpop.permute.xlu0 %2697
        %2699 = vrot.lane.b32.xlu0 %v2338, 112
        %v2700 = vpop.permute.xlu0 %2699
        %2701 = vrot.lane.b32.xlu0 %v2339, 112
        %v2702 = vpop.permute.xlu0 %2701
        %2703 = vrot.lane.b32.xlu0 %v2340, 112
        %v2704 = vpop.permute.xlu0 %2703
        %2705 = vrot.lane.b32.xlu0 %v2341, 112
        %v2706 = vpop.permute.xlu0 %2705
        %2707 = vrot.lane.b32.xlu0 %v2342, 112
        %v2708 = vpop.permute.xlu0 %2707
        %2709 = vrot.lane.b32.xlu0 %v2343, 112
        %v2710 = vpop.permute.xlu0 %2709
        %2711 = vrot.lane.b32.xlu0 %v2344, 112
        %v2712 = vpop.permute.xlu0 %2711
        %2713 = vrot.lane.b32.xlu0 %v2345, 112
        %v2714 = vpop.permute.xlu0 %2713
        %2715 = vrot.lane.b32.xlu0 %v2346, 112
        %v2716 = vpop.permute.xlu0 %2715
        %2717 = vrot.lane.b32.xlu0 %v2347, 112
        %v2718 = vpop.permute.xlu0 %2717
        %2719 = vrot.lane.b32.xlu0 %v2348, 112
        %v2720 = vpop.permute.xlu0 %2719
        %2721 = vrot.lane.b32.xlu0 %v2349, 112
        %v2722 = vpop.permute.xlu0 %2721
        %2723 = vrot.lane.b32.xlu0 %v2350, 112
        %v2724 = vpop.permute.xlu0 %2723
        %2725 = vrot.lane.b32.xlu0 %v2351, 112
        %v2726 = vpop.permute.xlu0 %2725
        %2727 = vrot.lane.b32.xlu0 %v2352, 112
        %v2728 = vpop.permute.xlu0 %2727
        %2729 = vrot.lane.b32.xlu0 %v2353, 112
        %v2730 = vpop.permute.xlu0 %2729
        %2731 = vrot.lane.b32.xlu0 %v2354, 112
        %v2732 = vpop.permute.xlu0 %2731
        %2733 = vrot.lane.b32.xlu0 %v2355, 112
        %v2734 = vpop.permute.xlu0 %2733
        %2735 = vrot.lane.b32.xlu0 %v2356, 112
        %v2736 = vpop.permute.xlu0 %2735
        %2737 = vrot.lane.b32.xlu0 %v2357, 112
        %v2738 = vpop.permute.xlu0 %2737
        %v2739 = vsel %vm984, %v2650, %v2652
        %v2740 = vsel %vm984, %v2652, %v2654
        %v2741 = vsel %vm984, %v2656, %v2658
        %v2742 = vsel %vm984, %v2658, %v2660
        %v2743 = vsel %vm984, %v2662, %v2664
        %v2744 = vsel %vm984, %v2664, %v2666
        %v2745 = vsel %vm984, %v2668, %v2670
        %v2746 = vsel %vm984, %v2670, %v2672
        %v2747 = vsel %vm984, %v2674, %v2676
        %v2748 = vsel %vm984, %v2676, %v2678
        %v2749 = vsel %vm984, %v2680, %v2682
        %v2750 = vsel %vm984, %v2682, %v2684
        %v2751 = vsel %vm984, %v2686, %v2688
        %v2752 = vsel %vm984, %v2688, %v2690
        %v2753 = vsel %vm984, %v2692, %v2694
        %v2754 = vsel %vm984, %v2694, %v2696
        %v2755 = vsel %vm984, %v2698, %v2700
        %v2756 = vsel %vm984, %v2700, %v2702
        %v2757 = vsel %vm984, %v2704, %v2706
        %v2758 = vsel %vm984, %v2706, %v2708
        %v2759 = vsel %vm984, %v2710, %v2712
        %v2760 = vsel %vm984, %v2712, %v2714
        %v2761 = vsel %vm984, %v2716, %v2718
        %v2762 = vsel %vm984, %v2718, %v2720
        %v2763 = vsel %vm984, %v2722, %v2724
        %v2764 = vsel %vm984, %v2724, %v2726
        %v2765 = vsel %vm984, %v2728, %v2730
        %v2766 = vsel %vm984, %v2730, %v2732
        %v2767 = vsel %vm984, %v2734, %v2736
        %v2768 = vsel %vm984, %v2736, %v2738
        %v2800 = vsel %vm802, %v2645, 0
        %v2803 = vsel %vm802, %v2646, 0
        %v2806 = vsel %vm802, %v2647, 0
        %v2809 = vsel %vm802, %v2648, 0
        %2811 = vmatpush.msra.mxu0 0.0
        %2812 = vmatpush.msra.mxu0 %v2767
        %2813 = vmatpush.msra.mxu0 %v2765
        %2814 = vmatpush.msra.mxu0 %v2763
        %2815 = vmatpush.msra.mxu0 %v2761
        %2816 = vmatpush.msra.mxu0 %v2759
        %2817 = vmatpush.msra.mxu0 %v2757
        %2818 = vmatpush.msra.mxu0 %v2755
        %2819 = vmatpush.msra.mxu0 %v2753
        %2820 = vmatpush.msra.mxu0 %v2751
        %2821 = vmatpush.msra.mxu0 %v2749
        %2822 = vmatpush.msra.mxu0 %v2747
        %2823 = vmatpush.msra.mxu0 %v2745
        %2824 = vmatpush.msra.mxu0 %v2743
        %2825 = vmatpush.msra.mxu0 %v2741
        %2826 = vmatpush.msra.mxu0 %v2739
        %2827 = vmatmul.f32.gmra.mxu0 %v2800
        %v2828 = vpop.f32.mrf.mxu0
        %v2829 = vadd.f32 0.0, %v2828
        %2830 = vmatmul.f32.gmra.mxu0 %v2803
        %v2831 = vpop.f32.mrf.mxu0
        %v2832 = vadd.f32 0.0, %v2831
        %2833 = vmatmul.f32.gmra.mxu0 %v2806
        %v2834 = vpop.f32.mrf.mxu0
        %v2835 = vadd.f32 0.0, %v2834
        %2836 = vmatmul.f32.gmra.mxu0 %v2809
        %v2837 = vpop.f32.mrf.mxu0
        %v2838 = vadd.f32 0.0, %v2837
        %2839 = vdwg.mxu0
        %2840 = vmatpush.msra.mxu0 0.0
        %2841 = vmatpush.msra.mxu0 %v2768
        %2842 = vmatpush.msra.mxu0 %v2766
        %2843 = vmatpush.msra.mxu0 %v2764
        %2844 = vmatpush.msra.mxu0 %v2762
        %2845 = vmatpush.msra.mxu0 %v2760
        %2846 = vmatpush.msra.mxu0 %v2758
        %2847 = vmatpush.msra.mxu0 %v2756
        %2848 = vmatpush.msra.mxu0 %v2754
        %2849 = vmatpush.msra.mxu0 %v2752
        %2850 = vmatpush.msra.mxu0 %v2750
        %2851 = vmatpush.msra.mxu0 %v2748
        %2852 = vmatpush.msra.mxu0 %v2746
        %2853 = vmatpush.msra.mxu0 %v2744
        %2854 = vmatpush.msra.mxu0 %v2742
        %2855 = vmatpush.msra.mxu0 %v2740
        %2856 = vmatmul.f32.gmra.mxu0 %v2800
        %v2857 = vpop.f32.mrf.mxu0
        %v2858 = vadd.f32 0.0, %v2857
        %2859 = vmatmul.f32.gmra.mxu0 %v2803
        %v2860 = vpop.f32.mrf.mxu0
        %v2861 = vadd.f32 0.0, %v2860
        %2862 = vmatmul.f32.gmra.mxu0 %v2806
        %v2863 = vpop.f32.mrf.mxu0
        %v2864 = vadd.f32 0.0, %v2863
        %2865 = vmatmul.f32.gmra.mxu0 %v2809
        %v2866 = vpop.f32.mrf.mxu0
        %v2867 = vadd.f32 0.0, %v2866
        %2868 = vdwg.mxu0
        %v2869 = vadd.f32 %v2636, %v2829
        %v2870 = vadd.f32 %v2637, %v2858
        %v2871 = vadd.f32 %v2638, %v2832
        %v2872 = vadd.f32 %v2639, %v2861
        %v2873 = vadd.f32 %v2640, %v2835
        %v2874 = vadd.f32 %v2641, %v2864
        %v2875 = vadd.f32 %v2642, %v2838
        %v2876 = vadd.f32 %v2643, %v2867
        %s2877 = scalar_lea.vmem [#allocation6], 160
        %v2878 = vld [vmem:[%s2877] sm:$0xff]
        %v2879 = vld [vmem:[%s2877 + $0x8] sm:$0xff]
        %v2880 = vld [vmem:[%s2877 + $0x10] sm:$0xff]
        %v2881 = vld [vmem:[%s2877 + $0x18] sm:$0xff]
        %2882 = vrot.lane.b32.xlu0 %v2313, 111
        %v2883 = vpop.permute.xlu0 %2882
        %2884 = vrot.lane.b32.xlu0 %v2314, 111
        %v2885 = vpop.permute.xlu0 %2884
        %2886 = vrot.lane.b32.xlu0 %v2315, 111
        %v2887 = vpop.permute.xlu0 %2886
        %2888 = vrot.lane.b32.xlu0 %v2316, 111
        %v2889 = vpop.permute.xlu0 %2888
        %2890 = vrot.lane.b32.xlu0 %v2317, 111
        %v2891 = vpop.permute.xlu0 %2890
        %2892 = vrot.lane.b32.xlu0 %v2318, 111
        %v2893 = vpop.permute.xlu0 %2892
        %2894 = vrot.lane.b32.xlu0 %v2319, 111
        %v2895 = vpop.permute.xlu0 %2894
        %2896 = vrot.lane.b32.xlu0 %v2320, 111
        %v2897 = vpop.permute.xlu0 %2896
        %2898 = vrot.lane.b32.xlu0 %v2321, 111
        %v2899 = vpop.permute.xlu0 %2898
        %2900 = vrot.lane.b32.xlu0 %v2322, 111
        %v2901 = vpop.permute.xlu0 %2900
        %2902 = vrot.lane.b32.xlu0 %v2323, 111
        %v2903 = vpop.permute.xlu0 %2902
        %2904 = vrot.lane.b32.xlu0 %v2324, 111
        %v2905 = vpop.permute.xlu0 %2904
        %2906 = vrot.lane.b32.xlu0 %v2325, 111
        %v2907 = vpop.permute.xlu0 %2906
        %2908 = vrot.lane.b32.xlu0 %v2326, 111
        %v2909 = vpop.permute.xlu0 %2908
        %2910 = vrot.lane.b32.xlu0 %v2327, 111
        %v2911 = vpop.permute.xlu0 %2910
        %2912 = vrot.lane.b32.xlu0 %v2328, 111
        %v2913 = vpop.permute.xlu0 %2912
        %2914 = vrot.lane.b32.xlu0 %v2329, 111
        %v2915 = vpop.permute.xlu0 %2914
        %2916 = vrot.lane.b32.xlu0 %v2330, 111
        %v2917 = vpop.permute.xlu0 %2916
        %2918 = vrot.lane.b32.xlu0 %v2331, 111
        %v2919 = vpop.permute.xlu0 %2918
        %2920 = vrot.lane.b32.xlu0 %v2332, 111
        %v2921 = vpop.permute.xlu0 %2920
        %2922 = vrot.lane.b32.xlu0 %v2333, 111
        %v2923 = vpop.permute.xlu0 %2922
        %2924 = vrot.lane.b32.xlu0 %v2334, 111
        %v2925 = vpop.permute.xlu0 %2924
        %2926 = vrot.lane.b32.xlu0 %v2335, 111
        %v2927 = vpop.permute.xlu0 %2926
        %2928 = vrot.lane.b32.xlu0 %v2336, 111
        %v2929 = vpop.permute.xlu0 %2928
        %2930 = vrot.lane.b32.xlu0 %v2337, 111
        %v2931 = vpop.permute.xlu0 %2930
        %2932 = vrot.lane.b32.xlu0 %v2338, 111
        %v2933 = vpop.permute.xlu0 %2932
        %2934 = vrot.lane.b32.xlu0 %v2339, 111
        %v2935 = vpop.permute.xlu0 %2934
        %2936 = vrot.lane.b32.xlu0 %v2340, 111
        %v2937 = vpop.permute.xlu0 %2936
        %2938 = vrot.lane.b32.xlu0 %v2341, 111
        %v2939 = vpop.permute.xlu0 %2938
        %2940 = vrot.lane.b32.xlu0 %v2342, 111
        %v2941 = vpop.permute.xlu0 %2940
        %2942 = vrot.lane.b32.xlu0 %v2343, 111
        %v2943 = vpop.permute.xlu0 %2942
        %2944 = vrot.lane.b32.xlu0 %v2344, 111
        %v2945 = vpop.permute.xlu0 %2944
        %2946 = vrot.lane.b32.xlu0 %v2345, 111
        %v2947 = vpop.permute.xlu0 %2946
        %2948 = vrot.lane.b32.xlu0 %v2346, 111
        %v2949 = vpop.permute.xlu0 %2948
        %2950 = vrot.lane.b32.xlu0 %v2347, 111
        %v2951 = vpop.permute.xlu0 %2950
        %2952 = vrot.lane.b32.xlu0 %v2348, 111
        %v2953 = vpop.permute.xlu0 %2952
        %2954 = vrot.lane.b32.xlu0 %v2349, 111
        %v2955 = vpop.permute.xlu0 %2954
        %2956 = vrot.lane.b32.xlu0 %v2350, 111
        %v2957 = vpop.permute.xlu0 %2956
        %2958 = vrot.lane.b32.xlu0 %v2351, 111
        %v2959 = vpop.permute.xlu0 %2958
        %2960 = vrot.lane.b32.xlu0 %v2352, 111
        %v2961 = vpop.permute.xlu0 %2960
        %2962 = vrot.lane.b32.xlu0 %v2353, 111
        %v2963 = vpop.permute.xlu0 %2962
        %2964 = vrot.lane.b32.xlu0 %v2354, 111
        %v2965 = vpop.permute.xlu0 %2964
        %2966 = vrot.lane.b32.xlu0 %v2355, 111
        %v2967 = vpop.permute.xlu0 %2966
        %2968 = vrot.lane.b32.xlu0 %v2356, 111
        %v2969 = vpop.permute.xlu0 %2968
        %2970 = vrot.lane.b32.xlu0 %v2357, 111
        %v2971 = vpop.permute.xlu0 %2970
        %v2972 = vsel %vm1218, %v2883, %v2885
        %v2973 = vsel %vm1218, %v2885, %v2887
        %v2974 = vsel %vm1218, %v2889, %v2891
        %v2975 = vsel %vm1218, %v2891, %v2893
        %v2976 = vsel %vm1218, %v2895, %v2897
        %v2977 = vsel %vm1218, %v2897, %v2899
        %v2978 = vsel %vm1218, %v2901, %v2903
        %v2979 = vsel %vm1218, %v2903, %v2905
        %v2980 = vsel %vm1218, %v2907, %v2909
        %v2981 = vsel %vm1218, %v2909, %v2911
        %v2982 = vsel %vm1218, %v2913, %v2915
        %v2983 = vsel %vm1218, %v2915, %v2917
        %v2984 = vsel %vm1218, %v2919, %v2921
        %v2985 = vsel %vm1218, %v2921, %v2923
        %v2986 = vsel %vm1218, %v2925, %v2927
        %v2987 = vsel %vm1218, %v2927, %v2929
        %v2988 = vsel %vm1218, %v2931, %v2933
        %v2989 = vsel %vm1218, %v2933, %v2935
        %v2990 = vsel %vm1218, %v2937, %v2939
        %v2991 = vsel %vm1218, %v2939, %v2941
        %v2992 = vsel %vm1218, %v2943, %v2945
        %v2993 = vsel %vm1218, %v2945, %v2947
        %v2994 = vsel %vm1218, %v2949, %v2951
        %v2995 = vsel %vm1218, %v2951, %v2953
        %v2996 = vsel %vm1218, %v2955, %v2957
        %v2997 = vsel %vm1218, %v2957, %v2959
        %v2998 = vsel %vm1218, %v2961, %v2963
        %v2999 = vsel %vm1218, %v2963, %v2965
        %v3000 = vsel %vm1218, %v2967, %v2969
        %v3001 = vsel %vm1218, %v2969, %v2971
        %v3033 = vsel %vm802, %v2878, 0
        %v3036 = vsel %vm802, %v2879, 0
        %v3039 = vsel %vm802, %v2880, 0
        %v3042 = vsel %vm802, %v2881, 0
        %3044 = vmatpush.msra.mxu0 0.0
        %3045 = vmatpush.msra.mxu0 %v3000
        %3046 = vmatpush.msra.mxu0 %v2998
        %3047 = vmatpush.msra.mxu0 %v2996
        %3048 = vmatpush.msra.mxu0 %v2994
        %3049 = vmatpush.msra.mxu0 %v2992
        %3050 = vmatpush.msra.mxu0 %v2990
        %3051 = vmatpush.msra.mxu0 %v2988
        %3052 = vmatpush.msra.mxu0 %v2986
        %3053 = vmatpush.msra.mxu0 %v2984
        %3054 = vmatpush.msra.mxu0 %v2982
        %3055 = vmatpush.msra.mxu0 %v2980
        %3056 = vmatpush.msra.mxu0 %v2978
        %3057 = vmatpush.msra.mxu0 %v2976
        %3058 = vmatpush.msra.mxu0 %v2974
        %3059 = vmatpush.msra.mxu0 %v2972
        %3060 = vmatmul.f32.gmra.mxu0 %v3033
        %v3061 = vpop.f32.mrf.mxu0
        %v3062 = vadd.f32 0.0, %v3061
        %3063 = vmatmul.f32.gmra.mxu0 %v3036
        %v3064 = vpop.f32.mrf.mxu0
        %v3065 = vadd.f32 0.0, %v3064
        %3066 = vmatmul.f32.gmra.mxu0 %v3039
        %v3067 = vpop.f32.mrf.mxu0
        %v3068 = vadd.f32 0.0, %v3067
        %3069 = vmatmul.f32.gmra.mxu0 %v3042
        %v3070 = vpop.f32.mrf.mxu0
        %v3071 = vadd.f32 0.0, %v3070
        %3072 = vdwg.mxu0
        %3073 = vmatpush.msra.mxu0 0.0
        %3074 = vmatpush.msra.mxu0 %v3001
        %3075 = vmatpush.msra.mxu0 %v2999
        %3076 = vmatpush.msra.mxu0 %v2997
        %3077 = vmatpush.msra.mxu0 %v2995
        %3078 = vmatpush.msra.mxu0 %v2993
        %3079 = vmatpush.msra.mxu0 %v2991
        %3080 = vmatpush.msra.mxu0 %v2989
        %3081 = vmatpush.msra.mxu0 %v2987
        %3082 = vmatpush.msra.mxu0 %v2985
        %3083 = vmatpush.msra.mxu0 %v2983
        %3084 = vmatpush.msra.mxu0 %v2981
        %3085 = vmatpush.msra.mxu0 %v2979
        %3086 = vmatpush.msra.mxu0 %v2977
        %3087 = vmatpush.msra.mxu0 %v2975
        %3088 = vmatpush.msra.mxu0 %v2973
        %3089 = vmatmul.f32.gmra.mxu0 %v3033
        %v3090 = vpop.f32.mrf.mxu0
        %v3091 = vadd.f32 0.0, %v3090
        %3092 = vmatmul.f32.gmra.mxu0 %v3036
        %v3093 = vpop.f32.mrf.mxu0
        %v3094 = vadd.f32 0.0, %v3093
        %3095 = vmatmul.f32.gmra.mxu0 %v3039
        %v3096 = vpop.f32.mrf.mxu0
        %v3097 = vadd.f32 0.0, %v3096
        %3098 = vmatmul.f32.gmra.mxu0 %v3042
        %v3099 = vpop.f32.mrf.mxu0
        %v3100 = vadd.f32 0.0, %v3099
        %3101 = vdwg.mxu0
        %v3102 = vmul.f32 %v3062, %v555
        %v3103 = vmul.f32 %v3091, %v556
        %v3104 = vmul.f32 %v3065, %v555
        %v3105 = vmul.f32 %v3094, %v556
        %v3106 = vmul.f32 %v3068, %v555
        %v3107 = vmul.f32 %v3097, %v556
        %v3108 = vmul.f32 %v3071, %v555
        %v3109 = vmul.f32 %v3100, %v556
        %v3110 = vadd.f32 %v2869, %v3102
        %v3111 = vadd.f32 %v2870, %v3103
        %v3112 = vadd.f32 %v2871, %v3104
        %v3113 = vadd.f32 %v2872, %v3105
        %v3114 = vadd.f32 %v2873, %v3106
        %v3115 = vadd.f32 %v2874, %v3107
        %v3116 = vadd.f32 %v2875, %v3108
        %v3117 = vadd.f32 %v2876, %v3109
        %v3118 = vld [vmem:[#allocation2 + $0x60] sm:$0xff]
        %v3119 = vld [vmem:[#allocation2 + $0x68] sm:$0xff]
        %v3120 = vld [vmem:[#allocation2 + $0x70] sm:$0xff]
        %v3121 = vld [vmem:[#allocation2 + $0x78] sm:$0xff]
        %v3122 = vld [vmem:[#allocation2 + $0x80] sm:$0xff]
        %v3123 = vld [vmem:[#allocation2 + $0x88] sm:$0xff]
        %v3124 = vld [vmem:[#allocation2 + $0x90] sm:$0xff]
        %v3125 = vld [vmem:[#allocation2 + $0x98] sm:$0xff]
        %v3126 = vld [vmem:[#allocation2 + $0xa0] sm:$0xff]
        %v3127 = vld [vmem:[#allocation2 + $0xa8] sm:$0xff]
        %v3128 = vld [vmem:[#allocation2 + $0xb0] sm:$0xff]
        %v3129 = vld [vmem:[#allocation2 + $0xb8] sm:$0xff]
        %s3130 = scalar_lea.vmem %s3, 32
        %v3131 = vld [vmem:[%s3130] sm:$0xff]
        %v3132 = vld [vmem:[%s3130 + $0x8] sm:$0xff]
        %v3133 = vld [vmem:[%s3130 + $0x10] sm:$0xff]
        %v3134 = vld [vmem:[%s3130 + $0x18] sm:$0xff]
        %3136 = vset.pattern.permute.xlu0 0
        %3137 = vperm.xlu0 %3136, %v3131
        %v3138 = vpop.permute.xlu0 %3137
        %3141 = vset.pattern.permute.xlu0 0
        %3142 = vperm.xlu0 %3141, %v3132
        %v3143 = vpop.permute.xlu0 %3142
        %3146 = vset.pattern.permute.xlu0 0
        %3147 = vperm.xlu0 %3146, %v3133
        %v3148 = vpop.permute.xlu0 %3147
        %3151 = vset.pattern.permute.xlu0 0
        %3152 = vperm.xlu0 %3151, %v3134
        %v3153 = vpop.permute.xlu0 %3152
        %v3155 = vadd.f32 %v3110, %v3138
        %v3156 = vadd.f32 %v3111, %v3138
        %v3157 = vadd.f32 %v3112, %v3143
        %v3158 = vadd.f32 %v3113, %v3143
        %v3159 = vadd.f32 %v3114, %v3148
        %v3160 = vadd.f32 %v3115, %v3148
        %v3161 = vadd.f32 %v3116, %v3153
        %v3162 = vadd.f32 %v3117, %v3153
        %v3163 = vmax.f32 %v3155, 0.0
        %v3164 = vmax.f32 %v3156, 0.0
        %v3165 = vmax.f32 %v3157, 0.0
        %v3166 = vmax.f32 %v3158, 0.0
        %v3167 = vmax.f32 %v3159, 0.0
        %v3168 = vmax.f32 %v3160, 0.0
        %v3169 = vmax.f32 %v3161, 0.0
        %v3170 = vmax.f32 %v3162, 0.0
        %3179 = vrot.lane.b32.xlu0 %v3163, 16
        %v3180 = vpop.permute.xlu0 %3179
        %3181 = vrot.lane.b32.xlu0 %v3164, 16
        %v3182 = vpop.permute.xlu0 %3181
        %3183 = vrot.lane.b32.xlu0 %v3165, 16
        %v3184 = vpop.permute.xlu0 %3183
        %3185 = vrot.lane.b32.xlu0 %v3166, 16
        %v3186 = vpop.permute.xlu0 %3185
        %3187 = vrot.lane.b32.xlu0 %v3167, 16
        %v3188 = vpop.permute.xlu0 %3187
        %3189 = vrot.lane.b32.xlu0 %v3168, 16
        %v3190 = vpop.permute.xlu0 %3189
        %3191 = vrot.lane.b32.xlu0 %v3169, 16
        %v3192 = vpop.permute.xlu0 %3191
        %3193 = vrot.lane.b32.xlu0 %v3170, 16
        %v3194 = vpop.permute.xlu0 %3193
        %v3195 = vsel %vm463, %v3180, %v3182
        %v3196 = vsel %vm463, %v3184, %v3186
        %v3197 = vsel %vm463, %v3188, %v3190
        %v3198 = vsel %vm463, %v3192, %v3194
        %v3211 = vadd.f32 %v3118, %v3180
        %v3212 = vadd.f32 %v3119, %v3195
        %v3213 = vadd.f32 %v3120, %v3182
        %v3214 = vadd.f32 %v3121, %v3184
        %v3215 = vadd.f32 %v3122, %v3196
        %v3216 = vadd.f32 %v3123, %v3186
        %v3217 = vadd.f32 %v3124, %v3188
        %v3218 = vadd.f32 %v3125, %v3197
        %v3219 = vadd.f32 %v3126, %v3190
        %v3220 = vadd.f32 %v3127, %v3192
        %v3221 = vadd.f32 %v3128, %v3198
        %v3222 = vadd.f32 %v3129, %v3194
        %3235 = vrot.lane.b32.xlu0 %v3211, 16
        %v3236 = vpop.permute.xlu0 %3235
        %3237 = vrot.lane.b32.xlu0 %v3212, 16
        %v3238 = vpop.permute.xlu0 %3237
        %3239 = vrot.lane.b32.xlu0 %v3213, 16
        %v3240 = vpop.permute.xlu0 %3239
        %3241 = vrot.lane.b32.xlu0 %v3214, 16
        %v3242 = vpop.permute.xlu0 %3241
        %3243 = vrot.lane.b32.xlu0 %v3215, 16
        %v3244 = vpop.permute.xlu0 %3243
        %3245 = vrot.lane.b32.xlu0 %v3216, 16
        %v3246 = vpop.permute.xlu0 %3245
        %3247 = vrot.lane.b32.xlu0 %v3217, 16
        %v3248 = vpop.permute.xlu0 %3247
        %3249 = vrot.lane.b32.xlu0 %v3218, 16
        %v3250 = vpop.permute.xlu0 %3249
        %3251 = vrot.lane.b32.xlu0 %v3219, 16
        %v3252 = vpop.permute.xlu0 %3251
        %3253 = vrot.lane.b32.xlu0 %v3220, 16
        %v3254 = vpop.permute.xlu0 %3253
        %3255 = vrot.lane.b32.xlu0 %v3221, 16
        %v3256 = vpop.permute.xlu0 %3255
        %3257 = vrot.lane.b32.xlu0 %v3222, 16
        %v3258 = vpop.permute.xlu0 %3257
        %v3259 = vsel %vm463, %v3236, %v3238
        %v3260 = vsel %vm463, %v3238, %v3240
        %v3261 = vsel %vm463, %v3242, %v3244
        %v3262 = vsel %vm463, %v3244, %v3246
        %v3263 = vsel %vm463, %v3248, %v3250
        %v3264 = vsel %vm463, %v3250, %v3252
        %v3265 = vsel %vm463, %v3254, %v3256
        %v3266 = vsel %vm463, %v3256, %v3258
        %3279 = vst.msk [vmem:[#allocation2] sm:$0xff] %vm421, %v3236
        %3280 = vst [vmem:[#allocation2 + $0x8] sm:$0xff] %v3259
        %3281 = vst.msk [vmem:[#allocation2 + $0x10] sm:$0xff] %vm308, %v3260
        %3282 = vst.msk [vmem:[#allocation2 + $0x18] sm:$0xff] %vm421, %v3242
        %3283 = vst [vmem:[#allocation2 + $0x20] sm:$0xff] %v3261
        %3284 = vst.msk [vmem:[#allocation2 + $0x28] sm:$0xff] %vm308, %v3262
        %3285 = vst.msk [vmem:[#allocation2 + $0x30] sm:$0xff] %vm421, %v3248
        %3286 = vst [vmem:[#allocation2 + $0x38] sm:$0xff] %v3263
        %3287 = vst.msk [vmem:[#allocation2 + $0x40] sm:$0xff] %vm308, %v3264
        %3288 = vst.msk [vmem:[#allocation2 + $0x48] sm:$0xff] %vm421, %v3254
        %3289 = vst [vmem:[#allocation2 + $0x50] sm:$0xff] %v3265
        %3290 = vst.msk [vmem:[#allocation2 + $0x58] sm:$0xff] %vm308, %v3266
        %3291 = vst.msk [vmem:[#allocation2 + $0x60] sm:$0xff] %vm480, %v3211
        %3292 = vst [vmem:[#allocation2 + $0x68] sm:$0xff] %v3212
        %3293 = vst.msk [vmem:[#allocation2 + $0x70] sm:$0xff] %vm463, %v3213
        %3294 = vst.msk [vmem:[#allocation2 + $0x78] sm:$0xff] %vm480, %v3214
        %3295 = vst [vmem:[#allocation2 + $0x80] sm:$0xff] %v3215
        %3296 = vst.msk [vmem:[#allocation2 + $0x88] sm:$0xff] %vm463, %v3216
        %3297 = vst.msk [vmem:[#allocation2 + $0x90] sm:$0xff] %vm480, %v3217
        %3298 = vst [vmem:[#allocation2 + $0x98] sm:$0xff] %v3218
        %3299 = vst.msk [vmem:[#allocation2 + $0xa0] sm:$0xff] %vm463, %v3219
        %3300 = vst.msk [vmem:[#allocation2 + $0xa8] sm:$0xff] %vm480, %v3220
        %3301 = vst [vmem:[#allocation2 + $0xb0] sm:$0xff] %v3221
        %3302 = vst.msk [vmem:[#allocation2 + $0xb8] sm:$0xff] %vm463, %v3222
        %3303 = vrot.lane.b32.xlu0 %v3211, 112
        %v3304 = vpop.permute.xlu0 %3303
        %3305 = vrot.lane.b32.xlu0 %v3212, 112
        %v3306 = vpop.permute.xlu0 %3305
        %3307 = vrot.lane.b32.xlu0 %v3213, 112
        %v3308 = vpop.permute.xlu0 %3307
        %3309 = vrot.lane.b32.xlu0 %v3214, 112
        %v3310 = vpop.permute.xlu0 %3309
        %3311 = vrot.lane.b32.xlu0 %v3215, 112
        %v3312 = vpop.permute.xlu0 %3311
        %3313 = vrot.lane.b32.xlu0 %v3216, 112
        %v3314 = vpop.permute.xlu0 %3313
        %3315 = vrot.lane.b32.xlu0 %v3217, 112
        %v3316 = vpop.permute.xlu0 %3315
        %3317 = vrot.lane.b32.xlu0 %v3218, 112
        %v3318 = vpop.permute.xlu0 %3317
        %3319 = vrot.lane.b32.xlu0 %v3219, 112
        %v3320 = vpop.permute.xlu0 %3319
        %3321 = vrot.lane.b32.xlu0 %v3220, 112
        %v3322 = vpop.permute.xlu0 %3321
        %3323 = vrot.lane.b32.xlu0 %v3221, 112
        %v3324 = vpop.permute.xlu0 %3323
        %3325 = vrot.lane.b32.xlu0 %v3222, 112
        %v3326 = vpop.permute.xlu0 %3325
        %v3327 = vsel %vm984, %v3304, %v3306
        %v3328 = vsel %vm984, %v3306, %v3308
        %v3329 = vsel %vm984, %v3310, %v3312
        %v3330 = vsel %vm984, %v3312, %v3314
        %v3331 = vsel %vm984, %v3316, %v3318
        %v3332 = vsel %vm984, %v3318, %v3320
        %v3333 = vsel %vm984, %v3322, %v3324
        %v3334 = vsel %vm984, %v3324, %v3326
        %3343 = vst [vmem:[#allocation2 + $0xc0] sm:$0xff] %v3327
        %3344 = vst [vmem:[#allocation2 + $0xc8] sm:$0xff] %v3328
        %3345 = vst [vmem:[#allocation2 + $0xd8] sm:$0xff] %v3329
        %3346 = vst [vmem:[#allocation2 + $0xe0] sm:$0xff] %v3330
        %3347 = vst [vmem:[#allocation2 + $0xf0] sm:$0xff] %v3331
        %3348 = vst [vmem:[#allocation2 + $0xf8] sm:$0xff] %v3332
        %3349 = vst [vmem:[#allocation2 + $0x108] sm:$0xff] %v3333
        %3350 = vst [vmem:[#allocation2 + $0x110] sm:$0xff] %v3334
        %v3351 = vld [vmem:[#allocation2] sm:$0xff]
        %v3352 = vld [vmem:[#allocation2 + $0x8] sm:$0xff]
        %v3353 = vld [vmem:[#allocation2 + $0x10] sm:$0xff]
        %v3354 = vld [vmem:[#allocation2 + $0x18] sm:$0xff]
        %v3355 = vld [vmem:[#allocation2 + $0x20] sm:$0xff]
        %v3356 = vld [vmem:[#allocation2 + $0x28] sm:$0xff]
        %v3357 = vld [vmem:[#allocation2 + $0x30] sm:$0xff]
        %v3358 = vld [vmem:[#allocation2 + $0x38] sm:$0xff]
        %v3359 = vld [vmem:[#allocation2 + $0x40] sm:$0xff]
        %v3360 = vld [vmem:[#allocation2 + $0x48] sm:$0xff]
        %v3361 = vld [vmem:[#allocation2 + $0x50] sm:$0xff]
        %v3362 = vld [vmem:[#allocation2 + $0x58] sm:$0xff]
        %v3363 = vld [vmem:[#allocation2 + $0x60] sm:$0xff]
        %v3364 = vld [vmem:[#allocation2 + $0x68] sm:$0xff]
        %v3365 = vld [vmem:[#allocation2 + $0x70] sm:$0xff]
        %v3366 = vld [vmem:[#allocation2 + $0x78] sm:$0xff]
        %v3367 = vld [vmem:[#allocation2 + $0x80] sm:$0xff]
        %v3368 = vld [vmem:[#allocation2 + $0x88] sm:$0xff]
        %v3369 = vld [vmem:[#allocation2 + $0x90] sm:$0xff]
        %v3370 = vld [vmem:[#allocation2 + $0x98] sm:$0xff]
        %v3371 = vld [vmem:[#allocation2 + $0xa0] sm:$0xff]
        %v3372 = vld [vmem:[#allocation2 + $0xa8] sm:$0xff]
        %v3373 = vld [vmem:[#allocation2 + $0xb0] sm:$0xff]
        %v3374 = vld [vmem:[#allocation2 + $0xb8] sm:$0xff]
        %v3375 = vld [vmem:[#allocation2 + $0xc0] sm:$0xff]
        %v3376 = vld [vmem:[#allocation2 + $0xc8] sm:$0xff]
        %v3377 = vld [vmem:[#allocation2 + $0xd0] sm:$0xff]
        %v3378 = vld [vmem:[#allocation2 + $0xd8] sm:$0xff]
        %v3379 = vld [vmem:[#allocation2 + $0xe0] sm:$0xff]
        %v3380 = vld [vmem:[#allocation2 + $0xe8] sm:$0xff]
        %v3381 = vld [vmem:[#allocation2 + $0xf0] sm:$0xff]
        %v3382 = vld [vmem:[#allocation2 + $0xf8] sm:$0xff]
        %v3383 = vld [vmem:[#allocation2 + $0x100] sm:$0xff]
        %v3384 = vld [vmem:[#allocation2 + $0x108] sm:$0xff]
        %v3385 = vld [vmem:[#allocation2 + $0x110] sm:$0xff]
        %v3386 = vld [vmem:[#allocation2 + $0x118] sm:$0xff]
        %v3387 = vld [vmem:[#allocation2 + $0x120] sm:$0xff]
        %v3388 = vld [vmem:[#allocation2 + $0x128] sm:$0xff]
        %v3389 = vld [vmem:[#allocation2 + $0x130] sm:$0xff]
        %v3390 = vld [vmem:[#allocation2 + $0x138] sm:$0xff]
        %v3391 = vld [vmem:[#allocation2 + $0x140] sm:$0xff]
        %v3392 = vld [vmem:[#allocation2 + $0x148] sm:$0xff]
        %v3393 = vld [vmem:[#allocation2 + $0x150] sm:$0xff]
        %v3394 = vld [vmem:[#allocation2 + $0x158] sm:$0xff]
        %v3395 = vld [vmem:[#allocation2 + $0x160] sm:$0xff]
        %s3396 = scalar_lea.vmem %s4, 24
        %v3397 = vld [vmem:[%s3396] sm:$0xff]
        %3443 = vrot.lane.b32.xlu0 %v3351, 113
        %v3444 = vpop.permute.xlu0 %3443
        %3445 = vrot.lane.b32.xlu0 %v3352, 113
        %v3446 = vpop.permute.xlu0 %3445
        %3447 = vrot.lane.b32.xlu0 %v3353, 113
        %v3448 = vpop.permute.xlu0 %3447
        %3449 = vrot.lane.b32.xlu0 %v3354, 113
        %v3450 = vpop.permute.xlu0 %3449
        %3451 = vrot.lane.b32.xlu0 %v3355, 113
        %v3452 = vpop.permute.xlu0 %3451
        %3453 = vrot.lane.b32.xlu0 %v3356, 113
        %v3454 = vpop.permute.xlu0 %3453
        %3455 = vrot.lane.b32.xlu0 %v3357, 113
        %v3456 = vpop.permute.xlu0 %3455
        %3457 = vrot.lane.b32.xlu0 %v3358, 113
        %v3458 = vpop.permute.xlu0 %3457
        %3459 = vrot.lane.b32.xlu0 %v3359, 113
        %v3460 = vpop.permute.xlu0 %3459
        %3461 = vrot.lane.b32.xlu0 %v3360, 113
        %v3462 = vpop.permute.xlu0 %3461
        %3463 = vrot.lane.b32.xlu0 %v3361, 113
        %v3464 = vpop.permute.xlu0 %3463
        %3465 = vrot.lane.b32.xlu0 %v3362, 113
        %v3466 = vpop.permute.xlu0 %3465
        %3467 = vrot.lane.b32.xlu0 %v3363, 113
        %v3468 = vpop.permute.xlu0 %3467
        %3469 = vrot.lane.b32.xlu0 %v3364, 113
        %v3470 = vpop.permute.xlu0 %3469
        %3471 = vrot.lane.b32.xlu0 %v3365, 113
        %v3472 = vpop.permute.xlu0 %3471
        %3473 = vrot.lane.b32.xlu0 %v3366, 113
        %v3474 = vpop.permute.xlu0 %3473
        %3475 = vrot.lane.b32.xlu0 %v3367, 113
        %v3476 = vpop.permute.xlu0 %3475
        %3477 = vrot.lane.b32.xlu0 %v3368, 113
        %v3478 = vpop.permute.xlu0 %3477
        %3479 = vrot.lane.b32.xlu0 %v3369, 113
        %v3480 = vpop.permute.xlu0 %3479
        %3481 = vrot.lane.b32.xlu0 %v3370, 113
        %v3482 = vpop.permute.xlu0 %3481
        %3483 = vrot.lane.b32.xlu0 %v3371, 113
        %v3484 = vpop.permute.xlu0 %3483
        %3485 = vrot.lane.b32.xlu0 %v3372, 113
        %v3486 = vpop.permute.xlu0 %3485
        %3487 = vrot.lane.b32.xlu0 %v3373, 113
        %v3488 = vpop.permute.xlu0 %3487
        %3489 = vrot.lane.b32.xlu0 %v3374, 113
        %v3490 = vpop.permute.xlu0 %3489
        %3491 = vrot.lane.b32.xlu0 %v3375, 113
        %v3492 = vpop.permute.xlu0 %3491
        %3493 = vrot.lane.b32.xlu0 %v3376, 113
        %v3494 = vpop.permute.xlu0 %3493
        %3495 = vrot.lane.b32.xlu0 %v3377, 113
        %v3496 = vpop.permute.xlu0 %3495
        %3497 = vrot.lane.b32.xlu0 %v3378, 113
        %v3498 = vpop.permute.xlu0 %3497
        %3499 = vrot.lane.b32.xlu0 %v3379, 113
        %v3500 = vpop.permute.xlu0 %3499
        %3501 = vrot.lane.b32.xlu0 %v3380, 113
        %v3502 = vpop.permute.xlu0 %3501
        %3503 = vrot.lane.b32.xlu0 %v3381, 113
        %v3504 = vpop.permute.xlu0 %3503
        %3505 = vrot.lane.b32.xlu0 %v3382, 113
        %v3506 = vpop.permute.xlu0 %3505
        %3507 = vrot.lane.b32.xlu0 %v3383, 113
        %v3508 = vpop.permute.xlu0 %3507
        %3509 = vrot.lane.b32.xlu0 %v3384, 113
        %v3510 = vpop.permute.xlu0 %3509
        %3511 = vrot.lane.b32.xlu0 %v3385, 113
        %v3512 = vpop.permute.xlu0 %3511
        %3513 = vrot.lane.b32.xlu0 %v3386, 113
        %v3514 = vpop.permute.xlu0 %3513
        %3515 = vrot.lane.b32.xlu0 %v3387, 113
        %v3516 = vpop.permute.xlu0 %3515
        %3517 = vrot.lane.b32.xlu0 %v3388, 113
        %v3518 = vpop.permute.xlu0 %3517
        %3519 = vrot.lane.b32.xlu0 %v3389, 113
        %v3520 = vpop.permute.xlu0 %3519
        %3521 = vrot.lane.b32.xlu0 %v3390, 113
        %v3522 = vpop.permute.xlu0 %3521
        %3523 = vrot.lane.b32.xlu0 %v3391, 113
        %v3524 = vpop.permute.xlu0 %3523
        %3525 = vrot.lane.b32.xlu0 %v3392, 113
        %v3526 = vpop.permute.xlu0 %3525
        %3527 = vrot.lane.b32.xlu0 %v3393, 113
        %v3528 = vpop.permute.xlu0 %3527
        %3529 = vrot.lane.b32.xlu0 %v3394, 113
        %v3530 = vpop.permute.xlu0 %3529
        %3531 = vrot.lane.b32.xlu0 %v3395, 113
        %v3532 = vpop.permute.xlu0 %3531
        %v3533 = vsel %vm741, %v3444, %v3446
        %v3534 = vsel %vm741, %v3446, %v3448
        %v3535 = vsel %vm741, %v3450, %v3452
        %v3536 = vsel %vm741, %v3452, %v3454
        %v3537 = vsel %vm741, %v3456, %v3458
        %v3538 = vsel %vm741, %v3458, %v3460
        %v3539 = vsel %vm741, %v3462, %v3464
        %v3540 = vsel %vm741, %v3464, %v3466
        %v3541 = vsel %vm741, %v3468, %v3470
        %v3542 = vsel %vm741, %v3470, %v3472
        %v3543 = vsel %vm741, %v3474, %v3476
        %v3544 = vsel %vm741, %v3476, %v3478
        %v3545 = vsel %vm741, %v3480, %v3482
        %v3546 = vsel %vm741, %v3482, %v3484
        %v3547 = vsel %vm741, %v3486, %v3488
        %v3548 = vsel %vm741, %v3488, %v3490
        %v3549 = vsel %vm741, %v3492, %v3494
        %v3550 = vsel %vm741, %v3494, %v3496
        %v3551 = vsel %vm741, %v3498, %v3500
        %v3552 = vsel %vm741, %v3500, %v3502
        %v3553 = vsel %vm741, %v3504, %v3506
        %v3554 = vsel %vm741, %v3506, %v3508
        %v3555 = vsel %vm741, %v3510, %v3512
        %v3556 = vsel %vm741, %v3512, %v3514
        %v3557 = vsel %vm741, %v3516, %v3518
        %v3558 = vsel %vm741, %v3518, %v3520
        %v3559 = vsel %vm741, %v3522, %v3524
        %v3560 = vsel %vm741, %v3524, %v3526
        %v3561 = vsel %vm741, %v3528, %v3530
        %v3562 = vsel %vm741, %v3530, %v3532
        %v3594 = vsel %vm802, %v3397, 0
        %3596 = vmatpush.msra.mxu0 0.0
        %3597 = vmatpush.msra.mxu0 %v3561
        %3598 = vmatpush.msra.mxu0 %v3559
        %3599 = vmatpush.msra.mxu0 %v3557
        %3600 = vmatpush.msra.mxu0 %v3555
        %3601 = vmatpush.msra.mxu0 %v3553
        %3602 = vmatpush.msra.mxu0 %v3551
        %3603 = vmatpush.msra.mxu0 %v3549
        %3604 = vmatpush.msra.mxu0 %v3547
        %3605 = vmatpush.msra.mxu0 %v3545
        %3606 = vmatpush.msra.mxu0 %v3543
        %3607 = vmatpush.msra.mxu0 %v3541
        %3608 = vmatpush.msra.mxu0 %v3539
        %3609 = vmatpush.msra.mxu0 %v3537
        %3610 = vmatpush.msra.mxu0 %v3535
        %3611 = vmatpush.msra.mxu0 %v3533
        %3612 = vmatmul.f32.gmra.mxu0 %v3594
        %v3613 = vpop.f32.mrf.mxu0
        %v3614 = vadd.f32 0.0, %v3613
        %3615 = vdwg.mxu0
        %3616 = vmatpush.msra.mxu0 0.0
        %3617 = vmatpush.msra.mxu0 %v3562
        %3618 = vmatpush.msra.mxu0 %v3560
        %3619 = vmatpush.msra.mxu0 %v3558
        %3620 = vmatpush.msra.mxu0 %v3556
        %3621 = vmatpush.msra.mxu0 %v3554
        %3622 = vmatpush.msra.mxu0 %v3552
        %3623 = vmatpush.msra.mxu0 %v3550
        %3624 = vmatpush.msra.mxu0 %v3548
        %3625 = vmatpush.msra.mxu0 %v3546
        %3626 = vmatpush.msra.mxu0 %v3544
        %3627 = vmatpush.msra.mxu0 %v3542
        %3628 = vmatpush.msra.mxu0 %v3540
        %3629 = vmatpush.msra.mxu0 %v3538
        %3630 = vmatpush.msra.mxu0 %v3536
        %3631 = vmatpush.msra.mxu0 %v3534
        %3632 = vmatmul.f32.gmra.mxu0 %v3594
        %v3633 = vpop.f32.mrf.mxu0
        %v3634 = vadd.f32 0.0, %v3633
        %3635 = vdwg.mxu0
        %v3636 = vmul.f32 %v3614, %v549
        %v3637 = vmul.f32 %v3634, %v550
        %v3638 = vadd.f32 %v3636, 0.0
        %v3639 = vadd.f32 %v3637, 0.0
        %s3640 = scalar_lea.vmem %s4, 32
        %v3641 = vld [vmem:[%s3640] sm:$0xff]
        %3642 = vrot.lane.b32.xlu0 %v3351, 112
        %v3643 = vpop.permute.xlu0 %3642
        %3644 = vrot.lane.b32.xlu0 %v3352, 112
        %v3645 = vpop.permute.xlu0 %3644
        %3646 = vrot.lane.b32.xlu0 %v3353, 112
        %v3647 = vpop.permute.xlu0 %3646
        %3648 = vrot.lane.b32.xlu0 %v3354, 112
        %v3649 = vpop.permute.xlu0 %3648
        %3650 = vrot.lane.b32.xlu0 %v3355, 112
        %v3651 = vpop.permute.xlu0 %3650
        %3652 = vrot.lane.b32.xlu0 %v3356, 112
        %v3653 = vpop.permute.xlu0 %3652
        %3654 = vrot.lane.b32.xlu0 %v3357, 112
        %v3655 = vpop.permute.xlu0 %3654
        %3656 = vrot.lane.b32.xlu0 %v3358, 112
        %v3657 = vpop.permute.xlu0 %3656
        %3658 = vrot.lane.b32.xlu0 %v3359, 112
        %v3659 = vpop.permute.xlu0 %3658
        %3660 = vrot.lane.b32.xlu0 %v3360, 112
        %v3661 = vpop.permute.xlu0 %3660
        %3662 = vrot.lane.b32.xlu0 %v3361, 112
        %v3663 = vpop.permute.xlu0 %3662
        %3664 = vrot.lane.b32.xlu0 %v3362, 112
        %v3665 = vpop.permute.xlu0 %3664
        %3666 = vrot.lane.b32.xlu0 %v3363, 112
        %v3667 = vpop.permute.xlu0 %3666
        %3668 = vrot.lane.b32.xlu0 %v3364, 112
        %v3669 = vpop.permute.xlu0 %3668
        %3670 = vrot.lane.b32.xlu0 %v3365, 112
        %v3671 = vpop.permute.xlu0 %3670
        %3672 = vrot.lane.b32.xlu0 %v3366, 112
        %v3673 = vpop.permute.xlu0 %3672
        %3674 = vrot.lane.b32.xlu0 %v3367, 112
        %v3675 = vpop.permute.xlu0 %3674
        %3676 = vrot.lane.b32.xlu0 %v3368, 112
        %v3677 = vpop.permute.xlu0 %3676
        %3678 = vrot.lane.b32.xlu0 %v3369, 112
        %v3679 = vpop.permute.xlu0 %3678
        %3680 = vrot.lane.b32.xlu0 %v3370, 112
        %v3681 = vpop.permute.xlu0 %3680
        %3682 = vrot.lane.b32.xlu0 %v3371, 112
        %v3683 = vpop.permute.xlu0 %3682
        %3684 = vrot.lane.b32.xlu0 %v3372, 112
        %v3685 = vpop.permute.xlu0 %3684
        %3686 = vrot.lane.b32.xlu0 %v3373, 112
        %v3687 = vpop.permute.xlu0 %3686
        %3688 = vrot.lane.b32.xlu0 %v3374, 112
        %v3689 = vpop.permute.xlu0 %3688
        %3690 = vrot.lane.b32.xlu0 %v3375, 112
        %v3691 = vpop.permute.xlu0 %3690
        %3692 = vrot.lane.b32.xlu0 %v3376, 112
        %v3693 = vpop.permute.xlu0 %3692
        %3694 = vrot.lane.b32.xlu0 %v3377, 112
        %v3695 = vpop.permute.xlu0 %3694
        %3696 = vrot.lane.b32.xlu0 %v3378, 112
        %v3697 = vpop.permute.xlu0 %3696
        %3698 = vrot.lane.b32.xlu0 %v3379, 112
        %v3699 = vpop.permute.xlu0 %3698
        %3700 = vrot.lane.b32.xlu0 %v3380, 112
        %v3701 = vpop.permute.xlu0 %3700
        %3702 = vrot.lane.b32.xlu0 %v3381, 112
        %v3703 = vpop.permute.xlu0 %3702
        %3704 = vrot.lane.b32.xlu0 %v3382, 112
        %v3705 = vpop.permute.xlu0 %3704
        %3706 = vrot.lane.b32.xlu0 %v3383, 112
        %v3707 = vpop.permute.xlu0 %3706
        %3708 = vrot.lane.b32.xlu0 %v3384, 112
        %v3709 = vpop.permute.xlu0 %3708
        %3710 = vrot.lane.b32.xlu0 %v3385, 112
        %v3711 = vpop.permute.xlu0 %3710
        %3712 = vrot.lane.b32.xlu0 %v3386, 112
        %v3713 = vpop.permute.xlu0 %3712
        %3714 = vrot.lane.b32.xlu0 %v3387, 112
        %v3715 = vpop.permute.xlu0 %3714
        %3716 = vrot.lane.b32.xlu0 %v3388, 112
        %v3717 = vpop.permute.xlu0 %3716
        %3718 = vrot.lane.b32.xlu0 %v3389, 112
        %v3719 = vpop.permute.xlu0 %3718
        %3720 = vrot.lane.b32.xlu0 %v3390, 112
        %v3721 = vpop.permute.xlu0 %3720
        %3722 = vrot.lane.b32.xlu0 %v3391, 112
        %v3723 = vpop.permute.xlu0 %3722
        %3724 = vrot.lane.b32.xlu0 %v3392, 112
        %v3725 = vpop.permute.xlu0 %3724
        %3726 = vrot.lane.b32.xlu0 %v3393, 112
        %v3727 = vpop.permute.xlu0 %3726
        %3728 = vrot.lane.b32.xlu0 %v3394, 112
        %v3729 = vpop.permute.xlu0 %3728
        %3730 = vrot.lane.b32.xlu0 %v3395, 112
        %v3731 = vpop.permute.xlu0 %3730
        %v3732 = vsel %vm984, %v3643, %v3645
        %v3733 = vsel %vm984, %v3645, %v3647
        %v3734 = vsel %vm984, %v3649, %v3651
        %v3735 = vsel %vm984, %v3651, %v3653
        %v3736 = vsel %vm984, %v3655, %v3657
        %v3737 = vsel %vm984, %v3657, %v3659
        %v3738 = vsel %vm984, %v3661, %v3663
        %v3739 = vsel %vm984, %v3663, %v3665
        %v3740 = vsel %vm984, %v3667, %v3669
        %v3741 = vsel %vm984, %v3669, %v3671
        %v3742 = vsel %vm984, %v3673, %v3675
        %v3743 = vsel %vm984, %v3675, %v3677
        %v3744 = vsel %vm984, %v3679, %v3681
        %v3745 = vsel %vm984, %v3681, %v3683
        %v3746 = vsel %vm984, %v3685, %v3687
        %v3747 = vsel %vm984, %v3687, %v3689
        %v3748 = vsel %vm984, %v3691, %v3693
        %v3749 = vsel %vm984, %v3693, %v3695
        %v3750 = vsel %vm984, %v3697, %v3699
        %v3751 = vsel %vm984, %v3699, %v3701
        %v3752 = vsel %vm984, %v3703, %v3705
        %v3753 = vsel %vm984, %v3705, %v3707
        %v3754 = vsel %vm984, %v3709, %v3711
        %v3755 = vsel %vm984, %v3711, %v3713
        %v3756 = vsel %vm984, %v3715, %v3717
        %v3757 = vsel %vm984, %v3717, %v3719
        %v3758 = vsel %vm984, %v3721, %v3723
        %v3759 = vsel %vm984, %v3723, %v3725
        %v3760 = vsel %vm984, %v3727, %v3729
        %v3761 = vsel %vm984, %v3729, %v3731
        %v3793 = vsel %vm802, %v3641, 0
        %3795 = vmatpush.msra.mxu0 0.0
        %3796 = vmatpush.msra.mxu0 %v3760
        %3797 = vmatpush.msra.mxu0 %v3758
        %3798 = vmatpush.msra.mxu0 %v3756
        %3799 = vmatpush.msra.mxu0 %v3754
        %3800 = vmatpush.msra.mxu0 %v3752
        %3801 = vmatpush.msra.mxu0 %v3750
        %3802 = vmatpush.msra.mxu0 %v3748
        %3803 = vmatpush.msra.mxu0 %v3746
        %3804 = vmatpush.msra.mxu0 %v3744
        %3805 = vmatpush.msra.mxu0 %v3742
        %3806 = vmatpush.msra.mxu0 %v3740
        %3807 = vmatpush.msra.mxu0 %v3738
        %3808 = vmatpush.msra.mxu0 %v3736
        %3809 = vmatpush.msra.mxu0 %v3734
        %3810 = vmatpush.msra.mxu0 %v3732
        %3811 = vmatmul.f32.gmra.mxu0 %v3793
        %v3812 = vpop.f32.mrf.mxu0
        %v3813 = vadd.f32 0.0, %v3812
        %3814 = vdwg.mxu0
        %3815 = vmatpush.msra.mxu0 0.0
        %3816 = vmatpush.msra.mxu0 %v3761
        %3817 = vmatpush.msra.mxu0 %v3759
        %3818 = vmatpush.msra.mxu0 %v3757
        %3819 = vmatpush.msra.mxu0 %v3755
        %3820 = vmatpush.msra.mxu0 %v3753
        %3821 = vmatpush.msra.mxu0 %v3751
        %3822 = vmatpush.msra.mxu0 %v3749
        %3823 = vmatpush.msra.mxu0 %v3747
        %3824 = vmatpush.msra.mxu0 %v3745
        %3825 = vmatpush.msra.mxu0 %v3743
        %3826 = vmatpush.msra.mxu0 %v3741
        %3827 = vmatpush.msra.mxu0 %v3739
        %3828 = vmatpush.msra.mxu0 %v3737
        %3829 = vmatpush.msra.mxu0 %v3735
        %3830 = vmatpush.msra.mxu0 %v3733
        %3831 = vmatmul.f32.gmra.mxu0 %v3793
        %v3832 = vpop.f32.mrf.mxu0
        %v3833 = vadd.f32 0.0, %v3832
        %3834 = vdwg.mxu0
        %v3835 = vadd.f32 %v3638, %v3813
        %v3836 = vadd.f32 %v3639, %v3833
        %s3837 = scalar_lea.vmem %s4, 40
        %v3838 = vld [vmem:[%s3837] sm:$0xff]
        %3839 = vrot.lane.b32.xlu0 %v3351, 111
        %v3840 = vpop.permute.xlu0 %3839
        %3841 = vrot.lane.b32.xlu0 %v3352, 111
        %v3842 = vpop.permute.xlu0 %3841
        %3843 = vrot.lane.b32.xlu0 %v3353, 111
        %v3844 = vpop.permute.xlu0 %3843
        %3845 = vrot.lane.b32.xlu0 %v3354, 111
        %v3846 = vpop.permute.xlu0 %3845
        %3847 = vrot.lane.b32.xlu0 %v3355, 111
        %v3848 = vpop.permute.xlu0 %3847
        %3849 = vrot.lane.b32.xlu0 %v3356, 111
        %v3850 = vpop.permute.xlu0 %3849
        %3851 = vrot.lane.b32.xlu0 %v3357, 111
        %v3852 = vpop.permute.xlu0 %3851
        %3853 = vrot.lane.b32.xlu0 %v3358, 111
        %v3854 = vpop.permute.xlu0 %3853
        %3855 = vrot.lane.b32.xlu0 %v3359, 111
        %v3856 = vpop.permute.xlu0 %3855
        %3857 = vrot.lane.b32.xlu0 %v3360, 111
        %v3858 = vpop.permute.xlu0 %3857
        %3859 = vrot.lane.b32.xlu0 %v3361, 111
        %v3860 = vpop.permute.xlu0 %3859
        %3861 = vrot.lane.b32.xlu0 %v3362, 111
        %v3862 = vpop.permute.xlu0 %3861
        %3863 = vrot.lane.b32.xlu0 %v3363, 111
        %v3864 = vpop.permute.xlu0 %3863
        %3865 = vrot.lane.b32.xlu0 %v3364, 111
        %v3866 = vpop.permute.xlu0 %3865
        %3867 = vrot.lane.b32.xlu0 %v3365, 111
        %v3868 = vpop.permute.xlu0 %3867
        %3869 = vrot.lane.b32.xlu0 %v3366, 111
        %v3870 = vpop.permute.xlu0 %3869
        %3871 = vrot.lane.b32.xlu0 %v3367, 111
        %v3872 = vpop.permute.xlu0 %3871
        %3873 = vrot.lane.b32.xlu0 %v3368, 111
        %v3874 = vpop.permute.xlu0 %3873
        %3875 = vrot.lane.b32.xlu0 %v3369, 111
        %v3876 = vpop.permute.xlu0 %3875
        %3877 = vrot.lane.b32.xlu0 %v3370, 111
        %v3878 = vpop.permute.xlu0 %3877
        %3879 = vrot.lane.b32.xlu0 %v3371, 111
        %v3880 = vpop.permute.xlu0 %3879
        %3881 = vrot.lane.b32.xlu0 %v3372, 111
        %v3882 = vpop.permute.xlu0 %3881
        %3883 = vrot.lane.b32.xlu0 %v3373, 111
        %v3884 = vpop.permute.xlu0 %3883
        %3885 = vrot.lane.b32.xlu0 %v3374, 111
        %v3886 = vpop.permute.xlu0 %3885
        %3887 = vrot.lane.b32.xlu0 %v3375, 111
        %v3888 = vpop.permute.xlu0 %3887
        %3889 = vrot.lane.b32.xlu0 %v3376, 111
        %v3890 = vpop.permute.xlu0 %3889
        %3891 = vrot.lane.b32.xlu0 %v3377, 111
        %v3892 = vpop.permute.xlu0 %3891
        %3893 = vrot.lane.b32.xlu0 %v3378, 111
        %v3894 = vpop.permute.xlu0 %3893
        %3895 = vrot.lane.b32.xlu0 %v3379, 111
        %v3896 = vpop.permute.xlu0 %3895
        %3897 = vrot.lane.b32.xlu0 %v3380, 111
        %v3898 = vpop.permute.xlu0 %3897
        %3899 = vrot.lane.b32.xlu0 %v3381, 111
        %v3900 = vpop.permute.xlu0 %3899
        %3901 = vrot.lane.b32.xlu0 %v3382, 111
        %v3902 = vpop.permute.xlu0 %3901
        %3903 = vrot.lane.b32.xlu0 %v3383, 111
        %v3904 = vpop.permute.xlu0 %3903
        %3905 = vrot.lane.b32.xlu0 %v3384, 111
        %v3906 = vpop.permute.xlu0 %3905
        %3907 = vrot.lane.b32.xlu0 %v3385, 111
        %v3908 = vpop.permute.xlu0 %3907
        %3909 = vrot.lane.b32.xlu0 %v3386, 111
        %v3910 = vpop.permute.xlu0 %3909
        %3911 = vrot.lane.b32.xlu0 %v3387, 111
        %v3912 = vpop.permute.xlu0 %3911
        %3913 = vrot.lane.b32.xlu0 %v3388, 111
        %v3914 = vpop.permute.xlu0 %3913
        %3915 = vrot.lane.b32.xlu0 %v3389, 111
        %v3916 = vpop.permute.xlu0 %3915
        %3917 = vrot.lane.b32.xlu0 %v3390, 111
        %v3918 = vpop.permute.xlu0 %3917
        %3919 = vrot.lane.b32.xlu0 %v3391, 111
        %v3920 = vpop.permute.xlu0 %3919
        %3921 = vrot.lane.b32.xlu0 %v3392, 111
        %v3922 = vpop.permute.xlu0 %3921
        %3923 = vrot.lane.b32.xlu0 %v3393, 111
        %v3924 = vpop.permute.xlu0 %3923
        %3925 = vrot.lane.b32.xlu0 %v3394, 111
        %v3926 = vpop.permute.xlu0 %3925
        %3927 = vrot.lane.b32.xlu0 %v3395, 111
        %v3928 = vpop.permute.xlu0 %3927
        %v3929 = vsel %vm1218, %v3840, %v3842
        %v3930 = vsel %vm1218, %v3842, %v3844
        %v3931 = vsel %vm1218, %v3846, %v3848
        %v3932 = vsel %vm1218, %v3848, %v3850
        %v3933 = vsel %vm1218, %v3852, %v3854
        %v3934 = vsel %vm1218, %v3854, %v3856
        %v3935 = vsel %vm1218, %v3858, %v3860
        %v3936 = vsel %vm1218, %v3860, %v3862
        %v3937 = vsel %vm1218, %v3864, %v3866
        %v3938 = vsel %vm1218, %v3866, %v3868
        %v3939 = vsel %vm1218, %v3870, %v3872
        %v3940 = vsel %vm1218, %v3872, %v3874
        %v3941 = vsel %vm1218, %v3876, %v3878
        %v3942 = vsel %vm1218, %v3878, %v3880
        %v3943 = vsel %vm1218, %v3882, %v3884
        %v3944 = vsel %vm1218, %v3884, %v3886
        %v3945 = vsel %vm1218, %v3888, %v3890
        %v3946 = vsel %vm1218, %v3890, %v3892
        %v3947 = vsel %vm1218, %v3894, %v3896
        %v3948 = vsel %vm1218, %v3896, %v3898
        %v3949 = vsel %vm1218, %v3900, %v3902
        %v3950 = vsel %vm1218, %v3902, %v3904
        %v3951 = vsel %vm1218, %v3906, %v3908
        %v3952 = vsel %vm1218, %v3908, %v3910
        %v3953 = vsel %vm1218, %v3912, %v3914
        %v3954 = vsel %vm1218, %v3914, %v3916
        %v3955 = vsel %vm1218, %v3918, %v3920
        %v3956 = vsel %vm1218, %v3920, %v3922
        %v3957 = vsel %vm1218, %v3924, %v3926
        %v3958 = vsel %vm1218, %v3926, %v3928
        %v3990 = vsel %vm802, %v3838, 0
        %3992 = vmatpush.msra.mxu0 0.0
        %3993 = vmatpush.msra.mxu0 %v3957
        %3994 = vmatpush.msra.mxu0 %v3955
        %3995 = vmatpush.msra.mxu0 %v3953
        %3996 = vmatpush.msra.mxu0 %v3951
        %3997 = vmatpush.msra.mxu0 %v3949
        %3998 = vmatpush.msra.mxu0 %v3947
        %3999 = vmatpush.msra.mxu0 %v3945
        %4000 = vmatpush.msra.mxu0 %v3943
        %4001 = vmatpush.msra.mxu0 %v3941
        %4002 = vmatpush.msra.mxu0 %v3939
        %4003 = vmatpush.msra.mxu0 %v3937
        %4004 = vmatpush.msra.mxu0 %v3935
        %4005 = vmatpush.msra.mxu0 %v3933
        %4006 = vmatpush.msra.mxu0 %v3931
        %4007 = vmatpush.msra.mxu0 %v3929
        %4008 = vmatmul.f32.gmra.mxu0 %v3990
        %v4009 = vpop.f32.mrf.mxu0
        %v4010 = vadd.f32 0.0, %v4009
        %4011 = vdwg.mxu0
        %4012 = vmatpush.msra.mxu0 0.0
        %4013 = vmatpush.msra.mxu0 %v3958
        %4014 = vmatpush.msra.mxu0 %v3956
        %4015 = vmatpush.msra.mxu0 %v3954
        %4016 = vmatpush.msra.mxu0 %v3952
        %4017 = vmatpush.msra.mxu0 %v3950
        %4018 = vmatpush.msra.mxu0 %v3948
        %4019 = vmatpush.msra.mxu0 %v3946
        %4020 = vmatpush.msra.mxu0 %v3944
        %4021 = vmatpush.msra.mxu0 %v3942
        %4022 = vmatpush.msra.mxu0 %v3940
        %4023 = vmatpush.msra.mxu0 %v3938
        %4024 = vmatpush.msra.mxu0 %v3936
        %4025 = vmatpush.msra.mxu0 %v3934
        %4026 = vmatpush.msra.mxu0 %v3932
        %4027 = vmatpush.msra.mxu0 %v3930
        %4028 = vmatmul.f32.gmra.mxu0 %v3990
        %v4029 = vpop.f32.mrf.mxu0
        %v4030 = vadd.f32 0.0, %v4029
        %4031 = vdwg.mxu0
        %v4032 = vmul.f32 %v4010, %v555
        %v4033 = vmul.f32 %v4030, %v556
        %v4034 = vadd.f32 %v3835, %v4032
        %v4035 = vadd.f32 %v3836, %v4033
        %v4038 = vrot.slane %v4035, 7
        %v4039 = vsel %vm2284, %v4034, %v4038
        %v4041 = vadd.f32 %v2295, %v4039
        %s4042 = scalar_lea.vmem %s5, 1
        %v4043 = vld [vmem:[%s4042] sm:$0x1]
        %4045 = vset.pattern.permute.xlu0 0
        %4046 = vperm.xlu0 %4045, %v4043
        %v4047 = vpop.permute.xlu0 %4046
        %v4049 = vperm.slane %v4047, 0
        %v4050 = vadd.f32 %v4041, %v4049
        %4052 = vrot.lane.b32.xlu0 %v4050, 32
        %v4053 = vpop.permute.xlu0 %4052
        %v4054 = vrot.slane %v4053, 7
        %v4055 = vsel %vm308, %v4054, %v4053
        %4057 = vst.msk [vmem:[%s444] ss:$8 sm:$0x7] %vm443, %v4055
        %4058 = vst.msk [vmem:[%s444] ss:$8 sm:$0x0] %vm443, %v4055
        %4059 = vrot.lane.b32.xlu0 %v4050, 16
        %v4060 = vpop.permute.xlu0 %4059
        %v4061 = vrot.slane %v4060, 7
        %v4062 = vsel %vm463, %v4061, %v4060
        %4064 = vst.msk [vmem:[%s501] ss:$8 sm:$0x7] %vm500, %v4062
        %4065 = vst.msk [vmem:[%s501] ss:$8 sm:$0x0] %vm500, %v4062
        %4066 = vst.msk [vmem:[%s515] ss:$8 sm:$0x3] %vm514, %v4050
        %4067 = vst.msk [vmem:[%s515] ss:$8 sm:$0x0] %vm514, %v4050
        %v4068 = vld [vmem:[#allocation2] sm:$0xff]
        %v4069 = vld [vmem:[#allocation2 + $0x8] sm:$0xff]
        %v4070 = vld [vmem:[#allocation2 + $0x10] sm:$0xff]
        %v4071 = vld [vmem:[#allocation2 + $0x18] sm:$0xff]
        %v4072 = vld [vmem:[#allocation2 + $0x20] sm:$0xff]
        %v4073 = vld [vmem:[#allocation2 + $0x28] sm:$0xff]
        %v4074 = vld [vmem:[#allocation2 + $0x30] sm:$0xff]
        %v4075 = vld [vmem:[#allocation2 + $0x38] sm:$0xff]
        %v4076 = vld [vmem:[#allocation2 + $0x40] sm:$0xff]
        %v4077 = vld [vmem:[#allocation2 + $0x48] sm:$0xff]
        %v4078 = vld [vmem:[#allocation2 + $0x50] sm:$0xff]
        %v4079 = vld [vmem:[#allocation2 + $0x58] sm:$0xff]
        %v4080 = vld [vmem:[#allocation2 + $0x60] sm:$0xff]
        %v4081 = vld [vmem:[#allocation2 + $0x68] sm:$0xff]
        %v4082 = vld [vmem:[#allocation2 + $0x70] sm:$0xff]
        %v4083 = vld [vmem:[#allocation2 + $0x78] sm:$0xff]
        %v4084 = vld [vmem:[#allocation2 + $0x80] sm:$0xff]
        %v4085 = vld [vmem:[#allocation2 + $0x88] sm:$0xff]
        %v4086 = vld [vmem:[#allocation2 + $0x90] sm:$0xff]
        %v4087 = vld [vmem:[#allocation2 + $0x98] sm:$0xff]
        %v4088 = vld [vmem:[#allocation2 + $0xa0] sm:$0xff]
        %v4089 = vld [vmem:[#allocation2 + $0xa8] sm:$0xff]
        %v4090 = vld [vmem:[#allocation2 + $0xb0] sm:$0xff]
        %v4091 = vld [vmem:[#allocation2 + $0xb8] sm:$0xff]
        %v4092 = vld [vmem:[#allocation2 + $0xc0] sm:$0xff]
        %v4093 = vld [vmem:[#allocation2 + $0xc8] sm:$0xff]
        %v4094 = vld [vmem:[#allocation2 + $0xd0] sm:$0xff]
        %v4095 = vld [vmem:[#allocation2 + $0xd8] sm:$0xff]
        %v4096 = vld [vmem:[#allocation2 + $0xe0] sm:$0xff]
        %v4097 = vld [vmem:[#allocation2 + $0xe8] sm:$0xff]
        %v4098 = vld [vmem:[#allocation2 + $0xf0] sm:$0xff]
        %v4099 = vld [vmem:[#allocation2 + $0xf8] sm:$0xff]
        %v4100 = vld [vmem:[#allocation2 + $0x100] sm:$0xff]
        %v4101 = vld [vmem:[#allocation2 + $0x108] sm:$0xff]
        %v4102 = vld [vmem:[#allocation2 + $0x110] sm:$0xff]
        %v4103 = vld [vmem:[#allocation2 + $0x118] sm:$0xff]
        %v4104 = vld [vmem:[#allocation2 + $0x120] sm:$0xff]
        %v4105 = vld [vmem:[#allocation2 + $0x128] sm:$0xff]
        %v4106 = vld [vmem:[#allocation2 + $0x130] sm:$0xff]
        %v4107 = vld [vmem:[#allocation2 + $0x138] sm:$0xff]
        %v4108 = vld [vmem:[#allocation2 + $0x140] sm:$0xff]
        %v4109 = vld [vmem:[#allocation2 + $0x148] sm:$0xff]
        %v4110 = vld [vmem:[#allocation2 + $0x150] sm:$0xff]
        %v4111 = vld [vmem:[#allocation2 + $0x158] sm:$0xff]
        %v4112 = vld [vmem:[#allocation2 + $0x160] sm:$0xff]
        %s4113 = scalar_lea.vmem [#allocation6], 192
        %v4114 = vld [vmem:[%s4113] sm:$0xff]
        %v4115 = vld [vmem:[%s4113 + $0x8] sm:$0xff]
        %v4116 = vld [vmem:[%s4113 + $0x10] sm:$0xff]
        %v4117 = vld [vmem:[%s4113 + $0x18] sm:$0xff]
        %4163 = vrot.lane.b32.xlu0 %v4068, 113
        %v4164 = vpop.permute.xlu0 %4163
        %4165 = vrot.lane.b32.xlu0 %v4069, 113
        %v4166 = vpop.permute.xlu0 %4165
        %4167 = vrot.lane.b32.xlu0 %v4070, 113
        %v4168 = vpop.permute.xlu0 %4167
        %4169 = vrot.lane.b32.xlu0 %v4071, 113
        %v4170 = vpop.permute.xlu0 %4169
        %4171 = vrot.lane.b32.xlu0 %v4072, 113
        %v4172 = vpop.permute.xlu0 %4171
        %4173 = vrot.lane.b32.xlu0 %v4073, 113
        %v4174 = vpop.permute.xlu0 %4173
        %4175 = vrot.lane.b32.xlu0 %v4074, 113
        %v4176 = vpop.permute.xlu0 %4175
        %4177 = vrot.lane.b32.xlu0 %v4075, 113
        %v4178 = vpop.permute.xlu0 %4177
        %4179 = vrot.lane.b32.xlu0 %v4076, 113
        %v4180 = vpop.permute.xlu0 %4179
        %4181 = vrot.lane.b32.xlu0 %v4077, 113
        %v4182 = vpop.permute.xlu0 %4181
        %4183 = vrot.lane.b32.xlu0 %v4078, 113
        %v4184 = vpop.permute.xlu0 %4183
        %4185 = vrot.lane.b32.xlu0 %v4079, 113
        %v4186 = vpop.permute.xlu0 %4185
        %4187 = vrot.lane.b32.xlu0 %v4080, 113
        %v4188 = vpop.permute.xlu0 %4187
        %4189 = vrot.lane.b32.xlu0 %v4081, 113
        %v4190 = vpop.permute.xlu0 %4189
        %4191 = vrot.lane.b32.xlu0 %v4082, 113
        %v4192 = vpop.permute.xlu0 %4191
        %4193 = vrot.lane.b32.xlu0 %v4083, 113
        %v4194 = vpop.permute.xlu0 %4193
        %4195 = vrot.lane.b32.xlu0 %v4084, 113
        %v4196 = vpop.permute.xlu0 %4195
        %4197 = vrot.lane.b32.xlu0 %v4085, 113
        %v4198 = vpop.permute.xlu0 %4197
        %4199 = vrot.lane.b32.xlu0 %v4086, 113
        %v4200 = vpop.permute.xlu0 %4199
        %4201 = vrot.lane.b32.xlu0 %v4087, 113
        %v4202 = vpop.permute.xlu0 %4201
        %4203 = vrot.lane.b32.xlu0 %v4088, 113
        %v4204 = vpop.permute.xlu0 %4203
        %4205 = vrot.lane.b32.xlu0 %v4089, 113
        %v4206 = vpop.permute.xlu0 %4205
        %4207 = vrot.lane.b32.xlu0 %v4090, 113
        %v4208 = vpop.permute.xlu0 %4207
        %4209 = vrot.lane.b32.xlu0 %v4091, 113
        %v4210 = vpop.permute.xlu0 %4209
        %4211 = vrot.lane.b32.xlu0 %v4092, 113
        %v4212 = vpop.permute.xlu0 %4211
        %4213 = vrot.lane.b32.xlu0 %v4093, 113
        %v4214 = vpop.permute.xlu0 %4213
        %4215 = vrot.lane.b32.xlu0 %v4094, 113
        %v4216 = vpop.permute.xlu0 %4215
        %4217 = vrot.lane.b32.xlu0 %v4095, 113
        %v4218 = vpop.permute.xlu0 %4217
        %4219 = vrot.lane.b32.xlu0 %v4096, 113
        %v4220 = vpop.permute.xlu0 %4219
        %4221 = vrot.lane.b32.xlu0 %v4097, 113
        %v4222 = vpop.permute.xlu0 %4221
        %4223 = vrot.lane.b32.xlu0 %v4098, 113
        %v4224 = vpop.permute.xlu0 %4223
        %4225 = vrot.lane.b32.xlu0 %v4099, 113
        %v4226 = vpop.permute.xlu0 %4225
        %4227 = vrot.lane.b32.xlu0 %v4100, 113
        %v4228 = vpop.permute.xlu0 %4227
        %4229 = vrot.lane.b32.xlu0 %v4101, 113
        %v4230 = vpop.permute.xlu0 %4229
        %4231 = vrot.lane.b32.xlu0 %v4102, 113
        %v4232 = vpop.permute.xlu0 %4231
        %4233 = vrot.lane.b32.xlu0 %v4103, 113
        %v4234 = vpop.permute.xlu0 %4233
        %4235 = vrot.lane.b32.xlu0 %v4104, 113
        %v4236 = vpop.permute.xlu0 %4235
        %4237 = vrot.lane.b32.xlu0 %v4105, 113
        %v4238 = vpop.permute.xlu0 %4237
        %4239 = vrot.lane.b32.xlu0 %v4106, 113
        %v4240 = vpop.permute.xlu0 %4239
        %4241 = vrot.lane.b32.xlu0 %v4107, 113
        %v4242 = vpop.permute.xlu0 %4241
        %4243 = vrot.lane.b32.xlu0 %v4108, 113
        %v4244 = vpop.permute.xlu0 %4243
        %4245 = vrot.lane.b32.xlu0 %v4109, 113
        %v4246 = vpop.permute.xlu0 %4245
        %4247 = vrot.lane.b32.xlu0 %v4110, 113
        %v4248 = vpop.permute.xlu0 %4247
        %4249 = vrot.lane.b32.xlu0 %v4111, 113
        %v4250 = vpop.permute.xlu0 %4249
        %4251 = vrot.lane.b32.xlu0 %v4112, 113
        %v4252 = vpop.permute.xlu0 %4251
        %v4253 = vsel %vm741, %v4164, %v4166
        %v4254 = vsel %vm741, %v4166, %v4168
        %v4255 = vsel %vm741, %v4170, %v4172
        %v4256 = vsel %vm741, %v4172, %v4174
        %v4257 = vsel %vm741, %v4176, %v4178
        %v4258 = vsel %vm741, %v4178, %v4180
        %v4259 = vsel %vm741, %v4182, %v4184
        %v4260 = vsel %vm741, %v4184, %v4186
        %v4261 = vsel %vm741, %v4188, %v4190
        %v4262 = vsel %vm741, %v4190, %v4192
        %v4263 = vsel %vm741, %v4194, %v4196
        %v4264 = vsel %vm741, %v4196, %v4198
        %v4265 = vsel %vm741, %v4200, %v4202
        %v4266 = vsel %vm741, %v4202, %v4204
        %v4267 = vsel %vm741, %v4206, %v4208
        %v4268 = vsel %vm741, %v4208, %v4210
        %v4269 = vsel %vm741, %v4212, %v4214
        %v4270 = vsel %vm741, %v4214, %v4216
        %v4271 = vsel %vm741, %v4218, %v4220
        %v4272 = vsel %vm741, %v4220, %v4222
        %v4273 = vsel %vm741, %v4224, %v4226
        %v4274 = vsel %vm741, %v4226, %v4228
        %v4275 = vsel %vm741, %v4230, %v4232
        %v4276 = vsel %vm741, %v4232, %v4234
        %v4277 = vsel %vm741, %v4236, %v4238
        %v4278 = vsel %vm741, %v4238, %v4240
        %v4279 = vsel %vm741, %v4242, %v4244
        %v4280 = vsel %vm741, %v4244, %v4246
        %v4281 = vsel %vm741, %v4248, %v4250
        %v4282 = vsel %vm741, %v4250, %v4252
        %v4314 = vsel %vm802, %v4114, 0
        %v4317 = vsel %vm802, %v4115, 0
        %v4320 = vsel %vm802, %v4116, 0
        %v4323 = vsel %vm802, %v4117, 0
        %4325 = vmatpush.msra.mxu0 0.0
        %4326 = vmatpush.msra.mxu0 %v4281
        %4327 = vmatpush.msra.mxu0 %v4279
        %4328 = vmatpush.msra.mxu0 %v4277
        %4329 = vmatpush.msra.mxu0 %v4275
        %4330 = vmatpush.msra.mxu0 %v4273
        %4331 = vmatpush.msra.mxu0 %v4271
        %4332 = vmatpush.msra.mxu0 %v4269
        %4333 = vmatpush.msra.mxu0 %v4267
        %4334 = vmatpush.msra.mxu0 %v4265
        %4335 = vmatpush.msra.mxu0 %v4263
        %4336 = vmatpush.msra.mxu0 %v4261
        %4337 = vmatpush.msra.mxu0 %v4259
        %4338 = vmatpush.msra.mxu0 %v4257
        %4339 = vmatpush.msra.mxu0 %v4255
        %4340 = vmatpush.msra.mxu0 %v4253
        %4341 = vmatmul.f32.gmra.mxu0 %v4314
        %v4342 = vpop.f32.mrf.mxu0
        %v4343 = vadd.f32 0.0, %v4342
        %4344 = vmatmul.f32.gmra.mxu0 %v4317
        %v4345 = vpop.f32.mrf.mxu0
        %v4346 = vadd.f32 0.0, %v4345
        %4347 = vmatmul.f32.gmra.mxu0 %v4320
        %v4348 = vpop.f32.mrf.mxu0
        %v4349 = vadd.f32 0.0, %v4348
        %4350 = vmatmul.f32.gmra.mxu0 %v4323
        %v4351 = vpop.f32.mrf.mxu0
        %v4352 = vadd.f32 0.0, %v4351
        %4353 = vdwg.mxu0
        %4354 = vmatpush.msra.mxu0 0.0
        %4355 = vmatpush.msra.mxu0 %v4282
        %4356 = vmatpush.msra.mxu0 %v4280
        %4357 = vmatpush.msra.mxu0 %v4278
        %4358 = vmatpush.msra.mxu0 %v4276
        %4359 = vmatpush.msra.mxu0 %v4274
        %4360 = vmatpush.msra.mxu0 %v4272
        %4361 = vmatpush.msra.mxu0 %v4270
        %4362 = vmatpush.msra.mxu0 %v4268
        %4363 = vmatpush.msra.mxu0 %v4266
        %4364 = vmatpush.msra.mxu0 %v4264
        %4365 = vmatpush.msra.mxu0 %v4262
        %4366 = vmatpush.msra.mxu0 %v4260
        %4367 = vmatpush.msra.mxu0 %v4258
        %4368 = vmatpush.msra.mxu0 %v4256
        %4369 = vmatpush.msra.mxu0 %v4254
        %4370 = vmatmul.f32.gmra.mxu0 %v4314
        %v4371 = vpop.f32.mrf.mxu0
        %v4372 = vadd.f32 0.0, %v4371
        %4373 = vmatmul.f32.gmra.mxu0 %v4317
        %v4374 = vpop.f32.mrf.mxu0
        %v4375 = vadd.f32 0.0, %v4374
        %4376 = vmatmul.f32.gmra.mxu0 %v4320
        %v4377 = vpop.f32.mrf.mxu0
        %v4378 = vadd.f32 0.0, %v4377
        %4379 = vmatmul.f32.gmra.mxu0 %v4323
        %v4380 = vpop.f32.mrf.mxu0
        %v4381 = vadd.f32 0.0, %v4380
        %4382 = vdwg.mxu0
        %v4383 = vmul.f32 %v4343, %v549
        %v4384 = vmul.f32 %v4372, %v550
        %v4385 = vmul.f32 %v4346, %v549
        %v4386 = vmul.f32 %v4375, %v550
        %v4387 = vmul.f32 %v4349, %v549
        %v4388 = vmul.f32 %v4378, %v550
        %v4389 = vmul.f32 %v4352, %v549
        %v4390 = vmul.f32 %v4381, %v550
        %v4391 = vadd.f32 %v4383, 0.0
        %v4392 = vadd.f32 %v4384, 0.0
        %v4393 = vadd.f32 %v4385, 0.0
        %v4394 = vadd.f32 %v4386, 0.0
        %v4395 = vadd.f32 %v4387, 0.0
        %v4396 = vadd.f32 %v4388, 0.0
        %v4397 = vadd.f32 %v4389, 0.0
        %v4398 = vadd.f32 %v4390, 0.0
        %s4399 = scalar_lea.vmem [#allocation6], 224
        %v4400 = vld [vmem:[%s4399] sm:$0xff]
        %v4401 = vld [vmem:[%s4399 + $0x8] sm:$0xff]
        %v4402 = vld [vmem:[%s4399 + $0x10] sm:$0xff]
        %v4403 = vld [vmem:[%s4399 + $0x18] sm:$0xff]
        %4404 = vrot.lane.b32.xlu0 %v4068, 112
        %v4405 = vpop.permute.xlu0 %4404
        %4406 = vrot.lane.b32.xlu0 %v4069, 112
        %v4407 = vpop.permute.xlu0 %4406
        %4408 = vrot.lane.b32.xlu0 %v4070, 112
        %v4409 = vpop.permute.xlu0 %4408
        %4410 = vrot.lane.b32.xlu0 %v4071, 112
        %v4411 = vpop.permute.xlu0 %4410
        %4412 = vrot.lane.b32.xlu0 %v4072, 112
        %v4413 = vpop.permute.xlu0 %4412
        %4414 = vrot.lane.b32.xlu0 %v4073, 112
        %v4415 = vpop.permute.xlu0 %4414
        %4416 = vrot.lane.b32.xlu0 %v4074, 112
        %v4417 = vpop.permute.xlu0 %4416
        %4418 = vrot.lane.b32.xlu0 %v4075, 112
        %v4419 = vpop.permute.xlu0 %4418
        %4420 = vrot.lane.b32.xlu0 %v4076, 112
        %v4421 = vpop.permute.xlu0 %4420
        %4422 = vrot.lane.b32.xlu0 %v4077, 112
        %v4423 = vpop.permute.xlu0 %4422
        %4424 = vrot.lane.b32.xlu0 %v4078, 112
        %v4425 = vpop.permute.xlu0 %4424
        %4426 = vrot.lane.b32.xlu0 %v4079, 112
        %v4427 = vpop.permute.xlu0 %4426
        %4428 = vrot.lane.b32.xlu0 %v4080, 112
        %v4429 = vpop.permute.xlu0 %4428
        %4430 = vrot.lane.b32.xlu0 %v4081, 112
        %v4431 = vpop.permute.xlu0 %4430
        %4432 = vrot.lane.b32.xlu0 %v4082, 112
        %v4433 = vpop.permute.xlu0 %4432
        %4434 = vrot.lane.b32.xlu0 %v4083, 112
        %v4435 = vpop.permute.xlu0 %4434
        %4436 = vrot.lane.b32.xlu0 %v4084, 112
        %v4437 = vpop.permute.xlu0 %4436
        %4438 = vrot.lane.b32.xlu0 %v4085, 112
        %v4439 = vpop.permute.xlu0 %4438
        %4440 = vrot.lane.b32.xlu0 %v4086, 112
        %v4441 = vpop.permute.xlu0 %4440
        %4442 = vrot.lane.b32.xlu0 %v4087, 112
        %v4443 = vpop.permute.xlu0 %4442
        %4444 = vrot.lane.b32.xlu0 %v4088, 112
        %v4445 = vpop.permute.xlu0 %4444
        %4446 = vrot.lane.b32.xlu0 %v4089, 112
        %v4447 = vpop.permute.xlu0 %4446
        %4448 = vrot.lane.b32.xlu0 %v4090, 112
        %v4449 = vpop.permute.xlu0 %4448
        %4450 = vrot.lane.b32.xlu0 %v4091, 112
        %v4451 = vpop.permute.xlu0 %4450
        %4452 = vrot.lane.b32.xlu0 %v4092, 112
        %v4453 = vpop.permute.xlu0 %4452
        %4454 = vrot.lane.b32.xlu0 %v4093, 112
        %v4455 = vpop.permute.xlu0 %4454
        %4456 = vrot.lane.b32.xlu0 %v4094, 112
        %v4457 = vpop.permute.xlu0 %4456
        %4458 = vrot.lane.b32.xlu0 %v4095, 112
        %v4459 = vpop.permute.xlu0 %4458
        %4460 = vrot.lane.b32.xlu0 %v4096, 112
        %v4461 = vpop.permute.xlu0 %4460
        %4462 = vrot.lane.b32.xlu0 %v4097, 112
        %v4463 = vpop.permute.xlu0 %4462
        %4464 = vrot.lane.b32.xlu0 %v4098, 112
        %v4465 = vpop.permute.xlu0 %4464
        %4466 = vrot.lane.b32.xlu0 %v4099, 112
        %v4467 = vpop.permute.xlu0 %4466
        %4468 = vrot.lane.b32.xlu0 %v4100, 112
        %v4469 = vpop.permute.xlu0 %4468
        %4470 = vrot.lane.b32.xlu0 %v4101, 112
        %v4471 = vpop.permute.xlu0 %4470
        %4472 = vrot.lane.b32.xlu0 %v4102, 112
        %v4473 = vpop.permute.xlu0 %4472
        %4474 = vrot.lane.b32.xlu0 %v4103, 112
        %v4475 = vpop.permute.xlu0 %4474
        %4476 = vrot.lane.b32.xlu0 %v4104, 112
        %v4477 = vpop.permute.xlu0 %4476
        %4478 = vrot.lane.b32.xlu0 %v4105, 112
        %v4479 = vpop.permute.xlu0 %4478
        %4480 = vrot.lane.b32.xlu0 %v4106, 112
        %v4481 = vpop.permute.xlu0 %4480
        %4482 = vrot.lane.b32.xlu0 %v4107, 112
        %v4483 = vpop.permute.xlu0 %4482
        %4484 = vrot.lane.b32.xlu0 %v4108, 112
        %v4485 = vpop.permute.xlu0 %4484
        %4486 = vrot.lane.b32.xlu0 %v4109, 112
        %v4487 = vpop.permute.xlu0 %4486
        %4488 = vrot.lane.b32.xlu0 %v4110, 112
        %v4489 = vpop.permute.xlu0 %4488
        %4490 = vrot.lane.b32.xlu0 %v4111, 112
        %v4491 = vpop.permute.xlu0 %4490
        %4492 = vrot.lane.b32.xlu0 %v4112, 112
        %v4493 = vpop.permute.xlu0 %4492
        %v4494 = vsel %vm984, %v4405, %v4407
        %v4495 = vsel %vm984, %v4407, %v4409
        %v4496 = vsel %vm984, %v4411, %v4413
        %v4497 = vsel %vm984, %v4413, %v4415
        %v4498 = vsel %vm984, %v4417, %v4419
        %v4499 = vsel %vm984, %v4419, %v4421
        %v4500 = vsel %vm984, %v4423, %v4425
        %v4501 = vsel %vm984, %v4425, %v4427
        %v4502 = vsel %vm984, %v4429, %v4431
        %v4503 = vsel %vm984, %v4431, %v4433
        %v4504 = vsel %vm984, %v4435, %v4437
        %v4505 = vsel %vm984, %v4437, %v4439
        %v4506 = vsel %vm984, %v4441, %v4443
        %v4507 = vsel %vm984, %v4443, %v4445
        %v4508 = vsel %vm984, %v4447, %v4449
        %v4509 = vsel %vm984, %v4449, %v4451
        %v4510 = vsel %vm984, %v4453, %v4455
        %v4511 = vsel %vm984, %v4455, %v4457
        %v4512 = vsel %vm984, %v4459, %v4461
        %v4513 = vsel %vm984, %v4461, %v4463
        %v4514 = vsel %vm984, %v4465, %v4467
        %v4515 = vsel %vm984, %v4467, %v4469
        %v4516 = vsel %vm984, %v4471, %v4473
        %v4517 = vsel %vm984, %v4473, %v4475
        %v4518 = vsel %vm984, %v4477, %v4479
        %v4519 = vsel %vm984, %v4479, %v4481
        %v4520 = vsel %vm984, %v4483, %v4485
        %v4521 = vsel %vm984, %v4485, %v4487
        %v4522 = vsel %vm984, %v4489, %v4491
        %v4523 = vsel %vm984, %v4491, %v4493
        %v4555 = vsel %vm802, %v4400, 0
        %v4558 = vsel %vm802, %v4401, 0
        %v4561 = vsel %vm802, %v4402, 0
        %v4564 = vsel %vm802, %v4403, 0
        %4566 = vmatpush.msra.mxu0 0.0
        %4567 = vmatpush.msra.mxu0 %v4522
        %4568 = vmatpush.msra.mxu0 %v4520
        %4569 = vmatpush.msra.mxu0 %v4518
        %4570 = vmatpush.msra.mxu0 %v4516
        %4571 = vmatpush.msra.mxu0 %v4514
        %4572 = vmatpush.msra.mxu0 %v4512
        %4573 = vmatpush.msra.mxu0 %v4510
        %4574 = vmatpush.msra.mxu0 %v4508
        %4575 = vmatpush.msra.mxu0 %v4506
        %4576 = vmatpush.msra.mxu0 %v4504
        %4577 = vmatpush.msra.mxu0 %v4502
        %4578 = vmatpush.msra.mxu0 %v4500
        %4579 = vmatpush.msra.mxu0 %v4498
        %4580 = vmatpush.msra.mxu0 %v4496
        %4581 = vmatpush.msra.mxu0 %v4494
        %4582 = vmatmul.f32.gmra.mxu0 %v4555
        %v4583 = vpop.f32.mrf.mxu0
        %v4584 = vadd.f32 0.0, %v4583
        %4585 = vmatmul.f32.gmra.mxu0 %v4558
        %v4586 = vpop.f32.mrf.mxu0
        %v4587 = vadd.f32 0.0, %v4586
        %4588 = vmatmul.f32.gmra.mxu0 %v4561
        %v4589 = vpop.f32.mrf.mxu0
        %v4590 = vadd.f32 0.0, %v4589
        %4591 = vmatmul.f32.gmra.mxu0 %v4564
        %v4592 = vpop.f32.mrf.mxu0
        %v4593 = vadd.f32 0.0, %v4592
        %4594 = vdwg.mxu0
        %4595 = vmatpush.msra.mxu0 0.0
        %4596 = vmatpush.msra.mxu0 %v4523
        %4597 = vmatpush.msra.mxu0 %v4521
        %4598 = vmatpush.msra.mxu0 %v4519
        %4599 = vmatpush.msra.mxu0 %v4517
        %4600 = vmatpush.msra.mxu0 %v4515
        %4601 = vmatpush.msra.mxu0 %v4513
        %4602 = vmatpush.msra.mxu0 %v4511
        %4603 = vmatpush.msra.mxu0 %v4509
        %4604 = vmatpush.msra.mxu0 %v4507
        %4605 = vmatpush.msra.mxu0 %v4505
        %4606 = vmatpush.msra.mxu0 %v4503
        %4607 = vmatpush.msra.mxu0 %v4501
        %4608 = vmatpush.msra.mxu0 %v4499
        %4609 = vmatpush.msra.mxu0 %v4497
        %4610 = vmatpush.msra.mxu0 %v4495
        %4611 = vmatmul.f32.gmra.mxu0 %v4555
        %v4612 = vpop.f32.mrf.mxu0
        %v4613 = vadd.f32 0.0, %v4612
        %4614 = vmatmul.f32.gmra.mxu0 %v4558
        %v4615 = vpop.f32.mrf.mxu0
        %v4616 = vadd.f32 0.0, %v4615
        %4617 = vmatmul.f32.gmra.mxu0 %v4561
        %v4618 = vpop.f32.mrf.mxu0
        %v4619 = vadd.f32 0.0, %v4618
        %4620 = vmatmul.f32.gmra.mxu0 %v4564
        %v4621 = vpop.f32.mrf.mxu0
        %v4622 = vadd.f32 0.0, %v4621
        %4623 = vdwg.mxu0
        %v4624 = vadd.f32 %v4391, %v4584
        %v4625 = vadd.f32 %v4392, %v4613
        %v4626 = vadd.f32 %v4393, %v4587
        %v4627 = vadd.f32 %v4394, %v4616
        %v4628 = vadd.f32 %v4395, %v4590
        %v4629 = vadd.f32 %v4396, %v4619
        %v4630 = vadd.f32 %v4397, %v4593
        %v4631 = vadd.f32 %v4398, %v4622
        %s4632 = scalar_lea.vmem [#allocation6], 256
        %v4633 = vld [vmem:[%s4632] sm:$0xff]
        %v4634 = vld [vmem:[%s4632 + $0x8] sm:$0xff]
        %v4635 = vld [vmem:[%s4632 + $0x10] sm:$0xff]
        %v4636 = vld [vmem:[%s4632 + $0x18] sm:$0xff]
        %4637 = vrot.lane.b32.xlu0 %v4068, 111
        %v4638 = vpop.permute.xlu0 %4637
        %4639 = vrot.lane.b32.xlu0 %v4069, 111
        %v4640 = vpop.permute.xlu0 %4639
        %4641 = vrot.lane.b32.xlu0 %v4070, 111
        %v4642 = vpop.permute.xlu0 %4641
        %4643 = vrot.lane.b32.xlu0 %v4071, 111
        %v4644 = vpop.permute.xlu0 %4643
        %4645 = vrot.lane.b32.xlu0 %v4072, 111
        %v4646 = vpop.permute.xlu0 %4645
        %4647 = vrot.lane.b32.xlu0 %v4073, 111
        %v4648 = vpop.permute.xlu0 %4647
        %4649 = vrot.lane.b32.xlu0 %v4074, 111
        %v4650 = vpop.permute.xlu0 %4649
        %4651 = vrot.lane.b32.xlu0 %v4075, 111
        %v4652 = vpop.permute.xlu0 %4651
        %4653 = vrot.lane.b32.xlu0 %v4076, 111
        %v4654 = vpop.permute.xlu0 %4653
        %4655 = vrot.lane.b32.xlu0 %v4077, 111
        %v4656 = vpop.permute.xlu0 %4655
        %4657 = vrot.lane.b32.xlu0 %v4078, 111
        %v4658 = vpop.permute.xlu0 %4657
        %4659 = vrot.lane.b32.xlu0 %v4079, 111
        %v4660 = vpop.permute.xlu0 %4659
        %4661 = vrot.lane.b32.xlu0 %v4080, 111
        %v4662 = vpop.permute.xlu0 %4661
        %4663 = vrot.lane.b32.xlu0 %v4081, 111
        %v4664 = vpop.permute.xlu0 %4663
        %4665 = vrot.lane.b32.xlu0 %v4082, 111
        %v4666 = vpop.permute.xlu0 %4665
        %4667 = vrot.lane.b32.xlu0 %v4083, 111
        %v4668 = vpop.permute.xlu0 %4667
        %4669 = vrot.lane.b32.xlu0 %v4084, 111
        %v4670 = vpop.permute.xlu0 %4669
        %4671 = vrot.lane.b32.xlu0 %v4085, 111
        %v4672 = vpop.permute.xlu0 %4671
        %4673 = vrot.lane.b32.xlu0 %v4086, 111
        %v4674 = vpop.permute.xlu0 %4673
        %4675 = vrot.lane.b32.xlu0 %v4087, 111
        %v4676 = vpop.permute.xlu0 %4675
        %4677 = vrot.lane.b32.xlu0 %v4088, 111
        %v4678 = vpop.permute.xlu0 %4677
        %4679 = vrot.lane.b32.xlu0 %v4089, 111
        %v4680 = vpop.permute.xlu0 %4679
        %4681 = vrot.lane.b32.xlu0 %v4090, 111
        %v4682 = vpop.permute.xlu0 %4681
        %4683 = vrot.lane.b32.xlu0 %v4091, 111
        %v4684 = vpop.permute.xlu0 %4683
        %4685 = vrot.lane.b32.xlu0 %v4092, 111
        %v4686 = vpop.permute.xlu0 %4685
        %4687 = vrot.lane.b32.xlu0 %v4093, 111
        %v4688 = vpop.permute.xlu0 %4687
        %4689 = vrot.lane.b32.xlu0 %v4094, 111
        %v4690 = vpop.permute.xlu0 %4689
        %4691 = vrot.lane.b32.xlu0 %v4095, 111
        %v4692 = vpop.permute.xlu0 %4691
        %4693 = vrot.lane.b32.xlu0 %v4096, 111
        %v4694 = vpop.permute.xlu0 %4693
        %4695 = vrot.lane.b32.xlu0 %v4097, 111
        %v4696 = vpop.permute.xlu0 %4695
        %4697 = vrot.lane.b32.xlu0 %v4098, 111
        %v4698 = vpop.permute.xlu0 %4697
        %4699 = vrot.lane.b32.xlu0 %v4099, 111
        %v4700 = vpop.permute.xlu0 %4699
        %4701 = vrot.lane.b32.xlu0 %v4100, 111
        %v4702 = vpop.permute.xlu0 %4701
        %4703 = vrot.lane.b32.xlu0 %v4101, 111
        %v4704 = vpop.permute.xlu0 %4703
        %4705 = vrot.lane.b32.xlu0 %v4102, 111
        %v4706 = vpop.permute.xlu0 %4705
        %4707 = vrot.lane.b32.xlu0 %v4103, 111
        %v4708 = vpop.permute.xlu0 %4707
        %4709 = vrot.lane.b32.xlu0 %v4104, 111
        %v4710 = vpop.permute.xlu0 %4709
        %4711 = vrot.lane.b32.xlu0 %v4105, 111
        %v4712 = vpop.permute.xlu0 %4711
        %4713 = vrot.lane.b32.xlu0 %v4106, 111
        %v4714 = vpop.permute.xlu0 %4713
        %4715 = vrot.lane.b32.xlu0 %v4107, 111
        %v4716 = vpop.permute.xlu0 %4715
        %4717 = vrot.lane.b32.xlu0 %v4108, 111
        %v4718 = vpop.permute.xlu0 %4717
        %4719 = vrot.lane.b32.xlu0 %v4109, 111
        %v4720 = vpop.permute.xlu0 %4719
        %4721 = vrot.lane.b32.xlu0 %v4110, 111
        %v4722 = vpop.permute.xlu0 %4721
        %4723 = vrot.lane.b32.xlu0 %v4111, 111
        %v4724 = vpop.permute.xlu0 %4723
        %4725 = vrot.lane.b32.xlu0 %v4112, 111
        %v4726 = vpop.permute.xlu0 %4725
        %v4727 = vsel %vm1218, %v4638, %v4640
        %v4728 = vsel %vm1218, %v4640, %v4642
        %v4729 = vsel %vm1218, %v4644, %v4646
        %v4730 = vsel %vm1218, %v4646, %v4648
        %v4731 = vsel %vm1218, %v4650, %v4652
        %v4732 = vsel %vm1218, %v4652, %v4654
        %v4733 = vsel %vm1218, %v4656, %v4658
        %v4734 = vsel %vm1218, %v4658, %v4660
        %v4735 = vsel %vm1218, %v4662, %v4664
        %v4736 = vsel %vm1218, %v4664, %v4666
        %v4737 = vsel %vm1218, %v4668, %v4670
        %v4738 = vsel %vm1218, %v4670, %v4672
        %v4739 = vsel %vm1218, %v4674, %v4676
        %v4740 = vsel %vm1218, %v4676, %v4678
        %v4741 = vsel %vm1218, %v4680, %v4682
        %v4742 = vsel %vm1218, %v4682, %v4684
        %v4743 = vsel %vm1218, %v4686, %v4688
        %v4744 = vsel %vm1218, %v4688, %v4690
        %v4745 = vsel %vm1218, %v4692, %v4694
        %v4746 = vsel %vm1218, %v4694, %v4696
        %v4747 = vsel %vm1218, %v4698, %v4700
        %v4748 = vsel %vm1218, %v4700, %v4702
        %v4749 = vsel %vm1218, %v4704, %v4706
        %v4750 = vsel %vm1218, %v4706, %v4708
        %v4751 = vsel %vm1218, %v4710, %v4712
        %v4752 = vsel %vm1218, %v4712, %v4714
        %v4753 = vsel %vm1218, %v4716, %v4718
        %v4754 = vsel %vm1218, %v4718, %v4720
        %v4755 = vsel %vm1218, %v4722, %v4724
        %v4756 = vsel %vm1218, %v4724, %v4726
        %v4788 = vsel %vm802, %v4633, 0
        %v4791 = vsel %vm802, %v4634, 0
        %v4794 = vsel %vm802, %v4635, 0
        %v4797 = vsel %vm802, %v4636, 0
        %4799 = vmatpush.msra.mxu0 0.0
        %4800 = vmatpush.msra.mxu0 %v4755
        %4801 = vmatpush.msra.mxu0 %v4753
        %4802 = vmatpush.msra.mxu0 %v4751
        %4803 = vmatpush.msra.mxu0 %v4749
        %4804 = vmatpush.msra.mxu0 %v4747
        %4805 = vmatpush.msra.mxu0 %v4745
        %4806 = vmatpush.msra.mxu0 %v4743
        %4807 = vmatpush.msra.mxu0 %v4741
        %4808 = vmatpush.msra.mxu0 %v4739
        %4809 = vmatpush.msra.mxu0 %v4737
        %4810 = vmatpush.msra.mxu0 %v4735
        %4811 = vmatpush.msra.mxu0 %v4733
        %4812 = vmatpush.msra.mxu0 %v4731
        %4813 = vmatpush.msra.mxu0 %v4729
        %4814 = vmatpush.msra.mxu0 %v4727
        %4815 = vmatmul.f32.gmra.mxu0 %v4788
        %v4816 = vpop.f32.mrf.mxu0
        %v4817 = vadd.f32 0.0, %v4816
        %4818 = vmatmul.f32.gmra.mxu0 %v4791
        %v4819 = vpop.f32.mrf.mxu0
        %v4820 = vadd.f32 0.0, %v4819
        %4821 = vmatmul.f32.gmra.mxu0 %v4794
        %v4822 = vpop.f32.mrf.mxu0
        %v4823 = vadd.f32 0.0, %v4822
        %4824 = vmatmul.f32.gmra.mxu0 %v4797
        %v4825 = vpop.f32.mrf.mxu0
        %v4826 = vadd.f32 0.0, %v4825
        %4827 = vdwg.mxu0
        %4828 = vmatpush.msra.mxu0 0.0
        %4829 = vmatpush.msra.mxu0 %v4756
        %4830 = vmatpush.msra.mxu0 %v4754
        %4831 = vmatpush.msra.mxu0 %v4752
        %4832 = vmatpush.msra.mxu0 %v4750
        %4833 = vmatpush.msra.mxu0 %v4748
        %4834 = vmatpush.msra.mxu0 %v4746
        %4835 = vmatpush.msra.mxu0 %v4744
        %4836 = vmatpush.msra.mxu0 %v4742
        %4837 = vmatpush.msra.mxu0 %v4740
        %4838 = vmatpush.msra.mxu0 %v4738
        %4839 = vmatpush.msra.mxu0 %v4736
        %4840 = vmatpush.msra.mxu0 %v4734
        %4841 = vmatpush.msra.mxu0 %v4732
        %4842 = vmatpush.msra.mxu0 %v4730
        %4843 = vmatpush.msra.mxu0 %v4728
        %4844 = vmatmul.f32.gmra.mxu0 %v4788
        %v4845 = vpop.f32.mrf.mxu0
        %v4846 = vadd.f32 0.0, %v4845
        %4847 = vmatmul.f32.gmra.mxu0 %v4791
        %v4848 = vpop.f32.mrf.mxu0
        %v4849 = vadd.f32 0.0, %v4848
        %4850 = vmatmul.f32.gmra.mxu0 %v4794
        %v4851 = vpop.f32.mrf.mxu0
        %v4852 = vadd.f32 0.0, %v4851
        %4853 = vmatmul.f32.gmra.mxu0 %v4797
        %v4854 = vpop.f32.mrf.mxu0
        %v4855 = vadd.f32 0.0, %v4854
        %4856 = vdwg.mxu0
        %v4857 = vmul.f32 %v4817, %v555
        %v4858 = vmul.f32 %v4846, %v556
        %v4859 = vmul.f32 %v4820, %v555
        %v4860 = vmul.f32 %v4849, %v556
        %v4861 = vmul.f32 %v4823, %v555
        %v4862 = vmul.f32 %v4852, %v556
        %v4863 = vmul.f32 %v4826, %v555
        %v4864 = vmul.f32 %v4855, %v556
        %v4865 = vadd.f32 %v4624, %v4857
        %v4866 = vadd.f32 %v4625, %v4858
        %v4867 = vadd.f32 %v4626, %v4859
        %v4868 = vadd.f32 %v4627, %v4860
        %v4869 = vadd.f32 %v4628, %v4861
        %v4870 = vadd.f32 %v4629, %v4862
        %v4871 = vadd.f32 %v4630, %v4863
        %v4872 = vadd.f32 %v4631, %v4864
        %v4873 = vld [vmem:[#allocation2 + $0x60] sm:$0xff]
        %v4874 = vld [vmem:[#allocation2 + $0x68] sm:$0xff]
        %v4875 = vld [vmem:[#allocation2 + $0x70] sm:$0xff]
        %v4876 = vld [vmem:[#allocation2 + $0x78] sm:$0xff]
        %v4877 = vld [vmem:[#allocation2 + $0x80] sm:$0xff]
        %v4878 = vld [vmem:[#allocation2 + $0x88] sm:$0xff]
        %v4879 = vld [vmem:[#allocation2 + $0x90] sm:$0xff]
        %v4880 = vld [vmem:[#allocation2 + $0x98] sm:$0xff]
        %v4881 = vld [vmem:[#allocation2 + $0xa0] sm:$0xff]
        %v4882 = vld [vmem:[#allocation2 + $0xa8] sm:$0xff]
        %v4883 = vld [vmem:[#allocation2 + $0xb0] sm:$0xff]
        %v4884 = vld [vmem:[#allocation2 + $0xb8] sm:$0xff]
        %s4885 = scalar_lea.vmem %s3, 64
        %v4886 = vld [vmem:[%s4885] sm:$0xff]
        %v4887 = vld [vmem:[%s4885 + $0x8] sm:$0xff]
        %v4888 = vld [vmem:[%s4885 + $0x10] sm:$0xff]
        %v4889 = vld [vmem:[%s4885 + $0x18] sm:$0xff]
        %4891 = vset.pattern.permute.xlu0 0
        %4892 = vperm.xlu0 %4891, %v4886
        %v4893 = vpop.permute.xlu0 %4892
        %4896 = vset.pattern.permute.xlu0 0
        %4897 = vperm.xlu0 %4896, %v4887
        %v4898 = vpop.permute.xlu0 %4897
        %4901 = vset.pattern.permute.xlu0 0
        %4902 = vperm.xlu0 %4901, %v4888
        %v4903 = vpop.permute.xlu0 %4902
        %4906 = vset.pattern.permute.xlu0 0
        %4907 = vperm.xlu0 %4906, %v4889
        %v4908 = vpop.permute.xlu0 %4907
        %v4910 = vadd.f32 %v4865, %v4893
        %v4911 = vadd.f32 %v4866, %v4893
        %v4912 = vadd.f32 %v4867, %v4898
        %v4913 = vadd.f32 %v4868, %v4898
        %v4914 = vadd.f32 %v4869, %v4903
        %v4915 = vadd.f32 %v4870, %v4903
        %v4916 = vadd.f32 %v4871, %v4908
        %v4917 = vadd.f32 %v4872, %v4908
        %v4918 = vmax.f32 %v4910, 0.0
        %v4919 = vmax.f32 %v4911, 0.0
        %v4920 = vmax.f32 %v4912, 0.0
        %v4921 = vmax.f32 %v4913, 0.0
        %v4922 = vmax.f32 %v4914, 0.0
        %v4923 = vmax.f32 %v4915, 0.0
        %v4924 = vmax.f32 %v4916, 0.0
        %v4925 = vmax.f32 %v4917, 0.0
        %4934 = vrot.lane.b32.xlu0 %v4918, 16
        %v4935 = vpop.permute.xlu0 %4934
        %4936 = vrot.lane.b32.xlu0 %v4919, 16
        %v4937 = vpop.permute.xlu0 %4936
        %4938 = vrot.lane.b32.xlu0 %v4920, 16
        %v4939 = vpop.permute.xlu0 %4938
        %4940 = vrot.lane.b32.xlu0 %v4921, 16
        %v4941 = vpop.permute.xlu0 %4940
        %4942 = vrot.lane.b32.xlu0 %v4922, 16
        %v4943 = vpop.permute.xlu0 %4942
        %4944 = vrot.lane.b32.xlu0 %v4923, 16
        %v4945 = vpop.permute.xlu0 %4944
        %4946 = vrot.lane.b32.xlu0 %v4924, 16
        %v4947 = vpop.permute.xlu0 %4946
        %4948 = vrot.lane.b32.xlu0 %v4925, 16
        %v4949 = vpop.permute.xlu0 %4948
        %v4950 = vsel %vm463, %v4935, %v4937
        %v4951 = vsel %vm463, %v4939, %v4941
        %v4952 = vsel %vm463, %v4943, %v4945
        %v4953 = vsel %vm463, %v4947, %v4949
        %v4966 = vadd.f32 %v4873, %v4935
        %v4967 = vadd.f32 %v4874, %v4950
        %v4968 = vadd.f32 %v4875, %v4937
        %v4969 = vadd.f32 %v4876, %v4939
        %v4970 = vadd.f32 %v4877, %v4951
        %v4971 = vadd.f32 %v4878, %v4941
        %v4972 = vadd.f32 %v4879, %v4943
        %v4973 = vadd.f32 %v4880, %v4952
        %v4974 = vadd.f32 %v4881, %v4945
        %v4975 = vadd.f32 %v4882, %v4947
        %v4976 = vadd.f32 %v4883, %v4953
        %v4977 = vadd.f32 %v4884, %v4949
        %4990 = vrot.lane.b32.xlu0 %v4966, 16
        %v4991 = vpop.permute.xlu0 %4990
        %4992 = vrot.lane.b32.xlu0 %v4967, 16
        %v4993 = vpop.permute.xlu0 %4992
        %4994 = vrot.lane.b32.xlu0 %v4968, 16
        %v4995 = vpop.permute.xlu0 %4994
        %4996 = vrot.lane.b32.xlu0 %v4969, 16
        %v4997 = vpop.permute.xlu0 %4996
        %4998 = vrot.lane.b32.xlu0 %v4970, 16
        %v4999 = vpop.permute.xlu0 %4998
        %5000 = vrot.lane.b32.xlu0 %v4971, 16
        %v5001 = vpop.permute.xlu0 %5000
        %5002 = vrot.lane.b32.xlu0 %v4972, 16
        %v5003 = vpop.permute.xlu0 %5002
        %5004 = vrot.lane.b32.xlu0 %v4973, 16
        %v5005 = vpop.permute.xlu0 %5004
        %5006 = vrot.lane.b32.xlu0 %v4974, 16
        %v5007 = vpop.permute.xlu0 %5006
        %5008 = vrot.lane.b32.xlu0 %v4975, 16
        %v5009 = vpop.permute.xlu0 %5008
        %5010 = vrot.lane.b32.xlu0 %v4976, 16
        %v5011 = vpop.permute.xlu0 %5010
        %5012 = vrot.lane.b32.xlu0 %v4977, 16
        %v5013 = vpop.permute.xlu0 %5012
        %v5014 = vsel %vm463, %v4991, %v4993
        %v5015 = vsel %vm463, %v4993, %v4995
        %v5016 = vsel %vm463, %v4997, %v4999
        %v5017 = vsel %vm463, %v4999, %v5001
        %v5018 = vsel %vm463, %v5003, %v5005
        %v5019 = vsel %vm463, %v5005, %v5007
        %v5020 = vsel %vm463, %v5009, %v5011
        %v5021 = vsel %vm463, %v5011, %v5013
        %5034 = vst.msk [vmem:[#allocation2] sm:$0xff] %vm421, %v4991
        %5035 = vst [vmem:[#allocation2 + $0x8] sm:$0xff] %v5014
        %5036 = vst.msk [vmem:[#allocation2 + $0x10] sm:$0xff] %vm308, %v5015
        %5037 = vst.msk [vmem:[#allocation2 + $0x18] sm:$0xff] %vm421, %v4997
        %5038 = vst [vmem:[#allocation2 + $0x20] sm:$0xff] %v5016
        %5039 = vst.msk [vmem:[#allocation2 + $0x28] sm:$0xff] %vm308, %v5017
        %5040 = vst.msk [vmem:[#allocation2 + $0x30] sm:$0xff] %vm421, %v5003
        %5041 = vst [vmem:[#allocation2 + $0x38] sm:$0xff] %v5018
        %5042 = vst.msk [vmem:[#allocation2 + $0x40] sm:$0xff] %vm308, %v5019
        %5043 = vst.msk [vmem:[#allocation2 + $0x48] sm:$0xff] %vm421, %v5009
        %5044 = vst [vmem:[#allocation2 + $0x50] sm:$0xff] %v5020
        %5045 = vst.msk [vmem:[#allocation2 + $0x58] sm:$0xff] %vm308, %v5021
        %5046 = vst.msk [vmem:[#allocation2 + $0x60] sm:$0xff] %vm480, %v4966
        %5047 = vst [vmem:[#allocation2 + $0x68] sm:$0xff] %v4967
        %5048 = vst.msk [vmem:[#allocation2 + $0x70] sm:$0xff] %vm463, %v4968
        %5049 = vst.msk [vmem:[#allocation2 + $0x78] sm:$0xff] %vm480, %v4969
        %5050 = vst [vmem:[#allocation2 + $0x80] sm:$0xff] %v4970
        %5051 = vst.msk [vmem:[#allocation2 + $0x88] sm:$0xff] %vm463, %v4971
        %5052 = vst.msk [vmem:[#allocation2 + $0x90] sm:$0xff] %vm480, %v4972
        %5053 = vst [vmem:[#allocation2 + $0x98] sm:$0xff] %v4973
        %5054 = vst.msk [vmem:[#allocation2 + $0xa0] sm:$0xff] %vm463, %v4974
        %5055 = vst.msk [vmem:[#allocation2 + $0xa8] sm:$0xff] %vm480, %v4975
        %5056 = vst [vmem:[#allocation2 + $0xb0] sm:$0xff] %v4976
        %5057 = vst.msk [vmem:[#allocation2 + $0xb8] sm:$0xff] %vm463, %v4977
        %5058 = vrot.lane.b32.xlu0 %v4966, 112
        %v5059 = vpop.permute.xlu0 %5058
        %5060 = vrot.lane.b32.xlu0 %v4967, 112
        %v5061 = vpop.permute.xlu0 %5060
        %5062 = vrot.lane.b32.xlu0 %v4968, 112
        %v5063 = vpop.permute.xlu0 %5062
        %5064 = vrot.lane.b32.xlu0 %v4969, 112
        %v5065 = vpop.permute.xlu0 %5064
        %5066 = vrot.lane.b32.xlu0 %v4970, 112
        %v5067 = vpop.permute.xlu0 %5066
        %5068 = vrot.lane.b32.xlu0 %v4971, 112
        %v5069 = vpop.permute.xlu0 %5068
        %5070 = vrot.lane.b32.xlu0 %v4972, 112
        %v5071 = vpop.permute.xlu0 %5070
        %5072 = vrot.lane.b32.xlu0 %v4973, 112
        %v5073 = vpop.permute.xlu0 %5072
        %5074 = vrot.lane.b32.xlu0 %v4974, 112
        %v5075 = vpop.permute.xlu0 %5074
        %5076 = vrot.lane.b32.xlu0 %v4975, 112
        %v5077 = vpop.permute.xlu0 %5076
        %5078 = vrot.lane.b32.xlu0 %v4976, 112
        %v5079 = vpop.permute.xlu0 %5078
        %5080 = vrot.lane.b32.xlu0 %v4977, 112
        %v5081 = vpop.permute.xlu0 %5080
        %v5082 = vsel %vm984, %v5059, %v5061
        %v5083 = vsel %vm984, %v5061, %v5063
        %v5084 = vsel %vm984, %v5065, %v5067
        %v5085 = vsel %vm984, %v5067, %v5069
        %v5086 = vsel %vm984, %v5071, %v5073
        %v5087 = vsel %vm984, %v5073, %v5075
        %v5088 = vsel %vm984, %v5077, %v5079
        %v5089 = vsel %vm984, %v5079, %v5081
        %5098 = vst [vmem:[#allocation2 + $0xc0] sm:$0xff] %v5082
        %5099 = vst [vmem:[#allocation2 + $0xc8] sm:$0xff] %v5083
        %5100 = vst [vmem:[#allocation2 + $0xd8] sm:$0xff] %v5084
        %5101 = vst [vmem:[#allocation2 + $0xe0] sm:$0xff] %v5085
        %5102 = vst [vmem:[#allocation2 + $0xf0] sm:$0xff] %v5086
        %5103 = vst [vmem:[#allocation2 + $0xf8] sm:$0xff] %v5087
        %5104 = vst [vmem:[#allocation2 + $0x108] sm:$0xff] %v5088
        %5105 = vst [vmem:[#allocation2 + $0x110] sm:$0xff] %v5089
        %v5106 = vld [vmem:[#allocation2] sm:$0xff]
        %v5107 = vld [vmem:[#allocation2 + $0x8] sm:$0xff]
        %v5108 = vld [vmem:[#allocation2 + $0x10] sm:$0xff]
        %v5109 = vld [vmem:[#allocation2 + $0x18] sm:$0xff]
        %v5110 = vld [vmem:[#allocation2 + $0x20] sm:$0xff]
        %v5111 = vld [vmem:[#allocation2 + $0x28] sm:$0xff]
        %v5112 = vld [vmem:[#allocation2 + $0x30] sm:$0xff]
        %v5113 = vld [vmem:[#allocation2 + $0x38] sm:$0xff]
        %v5114 = vld [vmem:[#allocation2 + $0x40] sm:$0xff]
        %v5115 = vld [vmem:[#allocation2 + $0x48] sm:$0xff]
        %v5116 = vld [vmem:[#allocation2 + $0x50] sm:$0xff]
        %v5117 = vld [vmem:[#allocation2 + $0x58] sm:$0xff]
        %v5118 = vld [vmem:[#allocation2 + $0x60] sm:$0xff]
        %v5119 = vld [vmem:[#allocation2 + $0x68] sm:$0xff]
        %v5120 = vld [vmem:[#allocation2 + $0x70] sm:$0xff]
        %v5121 = vld [vmem:[#allocation2 + $0x78] sm:$0xff]
        %v5122 = vld [vmem:[#allocation2 + $0x80] sm:$0xff]
        %v5123 = vld [vmem:[#allocation2 + $0x88] sm:$0xff]
        %v5124 = vld [vmem:[#allocation2 + $0x90] sm:$0xff]
        %v5125 = vld [vmem:[#allocation2 + $0x98] sm:$0xff]
        %v5126 = vld [vmem:[#allocation2 + $0xa0] sm:$0xff]
        %v5127 = vld [vmem:[#allocation2 + $0xa8] sm:$0xff]
        %v5128 = vld [vmem:[#allocation2 + $0xb0] sm:$0xff]
        %v5129 = vld [vmem:[#allocation2 + $0xb8] sm:$0xff]
        %v5130 = vld [vmem:[#allocation2 + $0xc0] sm:$0xff]
        %v5131 = vld [vmem:[#allocation2 + $0xc8] sm:$0xff]
        %v5132 = vld [vmem:[#allocation2 + $0xd0] sm:$0xff]
        %v5133 = vld [vmem:[#allocation2 + $0xd8] sm:$0xff]
        %v5134 = vld [vmem:[#allocation2 + $0xe0] sm:$0xff]
        %v5135 = vld [vmem:[#allocation2 + $0xe8] sm:$0xff]
        %v5136 = vld [vmem:[#allocation2 + $0xf0] sm:$0xff]
        %v5137 = vld [vmem:[#allocation2 + $0xf8] sm:$0xff]
        %v5138 = vld [vmem:[#allocation2 + $0x100] sm:$0xff]
        %v5139 = vld [vmem:[#allocation2 + $0x108] sm:$0xff]
        %v5140 = vld [vmem:[#allocation2 + $0x110] sm:$0xff]
        %v5141 = vld [vmem:[#allocation2 + $0x118] sm:$0xff]
        %v5142 = vld [vmem:[#allocation2 + $0x120] sm:$0xff]
        %v5143 = vld [vmem:[#allocation2 + $0x128] sm:$0xff]
        %v5144 = vld [vmem:[#allocation2 + $0x130] sm:$0xff]
        %v5145 = vld [vmem:[#allocation2 + $0x138] sm:$0xff]
        %v5146 = vld [vmem:[#allocation2 + $0x140] sm:$0xff]
        %v5147 = vld [vmem:[#allocation2 + $0x148] sm:$0xff]
        %v5148 = vld [vmem:[#allocation2 + $0x150] sm:$0xff]
        %v5149 = vld [vmem:[#allocation2 + $0x158] sm:$0xff]
        %v5150 = vld [vmem:[#allocation2 + $0x160] sm:$0xff]
        %s5151 = scalar_lea.vmem %s4, 48
        %v5152 = vld [vmem:[%s5151] sm:$0xff]
        %5198 = vrot.lane.b32.xlu0 %v5106, 113
        %v5199 = vpop.permute.xlu0 %5198
        %5200 = vrot.lane.b32.xlu0 %v5107, 113
        %v5201 = vpop.permute.xlu0 %5200
        %5202 = vrot.lane.b32.xlu0 %v5108, 113
        %v5203 = vpop.permute.xlu0 %5202
        %5204 = vrot.lane.b32.xlu0 %v5109, 113
        %v5205 = vpop.permute.xlu0 %5204
        %5206 = vrot.lane.b32.xlu0 %v5110, 113
        %v5207 = vpop.permute.xlu0 %5206
        %5208 = vrot.lane.b32.xlu0 %v5111, 113
        %v5209 = vpop.permute.xlu0 %5208
        %5210 = vrot.lane.b32.xlu0 %v5112, 113
        %v5211 = vpop.permute.xlu0 %5210
        %5212 = vrot.lane.b32.xlu0 %v5113, 113
        %v5213 = vpop.permute.xlu0 %5212
        %5214 = vrot.lane.b32.xlu0 %v5114, 113
        %v5215 = vpop.permute.xlu0 %5214
        %5216 = vrot.lane.b32.xlu0 %v5115, 113
        %v5217 = vpop.permute.xlu0 %5216
        %5218 = vrot.lane.b32.xlu0 %v5116, 113
        %v5219 = vpop.permute.xlu0 %5218
        %5220 = vrot.lane.b32.xlu0 %v5117, 113
        %v5221 = vpop.permute.xlu0 %5220
        %5222 = vrot.lane.b32.xlu0 %v5118, 113
        %v5223 = vpop.permute.xlu0 %5222
        %5224 = vrot.lane.b32.xlu0 %v5119, 113
        %v5225 = vpop.permute.xlu0 %5224
        %5226 = vrot.lane.b32.xlu0 %v5120, 113
        %v5227 = vpop.permute.xlu0 %5226
        %5228 = vrot.lane.b32.xlu0 %v5121, 113
        %v5229 = vpop.permute.xlu0 %5228
        %5230 = vrot.lane.b32.xlu0 %v5122, 113
        %v5231 = vpop.permute.xlu0 %5230
        %5232 = vrot.lane.b32.xlu0 %v5123, 113
        %v5233 = vpop.permute.xlu0 %5232
        %5234 = vrot.lane.b32.xlu0 %v5124, 113
        %v5235 = vpop.permute.xlu0 %5234
        %5236 = vrot.lane.b32.xlu0 %v5125, 113
        %v5237 = vpop.permute.xlu0 %5236
        %5238 = vrot.lane.b32.xlu0 %v5126, 113
        %v5239 = vpop.permute.xlu0 %5238
        %5240 = vrot.lane.b32.xlu0 %v5127, 113
        %v5241 = vpop.permute.xlu0 %5240
        %5242 = vrot.lane.b32.xlu0 %v5128, 113
        %v5243 = vpop.permute.xlu0 %5242
        %5244 = vrot.lane.b32.xlu0 %v5129, 113
        %v5245 = vpop.permute.xlu0 %5244
        %5246 = vrot.lane.b32.xlu0 %v5130, 113
        %v5247 = vpop.permute.xlu0 %5246
        %5248 = vrot.lane.b32.xlu0 %v5131, 113
        %v5249 = vpop.permute.xlu0 %5248
        %5250 = vrot.lane.b32.xlu0 %v5132, 113
        %v5251 = vpop.permute.xlu0 %5250
        %5252 = vrot.lane.b32.xlu0 %v5133, 113
        %v5253 = vpop.permute.xlu0 %5252
        %5254 = vrot.lane.b32.xlu0 %v5134, 113
        %v5255 = vpop.permute.xlu0 %5254
        %5256 = vrot.lane.b32.xlu0 %v5135, 113
        %v5257 = vpop.permute.xlu0 %5256
        %5258 = vrot.lane.b32.xlu0 %v5136, 113
        %v5259 = vpop.permute.xlu0 %5258
        %5260 = vrot.lane.b32.xlu0 %v5137, 113
        %v5261 = vpop.permute.xlu0 %5260
        %5262 = vrot.lane.b32.xlu0 %v5138, 113
        %v5263 = vpop.permute.xlu0 %5262
        %5264 = vrot.lane.b32.xlu0 %v5139, 113
        %v5265 = vpop.permute.xlu0 %5264
        %5266 = vrot.lane.b32.xlu0 %v5140, 113
        %v5267 = vpop.permute.xlu0 %5266
        %5268 = vrot.lane.b32.xlu0 %v5141, 113
        %v5269 = vpop.permute.xlu0 %5268
        %5270 = vrot.lane.b32.xlu0 %v5142, 113
        %v5271 = vpop.permute.xlu0 %5270
        %5272 = vrot.lane.b32.xlu0 %v5143, 113
        %v5273 = vpop.permute.xlu0 %5272
        %5274 = vrot.lane.b32.xlu0 %v5144, 113
        %v5275 = vpop.permute.xlu0 %5274
        %5276 = vrot.lane.b32.xlu0 %v5145, 113
        %v5277 = vpop.permute.xlu0 %5276
        %5278 = vrot.lane.b32.xlu0 %v5146, 113
        %v5279 = vpop.permute.xlu0 %5278
        %5280 = vrot.lane.b32.xlu0 %v5147, 113
        %v5281 = vpop.permute.xlu0 %5280
        %5282 = vrot.lane.b32.xlu0 %v5148, 113
        %v5283 = vpop.permute.xlu0 %5282
        %5284 = vrot.lane.b32.xlu0 %v5149, 113
        %v5285 = vpop.permute.xlu0 %5284
        %5286 = vrot.lane.b32.xlu0 %v5150, 113
        %v5287 = vpop.permute.xlu0 %5286
        %v5288 = vsel %vm741, %v5199, %v5201
        %v5289 = vsel %vm741, %v5201, %v5203
        %v5290 = vsel %vm741, %v5205, %v5207
        %v5291 = vsel %vm741, %v5207, %v5209
        %v5292 = vsel %vm741, %v5211, %v5213
        %v5293 = vsel %vm741, %v5213, %v5215
        %v5294 = vsel %vm741, %v5217, %v5219
        %v5295 = vsel %vm741, %v5219, %v5221
        %v5296 = vsel %vm741, %v5223, %v5225
        %v5297 = vsel %vm741, %v5225, %v5227
        %v5298 = vsel %vm741, %v5229, %v5231
        %v5299 = vsel %vm741, %v5231, %v5233
        %v5300 = vsel %vm741, %v5235, %v5237
        %v5301 = vsel %vm741, %v5237, %v5239
        %v5302 = vsel %vm741, %v5241, %v5243
        %v5303 = vsel %vm741, %v5243, %v5245
        %v5304 = vsel %vm741, %v5247, %v5249
        %v5305 = vsel %vm741, %v5249, %v5251
        %v5306 = vsel %vm741, %v5253, %v5255
        %v5307 = vsel %vm741, %v5255, %v5257
        %v5308 = vsel %vm741, %v5259, %v5261
        %v5309 = vsel %vm741, %v5261, %v5263
        %v5310 = vsel %vm741, %v5265, %v5267
        %v5311 = vsel %vm741, %v5267, %v5269
        %v5312 = vsel %vm741, %v5271, %v5273
        %v5313 = vsel %vm741, %v5273, %v5275
        %v5314 = vsel %vm741, %v5277, %v5279
        %v5315 = vsel %vm741, %v5279, %v5281
        %v5316 = vsel %vm741, %v5283, %v5285
        %v5317 = vsel %vm741, %v5285, %v5287
        %v5349 = vsel %vm802, %v5152, 0
        %5351 = vmatpush.msra.mxu0 0.0
        %5352 = vmatpush.msra.mxu0 %v5316
        %5353 = vmatpush.msra.mxu0 %v5314
        %5354 = vmatpush.msra.mxu0 %v5312
        %5355 = vmatpush.msra.mxu0 %v5310
        %5356 = vmatpush.msra.mxu0 %v5308
        %5357 = vmatpush.msra.mxu0 %v5306
        %5358 = vmatpush.msra.mxu0 %v5304
        %5359 = vmatpush.msra.mxu0 %v5302
        %5360 = vmatpush.msra.mxu0 %v5300
        %5361 = vmatpush.msra.mxu0 %v5298
        %5362 = vmatpush.msra.mxu0 %v5296
        %5363 = vmatpush.msra.mxu0 %v5294
        %5364 = vmatpush.msra.mxu0 %v5292
        %5365 = vmatpush.msra.mxu0 %v5290
        %5366 = vmatpush.msra.mxu0 %v5288
        %5367 = vmatmul.f32.gmra.mxu0 %v5349
        %v5368 = vpop.f32.mrf.mxu0
        %v5369 = vadd.f32 0.0, %v5368
        %5370 = vdwg.mxu0
        %5371 = vmatpush.msra.mxu0 0.0
        %5372 = vmatpush.msra.mxu0 %v5317
        %5373 = vmatpush.msra.mxu0 %v5315
        %5374 = vmatpush.msra.mxu0 %v5313
        %5375 = vmatpush.msra.mxu0 %v5311
        %5376 = vmatpush.msra.mxu0 %v5309
        %5377 = vmatpush.msra.mxu0 %v5307
        %5378 = vmatpush.msra.mxu0 %v5305
        %5379 = vmatpush.msra.mxu0 %v5303
        %5380 = vmatpush.msra.mxu0 %v5301
        %5381 = vmatpush.msra.mxu0 %v5299
        %5382 = vmatpush.msra.mxu0 %v5297
        %5383 = vmatpush.msra.mxu0 %v5295
        %5384 = vmatpush.msra.mxu0 %v5293
        %5385 = vmatpush.msra.mxu0 %v5291
        %5386 = vmatpush.msra.mxu0 %v5289
        %5387 = vmatmul.f32.gmra.mxu0 %v5349
        %v5388 = vpop.f32.mrf.mxu0
        %v5389 = vadd.f32 0.0, %v5388
        %5390 = vdwg.mxu0
        %v5391 = vmul.f32 %v5369, %v549
        %v5392 = vmul.f32 %v5389, %v550
        %v5393 = vadd.f32 %v5391, 0.0
        %v5394 = vadd.f32 %v5392, 0.0
        %s5395 = scalar_lea.vmem %s4, 56
        %v5396 = vld [vmem:[%s5395] sm:$0xff]
        %5397 = vrot.lane.b32.xlu0 %v5106, 112
        %v5398 = vpop.permute.xlu0 %5397
        %5399 = vrot.lane.b32.xlu0 %v5107, 112
        %v5400 = vpop.permute.xlu0 %5399
        %5401 = vrot.lane.b32.xlu0 %v5108, 112
        %v5402 = vpop.permute.xlu0 %5401
        %5403 = vrot.lane.b32.xlu0 %v5109, 112
        %v5404 = vpop.permute.xlu0 %5403
        %5405 = vrot.lane.b32.xlu0 %v5110, 112
        %v5406 = vpop.permute.xlu0 %5405
        %5407 = vrot.lane.b32.xlu0 %v5111, 112
        %v5408 = vpop.permute.xlu0 %5407
        %5409 = vrot.lane.b32.xlu0 %v5112, 112
        %v5410 = vpop.permute.xlu0 %5409
        %5411 = vrot.lane.b32.xlu0 %v5113, 112
        %v5412 = vpop.permute.xlu0 %5411
        %5413 = vrot.lane.b32.xlu0 %v5114, 112
        %v5414 = vpop.permute.xlu0 %5413
        %5415 = vrot.lane.b32.xlu0 %v5115, 112
        %v5416 = vpop.permute.xlu0 %5415
        %5417 = vrot.lane.b32.xlu0 %v5116, 112
        %v5418 = vpop.permute.xlu0 %5417
        %5419 = vrot.lane.b32.xlu0 %v5117, 112
        %v5420 = vpop.permute.xlu0 %5419
        %5421 = vrot.lane.b32.xlu0 %v5118, 112
        %v5422 = vpop.permute.xlu0 %5421
        %5423 = vrot.lane.b32.xlu0 %v5119, 112
        %v5424 = vpop.permute.xlu0 %5423
        %5425 = vrot.lane.b32.xlu0 %v5120, 112
        %v5426 = vpop.permute.xlu0 %5425
        %5427 = vrot.lane.b32.xlu0 %v5121, 112
        %v5428 = vpop.permute.xlu0 %5427
        %5429 = vrot.lane.b32.xlu0 %v5122, 112
        %v5430 = vpop.permute.xlu0 %5429
        %5431 = vrot.lane.b32.xlu0 %v5123, 112
        %v5432 = vpop.permute.xlu0 %5431
        %5433 = vrot.lane.b32.xlu0 %v5124, 112
        %v5434 = vpop.permute.xlu0 %5433
        %5435 = vrot.lane.b32.xlu0 %v5125, 112
        %v5436 = vpop.permute.xlu0 %5435
        %5437 = vrot.lane.b32.xlu0 %v5126, 112
        %v5438 = vpop.permute.xlu0 %5437
        %5439 = vrot.lane.b32.xlu0 %v5127, 112
        %v5440 = vpop.permute.xlu0 %5439
        %5441 = vrot.lane.b32.xlu0 %v5128, 112
        %v5442 = vpop.permute.xlu0 %5441
        %5443 = vrot.lane.b32.xlu0 %v5129, 112
        %v5444 = vpop.permute.xlu0 %5443
        %5445 = vrot.lane.b32.xlu0 %v5130, 112
        %v5446 = vpop.permute.xlu0 %5445
        %5447 = vrot.lane.b32.xlu0 %v5131, 112
        %v5448 = vpop.permute.xlu0 %5447
        %5449 = vrot.lane.b32.xlu0 %v5132, 112
        %v5450 = vpop.permute.xlu0 %5449
        %5451 = vrot.lane.b32.xlu0 %v5133, 112
        %v5452 = vpop.permute.xlu0 %5451
        %5453 = vrot.lane.b32.xlu0 %v5134, 112
        %v5454 = vpop.permute.xlu0 %5453
        %5455 = vrot.lane.b32.xlu0 %v5135, 112
        %v5456 = vpop.permute.xlu0 %5455
        %5457 = vrot.lane.b32.xlu0 %v5136, 112
        %v5458 = vpop.permute.xlu0 %5457
        %5459 = vrot.lane.b32.xlu0 %v5137, 112
        %v5460 = vpop.permute.xlu0 %5459
        %5461 = vrot.lane.b32.xlu0 %v5138, 112
        %v5462 = vpop.permute.xlu0 %5461
        %5463 = vrot.lane.b32.xlu0 %v5139, 112
        %v5464 = vpop.permute.xlu0 %5463
        %5465 = vrot.lane.b32.xlu0 %v5140, 112
        %v5466 = vpop.permute.xlu0 %5465
        %5467 = vrot.lane.b32.xlu0 %v5141, 112
        %v5468 = vpop.permute.xlu0 %5467
        %5469 = vrot.lane.b32.xlu0 %v5142, 112
        %v5470 = vpop.permute.xlu0 %5469
        %5471 = vrot.lane.b32.xlu0 %v5143, 112
        %v5472 = vpop.permute.xlu0 %5471
        %5473 = vrot.lane.b32.xlu0 %v5144, 112
        %v5474 = vpop.permute.xlu0 %5473
        %5475 = vrot.lane.b32.xlu0 %v5145, 112
        %v5476 = vpop.permute.xlu0 %5475
        %5477 = vrot.lane.b32.xlu0 %v5146, 112
        %v5478 = vpop.permute.xlu0 %5477
        %5479 = vrot.lane.b32.xlu0 %v5147, 112
        %v5480 = vpop.permute.xlu0 %5479
        %5481 = vrot.lane.b32.xlu0 %v5148, 112
        %v5482 = vpop.permute.xlu0 %5481
        %5483 = vrot.lane.b32.xlu0 %v5149, 112
        %v5484 = vpop.permute.xlu0 %5483
        %5485 = vrot.lane.b32.xlu0 %v5150, 112
        %v5486 = vpop.permute.xlu0 %5485
        %v5487 = vsel %vm984, %v5398, %v5400
        %v5488 = vsel %vm984, %v5400, %v5402
        %v5489 = vsel %vm984, %v5404, %v5406
        %v5490 = vsel %vm984, %v5406, %v5408
        %v5491 = vsel %vm984, %v5410, %v5412
        %v5492 = vsel %vm984, %v5412, %v5414
        %v5493 = vsel %vm984, %v5416, %v5418
        %v5494 = vsel %vm984, %v5418, %v5420
        %v5495 = vsel %vm984, %v5422, %v5424
        %v5496 = vsel %vm984, %v5424, %v5426
        %v5497 = vsel %vm984, %v5428, %v5430
        %v5498 = vsel %vm984, %v5430, %v5432
        %v5499 = vsel %vm984, %v5434, %v5436
        %v5500 = vsel %vm984, %v5436, %v5438
        %v5501 = vsel %vm984, %v5440, %v5442
        %v5502 = vsel %vm984, %v5442, %v5444
        %v5503 = vsel %vm984, %v5446, %v5448
        %v5504 = vsel %vm984, %v5448, %v5450
        %v5505 = vsel %vm984, %v5452, %v5454
        %v5506 = vsel %vm984, %v5454, %v5456
        %v5507 = vsel %vm984, %v5458, %v5460
        %v5508 = vsel %vm984, %v5460, %v5462
        %v5509 = vsel %vm984, %v5464, %v5466
        %v5510 = vsel %vm984, %v5466, %v5468
        %v5511 = vsel %vm984, %v5470, %v5472
        %v5512 = vsel %vm984, %v5472, %v5474
        %v5513 = vsel %vm984, %v5476, %v5478
        %v5514 = vsel %vm984, %v5478, %v5480
        %v5515 = vsel %vm984, %v5482, %v5484
        %v5516 = vsel %vm984, %v5484, %v5486
        %v5548 = vsel %vm802, %v5396, 0
        %5550 = vmatpush.msra.mxu0 0.0
        %5551 = vmatpush.msra.mxu0 %v5515
        %5552 = vmatpush.msra.mxu0 %v5513
        %5553 = vmatpush.msra.mxu0 %v5511
        %5554 = vmatpush.msra.mxu0 %v5509
        %5555 = vmatpush.msra.mxu0 %v5507
        %5556 = vmatpush.msra.mxu0 %v5505
        %5557 = vmatpush.msra.mxu0 %v5503
        %5558 = vmatpush.msra.mxu0 %v5501
        %5559 = vmatpush.msra.mxu0 %v5499
        %5560 = vmatpush.msra.mxu0 %v5497
        %5561 = vmatpush.msra.mxu0 %v5495
        %5562 = vmatpush.msra.mxu0 %v5493
        %5563 = vmatpush.msra.mxu0 %v5491
        %5564 = vmatpush.msra.mxu0 %v5489
        %5565 = vmatpush.msra.mxu0 %v5487
        %5566 = vmatmul.f32.gmra.mxu0 %v5548
        %v5567 = vpop.f32.mrf.mxu0
        %v5568 = vadd.f32 0.0, %v5567
        %5569 = vdwg.mxu0
        %5570 = vmatpush.msra.mxu0 0.0
        %5571 = vmatpush.msra.mxu0 %v5516
        %5572 = vmatpush.msra.mxu0 %v5514
        %5573 = vmatpush.msra.mxu0 %v5512
        %5574 = vmatpush.msra.mxu0 %v5510
        %5575 = vmatpush.msra.mxu0 %v5508
        %5576 = vmatpush.msra.mxu0 %v5506
        %5577 = vmatpush.msra.mxu0 %v5504
        %5578 = vmatpush.msra.mxu0 %v5502
        %5579 = vmatpush.msra.mxu0 %v5500
        %5580 = vmatpush.msra.mxu0 %v5498
        %5581 = vmatpush.msra.mxu0 %v5496
        %5582 = vmatpush.msra.mxu0 %v5494
        %5583 = vmatpush.msra.mxu0 %v5492
        %5584 = vmatpush.msra.mxu0 %v5490
        %5585 = vmatpush.msra.mxu0 %v5488
        %5586 = vmatmul.f32.gmra.mxu0 %v5548
        %v5587 = vpop.f32.mrf.mxu0
        %v5588 = vadd.f32 0.0, %v5587
        %5589 = vdwg.mxu0
        %v5590 = vadd.f32 %v5393, %v5568
        %v5591 = vadd.f32 %v5394, %v5588
        %s5592 = scalar_lea.vmem %s4, 64
        %v5593 = vld [vmem:[%s5592] sm:$0xff]
        %5594 = vrot.lane.b32.xlu0 %v5106, 111
        %v5595 = vpop.permute.xlu0 %5594
        %5596 = vrot.lane.b32.xlu0 %v5107, 111
        %v5597 = vpop.permute.xlu0 %5596
        %5598 = vrot.lane.b32.xlu0 %v5108, 111
        %v5599 = vpop.permute.xlu0 %5598
        %5600 = vrot.lane.b32.xlu0 %v5109, 111
        %v5601 = vpop.permute.xlu0 %5600
        %5602 = vrot.lane.b32.xlu0 %v5110, 111
        %v5603 = vpop.permute.xlu0 %5602
        %5604 = vrot.lane.b32.xlu0 %v5111, 111
        %v5605 = vpop.permute.xlu0 %5604
        %5606 = vrot.lane.b32.xlu0 %v5112, 111
        %v5607 = vpop.permute.xlu0 %5606
        %5608 = vrot.lane.b32.xlu0 %v5113, 111
        %v5609 = vpop.permute.xlu0 %5608
        %5610 = vrot.lane.b32.xlu0 %v5114, 111
        %v5611 = vpop.permute.xlu0 %5610
        %5612 = vrot.lane.b32.xlu0 %v5115, 111
        %v5613 = vpop.permute.xlu0 %5612
        %5614 = vrot.lane.b32.xlu0 %v5116, 111
        %v5615 = vpop.permute.xlu0 %5614
        %5616 = vrot.lane.b32.xlu0 %v5117, 111
        %v5617 = vpop.permute.xlu0 %5616
        %5618 = vrot.lane.b32.xlu0 %v5118, 111
        %v5619 = vpop.permute.xlu0 %5618
        %5620 = vrot.lane.b32.xlu0 %v5119, 111
        %v5621 = vpop.permute.xlu0 %5620
        %5622 = vrot.lane.b32.xlu0 %v5120, 111
        %v5623 = vpop.permute.xlu0 %5622
        %5624 = vrot.lane.b32.xlu0 %v5121, 111
        %v5625 = vpop.permute.xlu0 %5624
        %5626 = vrot.lane.b32.xlu0 %v5122, 111
        %v5627 = vpop.permute.xlu0 %5626
        %5628 = vrot.lane.b32.xlu0 %v5123, 111
        %v5629 = vpop.permute.xlu0 %5628
        %5630 = vrot.lane.b32.xlu0 %v5124, 111
        %v5631 = vpop.permute.xlu0 %5630
        %5632 = vrot.lane.b32.xlu0 %v5125, 111
        %v5633 = vpop.permute.xlu0 %5632
        %5634 = vrot.lane.b32.xlu0 %v5126, 111
        %v5635 = vpop.permute.xlu0 %5634
        %5636 = vrot.lane.b32.xlu0 %v5127, 111
        %v5637 = vpop.permute.xlu0 %5636
        %5638 = vrot.lane.b32.xlu0 %v5128, 111
        %v5639 = vpop.permute.xlu0 %5638
        %5640 = vrot.lane.b32.xlu0 %v5129, 111
        %v5641 = vpop.permute.xlu0 %5640
        %5642 = vrot.lane.b32.xlu0 %v5130, 111
        %v5643 = vpop.permute.xlu0 %5642
        %5644 = vrot.lane.b32.xlu0 %v5131, 111
        %v5645 = vpop.permute.xlu0 %5644
        %5646 = vrot.lane.b32.xlu0 %v5132, 111
        %v5647 = vpop.permute.xlu0 %5646
        %5648 = vrot.lane.b32.xlu0 %v5133, 111
        %v5649 = vpop.permute.xlu0 %5648
        %5650 = vrot.lane.b32.xlu0 %v5134, 111
        %v5651 = vpop.permute.xlu0 %5650
        %5652 = vrot.lane.b32.xlu0 %v5135, 111
        %v5653 = vpop.permute.xlu0 %5652
        %5654 = vrot.lane.b32.xlu0 %v5136, 111
        %v5655 = vpop.permute.xlu0 %5654
        %5656 = vrot.lane.b32.xlu0 %v5137, 111
        %v5657 = vpop.permute.xlu0 %5656
        %5658 = vrot.lane.b32.xlu0 %v5138, 111
        %v5659 = vpop.permute.xlu0 %5658
        %5660 = vrot.lane.b32.xlu0 %v5139, 111
        %v5661 = vpop.permute.xlu0 %5660
        %5662 = vrot.lane.b32.xlu0 %v5140, 111
        %v5663 = vpop.permute.xlu0 %5662
        %5664 = vrot.lane.b32.xlu0 %v5141, 111
        %v5665 = vpop.permute.xlu0 %5664
        %5666 = vrot.lane.b32.xlu0 %v5142, 111
        %v5667 = vpop.permute.xlu0 %5666
        %5668 = vrot.lane.b32.xlu0 %v5143, 111
        %v5669 = vpop.permute.xlu0 %5668
        %5670 = vrot.lane.b32.xlu0 %v5144, 111
        %v5671 = vpop.permute.xlu0 %5670
        %5672 = vrot.lane.b32.xlu0 %v5145, 111
        %v5673 = vpop.permute.xlu0 %5672
        %5674 = vrot.lane.b32.xlu0 %v5146, 111
        %v5675 = vpop.permute.xlu0 %5674
        %5676 = vrot.lane.b32.xlu0 %v5147, 111
        %v5677 = vpop.permute.xlu0 %5676
        %5678 = vrot.lane.b32.xlu0 %v5148, 111
        %v5679 = vpop.permute.xlu0 %5678
        %5680 = vrot.lane.b32.xlu0 %v5149, 111
        %v5681 = vpop.permute.xlu0 %5680
        %5682 = vrot.lane.b32.xlu0 %v5150, 111
        %v5683 = vpop.permute.xlu0 %5682
        %v5684 = vsel %vm1218, %v5595, %v5597
        %v5685 = vsel %vm1218, %v5597, %v5599
        %v5686 = vsel %vm1218, %v5601, %v5603
        %v5687 = vsel %vm1218, %v5603, %v5605
        %v5688 = vsel %vm1218, %v5607, %v5609
        %v5689 = vsel %vm1218, %v5609, %v5611
        %v5690 = vsel %vm1218, %v5613, %v5615
        %v5691 = vsel %vm1218, %v5615, %v5617
        %v5692 = vsel %vm1218, %v5619, %v5621
        %v5693 = vsel %vm1218, %v5621, %v5623
        %v5694 = vsel %vm1218, %v5625, %v5627
        %v5695 = vsel %vm1218, %v5627, %v5629
        %v5696 = vsel %vm1218, %v5631, %v5633
        %v5697 = vsel %vm1218, %v5633, %v5635
        %v5698 = vsel %vm1218, %v5637, %v5639
        %v5699 = vsel %vm1218, %v5639, %v5641
        %v5700 = vsel %vm1218, %v5643, %v5645
        %v5701 = vsel %vm1218, %v5645, %v5647
        %v5702 = vsel %vm1218, %v5649, %v5651
        %v5703 = vsel %vm1218, %v5651, %v5653
        %v5704 = vsel %vm1218, %v5655, %v5657
        %v5705 = vsel %vm1218, %v5657, %v5659
        %v5706 = vsel %vm1218, %v5661, %v5663
        %v5707 = vsel %vm1218, %v5663, %v5665
        %v5708 = vsel %vm1218, %v5667, %v5669
        %v5709 = vsel %vm1218, %v5669, %v5671
        %v5710 = vsel %vm1218, %v5673, %v5675
        %v5711 = vsel %vm1218, %v5675, %v5677
        %v5712 = vsel %vm1218, %v5679, %v5681
        %v5713 = vsel %vm1218, %v5681, %v5683
        %v5745 = vsel %vm802, %v5593, 0
        %5747 = vmatpush.msra.mxu0 0.0
        %5748 = vmatpush.msra.mxu0 %v5712
        %5749 = vmatpush.msra.mxu0 %v5710
        %5750 = vmatpush.msra.mxu0 %v5708
        %5751 = vmatpush.msra.mxu0 %v5706
        %5752 = vmatpush.msra.mxu0 %v5704
        %5753 = vmatpush.msra.mxu0 %v5702
        %5754 = vmatpush.msra.mxu0 %v5700
        %5755 = vmatpush.msra.mxu0 %v5698
        %5756 = vmatpush.msra.mxu0 %v5696
        %5757 = vmatpush.msra.mxu0 %v5694
        %5758 = vmatpush.msra.mxu0 %v5692
        %5759 = vmatpush.msra.mxu0 %v5690
        %5760 = vmatpush.msra.mxu0 %v5688
        %5761 = vmatpush.msra.mxu0 %v5686
        %5762 = vmatpush.msra.mxu0 %v5684
        %5763 = vmatmul.f32.gmra.mxu0 %v5745
        %v5764 = vpop.f32.mrf.mxu0
        %v5765 = vadd.f32 0.0, %v5764
        %5766 = vdwg.mxu0
        %5767 = vmatpush.msra.mxu0 0.0
        %5768 = vmatpush.msra.mxu0 %v5713
        %5769 = vmatpush.msra.mxu0 %v5711
        %5770 = vmatpush.msra.mxu0 %v5709
        %5771 = vmatpush.msra.mxu0 %v5707
        %5772 = vmatpush.msra.mxu0 %v5705
        %5773 = vmatpush.msra.mxu0 %v5703
        %5774 = vmatpush.msra.mxu0 %v5701
        %5775 = vmatpush.msra.mxu0 %v5699
        %5776 = vmatpush.msra.mxu0 %v5697
        %5777 = vmatpush.msra.mxu0 %v5695
        %5778 = vmatpush.msra.mxu0 %v5693
        %5779 = vmatpush.msra.mxu0 %v5691
        %5780 = vmatpush.msra.mxu0 %v5689
        %5781 = vmatpush.msra.mxu0 %v5687
        %5782 = vmatpush.msra.mxu0 %v5685
        %5783 = vmatmul.f32.gmra.mxu0 %v5745
        %v5784 = vpop.f32.mrf.mxu0
        %v5785 = vadd.f32 0.0, %v5784
        %5786 = vdwg.mxu0
        %v5787 = vmul.f32 %v5765, %v555
        %v5788 = vmul.f32 %v5785, %v556
        %v5789 = vadd.f32 %v5590, %v5787
        %v5790 = vadd.f32 %v5591, %v5788
        %v5793 = vrot.slane %v5790, 7
        %v5794 = vsel %vm2284, %v5789, %v5793
        %v5796 = vadd.f32 %v4050, %v5794
        %s5797 = scalar_lea.vmem %s5, 2
        %v5798 = vld [vmem:[%s5797] sm:$0x1]
        %5800 = vset.pattern.permute.xlu0 0
        %5801 = vperm.xlu0 %5800, %v5798
        %v5802 = vpop.permute.xlu0 %5801
        %v5804 = vperm.slane %v5802, 0
        %v5805 = vadd.f32 %v5796, %v5804
        %5806 = vst.msk [vmem:[%s301] sm:$0x3] %vm514, %v5805
        %s5807 = sand.u32 %s168, 1
        %s5808 = scalar_lea.sflag [#allocation5], %s5807
        %s5809 = sand.u32 %s168, 1
        %s5810 = smul.addr %s5809, 2
        %s5811 = scalar_lea.vmem [#allocation8], %s5810
        // Predicated region
        $region53: #{tpu_custom_call.1} parent=43 // pred_check
          %p5812 = pneg %p178
        $region54: #{tpu_custom_call.1} parent=43 // pred_check_branch
          %5814 = sbr.rel (%p5812) target = $region56
        $region55: #{tpu_custom_call.1} parent=43 // pred_region
          %5816 = vsyncadd %s5808, 0
          %s5817 = smul.addr %s24, 2
          %s5818 = scalar_lea.hbm %s6, %s5817
          %s5820 = sshll.u32 %s5811, 4
          %s5821 = int_to_ptr.vmem [resolvable:$true] %s5820
          %s5822 = sshll.u32 %s5818, 4
          %s5823 = int_to_ptr.hbm [resolvable:$true] %s5822
          %5825 = dma.vmem_to_hbm [thread:$0]  %s5821, 32, %s5823, %s5808
        $region56: #{tpu_custom_call.1} parent=43 // pred_fallthru
          _
      $region44: #{tpu_custom_call.1} parent=5 // pred_fallthru
        _
      %p5826 = scmp.le.s32.totalorder 2, %s19
      // Predicated region
      $region57: #{tpu_custom_call.1} parent=5 // pred_check
        %p5827 = pneg %p5826
      $region58: #{tpu_custom_call.1} parent=5 // pred_check_branch
        %5829 = sbr.rel (%p5827) target = $region60
      $region59: #{tpu_custom_call.1} parent=5 // pred_region
        %s5830 = ssub.s32 %s19, 2
        // Predicated region
        $region61: #{tpu_custom_call.1} parent=59 // pred_check
          %p5831 = pneg %p184
        $region62: #{tpu_custom_call.1} parent=59 // pred_check_branch
          %5833 = sbr.rel (%p5831) target = $region64
        $region63: #{tpu_custom_call.1} parent=59 // pred_region
          %s5834 = sand.u32 %s169, 1
          %s5835 = scalar_lea.sflag [#allocation5], %s5834
          %s5836 = sand.u32 %s169, 1
          %s5837 = smul.addr %s5836, 2
          %s5838 = scalar_lea.vmem [#allocation8], %s5837
          %5840 = dma.done %s5835, 32
        $region64: #{tpu_custom_call.1} parent=59 // pred_fallthru
          _
      $region60: #{tpu_custom_call.1} parent=5 // pred_fallthru
        _
    $region6: #{tpu_custom_call.1} parent=1 // loop_footer
      %s23 = sadd.s32 1, %s19
    $region7: #{tpu_custom_call.1} parent=1 // loop_footer_branch
      %18 = sbr.rel target = $region3
    $region8: #{tpu_custom_call.1} parent=1 // loop_exit
      _
    %5841 = vsyncpa [#allocation4], 1
    %s5842 = scalar_lea.sflag [#allocation4], 1
    %5843 = vsyncpa %s5842, 1
    %5844 = vsyncpa [#allocation7], 1
    %5845 = vsyncpa [#allocation5], 1
    %s5846 = scalar_lea.sflag [#allocation5], 1
    %5847 = vsyncpa %s5846, 1

</llo_original>
